<compile_context>
chip_gen: v7x
topology: tpu7x:2x2x1
jax: 0.10.0
libtpu: 0.0.40
codegen_flags: <defaults>
</compile_context>

<pallas_src>
import jax
import jax.numpy as jnp
from jax import lax
from jax.experimental import pallas as pl
from jax.experimental.pallas import tpu as pltpu

D = 128      # embedding_dim
H = 8        # num_heads
HD = D // H  # head_dim (16)
FF = 512     # dim_feedforward
L = 4        # num_layers
EPS = 1e-5   # LayerNorm eps (PyTorch default)
MAX_TB = 512  # max batch-tile rows per grid step (stacked matmul M = 2*tb)


def _layernorm(x, g, b):
    # Fused single-pass LayerNorm: var = E[x^2] - mu^2 (one reduce chain less).
    mu = jnp.mean(x, axis=-1, keepdims=True)
    ex2 = jnp.mean(x * x, axis=-1, keepdims=True)
    var = ex2 - mu * mu
    return (x - mu) * lax.rsqrt(var + EPS) * g + b


def transformer_rec_kernel(u_ref, v_ref, hm_ref, hmt_ref,
                           wqkv_ref, bqkv_ref, wo_ref, bo_ref,
                           ln1g_ref, ln1b_ref,
                           w1_ref, b1_ref, w2_ref, b2_ref,
                           ln2g_ref, ln2b_ref,
                           lnfg_ref, lnfb_ref,
                           pooled_ref):
    u0 = u_ref[...]                      # (tb, D) user embeddings, f32
    v0 = v_ref[...]                      # (tb, D) item embeddings, f32
    tb = u0.shape[0]

    hm = hm_ref[...]                     # (D, H) bf16 one-hot head mask * 1/sqrt(HD)
    hmt = hmt_ref[...]                   # (H, D) bf16 one-hot head mask

    def mm_bf16(a, w):                   # bf16 MXU matmul, f32 accumulation
        return jnp.dot(a.astype(jnp.bfloat16), w,
                       preferred_element_type=jnp.float32)

    # Stack user/item token streams along sublanes -> one big-M matmul per op.
    x = jnp.concatenate([u0, v0], axis=0)            # (2*tb, D) f32

    for l in range(L):                               # static unroll, L == 4
        qkv = mm_bf16(x, wqkv_ref[l]) + bqkv_ref[l]  # (2tb, 3D)
        q, k, v = qkv[:, :D], qkv[:, D:2 * D], qkv[:, 2 * D:]
        qu, qv = q[:tb], q[tb:]
        ku, kv = k[:tb], k[tb:]
        vu, vv = v[:tb], v[tb:]

        # seq-len-2 attention.  For query token t and head h:
        #   softmax([s_t,user, s_t,item]) -> p_t = sigmoid(s_t,user - s_t,item)
        #   attn_t = p_t*v_user + (1-p_t)*v_item = v_item + p_t*(v_user - v_item)
        dk = ku - kv                                             # (tb, D)
        dv = vu - vv                                             # (tb, D)
        sd = mm_bf16(jnp.concatenate([qu * dk, qv * dk], axis=0), hm)  # (2tb, H)
        p = pl.reciprocal(1.0 + jnp.exp(-sd), approx=True)      # sigmoid (EUP)
        pbc = mm_bf16(p, hmt)                                    # (2tb, D)
        attn = jnp.concatenate([vv + pbc[:tb] * dv,
                                vv + pbc[tb:] * dv], axis=0)     # (2tb, D)

        o = mm_bf16(attn, wo_ref[l]) + bo_ref[l]                 # (2tb, D)
        x = _layernorm(x + o, ln1g_ref[l], ln1b_ref[l])          # post-LN

        h = jnp.maximum(mm_bf16(x, w1_ref[l]) + b1_ref[l], 0.0)  # (2tb, FF)
        f = mm_bf16(h, w2_ref[l]) + b2_ref[l]                    # (2tb, D)
        x = _layernorm(x + f, ln2g_ref[l], ln2b_ref[l])

    xu, xv = x[:tb], x[tb:]

    # mean over the 2 tokens + final LayerNorm (computed, unused by the score —
    # matches the PyTorch forward)
    pooled_ref[...] = _layernorm((xu + xv) * 0.5, lnfg_ref[...], lnfb_ref[...])


def _pick_tb(B, max_tb=MAX_TB):
    # Aim for >= 2 tiles (v7x has 2 TensorCores), tile rows a multiple of 8
    # (sublane), capped so per-tile VMEM stays small on every generation.
    half = (B + 1) // 2
    return int(min(max_tb, max(8, ((half + 7) // 8) * 8)))


def transformer_recommend(user_emb, item_emb, kp, tb=None):
    B = user_emb.shape[0]
    if tb is None:
        tb = _pick_tb(B)
    num_tiles = pl.cdiv(B, tb)
    Bp = num_tiles * tb
    if Bp != B:                              # pad the remainder tile
        pad = ((0, Bp - B), (0, 0))
        user_emb_p = jnp.pad(user_emb, pad)
        item_emb_p = jnp.pad(item_emb, pad)
    else:
        user_emb_p, item_emb_p = user_emb, item_emb

    # Head-selector one-hot constants, built once and passed as tiny inputs so
    # they are not re-materialized per grid step; 1/sqrt(HD) folded into hm.
    # Entries are exactly 0 / 0.25 / 1 -> exact in bf16 (single-pass MXU).
    hm = (jnp.arange(D)[:, None] // HD == jnp.arange(H)[None, :]).astype(jnp.float32)
    hm_scaled = (hm * (HD ** -0.5)).astype(jnp.bfloat16)
    hmt = hm.T.astype(jnp.bfloat16)

    args = (user_emb_p, item_emb_p, hm_scaled, hmt,
            kp["wqkv_t"], kp["bqkv"], kp["wo_t"], kp["bo"],
            kp["ln1_g"], kp["ln1_b"],
            kp["w1_t"], kp["b1"], kp["w2_t"], kp["b2"],
            kp["ln2_g"], kp["ln2_b"],
            kp["lnf_g"], kp["lnf_b"])

    def batch_spec(shape):
        n = len(shape)
        return pl.BlockSpec(shape, lambda i, n=n: (i,) + (0,) * (n - 1))

    def fixed_spec(a):
        n = a.ndim
        return pl.BlockSpec(a.shape, lambda i, n=n: (0,) * n)

    in_specs = [batch_spec((tb, D)), batch_spec((tb, D))] + \
               [fixed_spec(a) for a in args[2:]]

    pooled = pl.pallas_call(
        transformer_rec_kernel,
        out_shape=jax.ShapeDtypeStruct((Bp, D), jnp.float32),
        grid=(num_tiles,),
        in_specs=in_specs,
        out_specs=pl.BlockSpec((tb, D), lambda i: (i, 0)),
        compiler_params=pltpu.CompilerParams(
            dimension_semantics=("parallel",),
            vmem_limit_bytes=32 << 20),
    )(*args)
    pooled = pooled[:B]

    # Score head depends only on the raw embeddings (not on the transformer) —
    # keep it out of the kernel as plain XLA f32 (no lane-sparse (tb,1) MXU
    # matmul / masked store per grid step, and tight f32 accuracy for free).
    concat = jnp.concatenate([user_emb, item_emb], axis=1)     # (B, 2D)
    score = jax.nn.sigmoid(concat @ kp["wout_t"] + kp["bout"])  # (B, 1)
    return score, pooled


# ---------------- deterministic parameter init (PyTorch layouts) ------------

def init_params(key, num_users, num_items):
    ks = jax.random.split(key, 12)

    def normal(k, shape, scale=0.02):
        return (scale * jax.random.normal(k, shape)).astype(jnp.float32)

    user_table = normal(ks[0], (num_users, D), 1.0)   # nn.Embedding ~ N(0,1)
    item_table = normal(ks[1], (num_items, D), 1.0)

    tp = dict(  # "torch-layout" params (f32), stacked over layers
        in_proj_w=normal(ks[2], (L, 3 * D, D)),
        in_proj_b=normal(ks[3], (L, 3 * D)),
        out_proj_w=normal(ks[4], (L, D, D)),
        out_proj_b=normal(ks[5], (L, D)),
        lin1_w=normal(ks[6], (L, FF, D)),
        lin1_b=normal(ks[7], (L, FF)),
        lin2_w=normal(ks[8], (L, D, FF)),
        lin2_b=normal(ks[9], (L, D)),
        ln1_g=jnp.ones((L, D), jnp.float32), ln1_b=jnp.zeros((L, D), jnp.float32),
        ln2_g=jnp.ones((L, D), jnp.float32), ln2_b=jnp.zeros((L, D), jnp.float32),
        lnf_g=jnp.ones((D,), jnp.float32), lnf_b=jnp.zeros((D,), jnp.float32),
        out_w=normal(ks[10], (1, 2 * D)),
        out_b=jnp.zeros((1,), jnp.float32),
    )

    kp = dict(  # kernel-layout: pre-transposed, 2-D biases, big weights bf16
        wqkv_t=jnp.transpose(tp["in_proj_w"], (0, 2, 1)).astype(jnp.bfloat16),
        bqkv=tp["in_proj_b"].reshape(L, 1, 3 * D),
        wo_t=jnp.transpose(tp["out_proj_w"], (0, 2, 1)).astype(jnp.bfloat16),
        bo=tp["out_proj_b"].reshape(L, 1, D),
        ln1_g=tp["ln1_g"].reshape(L, 1, D), ln1_b=tp["ln1_b"].reshape(L, 1, D),
        w1_t=jnp.transpose(tp["lin1_w"], (0, 2, 1)).astype(jnp.bfloat16),
        b1=tp["lin1_b"].reshape(L, 1, FF),
        w2_t=jnp.transpose(tp["lin2_w"], (0, 2, 1)).astype(jnp.bfloat16),
        b2=tp["lin2_b"].reshape(L, 1, D),
        ln2_g=tp["ln2_g"].reshape(L, 1, D), ln2_b=tp["ln2_b"].reshape(L, 1, D),
        lnf_g=tp["lnf_g"].reshape(1, D), lnf_b=tp["lnf_b"].reshape(1, D),
        wout_t=tp["out_w"].T,                       # (2D, 1) f32 (score path)
        bout=tp["out_b"].reshape(1, 1),
    )
    return tp, kp, user_table, item_table


# ---------------- pure-JAX f32 reference (standard MHA formulation) ---------

def _ln_ref(x, g, b):
    mu = x.mean(-1, keepdims=True)
    var = ((x - mu) ** 2).mean(-1, keepdims=True)
    return (x - mu) / jnp.sqrt(var + EPS) * g + b


def _mha_ref(x, w_in, b_in, w_out, b_out):
    B, S, _ = x.shape
    qkv = x @ w_in.T + b_in
    q, k, v = jnp.split(qkv, 3, axis=-1)
    def heads(t): return t.reshape(B, S, H, HD).transpose(0, 2, 1, 3)
    q, k, v = heads(q), heads(k), heads(v)
    s = jnp.einsum("bhqd,bhkd->bhqk", q, k) / jnp.sqrt(jnp.float32(HD))
    p = jax.nn.softmax(s, axis=-1)
    o = jnp.einsum("bhqk,bhkd->bhqd", p, v)
    o = o.transpose(0, 2, 1, 3).reshape(B, S, D)
    return o @ w_out.T + b_out


def reference_forward(user_emb, item_emb, tp):
    x = jnp.stack([user_emb, item_emb], axis=1)          # (B, 2, D)
    for l in range(L):
        a = _mha_ref(x, tp["in_proj_w"][l], tp["in_proj_b"][l],
                     tp["out_proj_w"][l], tp["out_proj_b"][l])
        x = _ln_ref(x + a, tp["ln1_g"][l], tp["ln1_b"][l])
        h = jax.nn.relu(x @ tp["lin1_w"][l].T + tp["lin1_b"][l])
        f = h @ tp["lin2_w"][l].T + tp["lin2_b"][l]
        x = _ln_ref(x + f, tp["ln2_g"][l], tp["ln2_b"][l])
    pooled = _ln_ref(x.mean(axis=1), tp["lnf_g"], tp["lnf_b"])
    concat = jnp.concatenate([user_emb, item_emb], axis=1)
    score = jax.nn.sigmoid(concat @ tp["out_w"].T + tp["out_b"])
    return score, pooled


if __name__ == "__main__":
    num_users, num_items, B = 50, 80, 8
    key = jax.random.PRNGKey(0)
    k_param, k_u, k_i = jax.random.split(key, 3)

    tp, kp, user_table, item_table = init_params(k_param, num_users, num_items)

    user_ids = jax.random.randint(k_u, (B,), 0, num_users)
    item_ids = jax.random.randint(k_i, (B,), 0, num_items)

    # embedding lookup (glue, plain JAX gather)
    user_emb = jnp.take(user_table, user_ids, axis=0)
    item_emb = jnp.take(item_table, item_ids, axis=0)

    score, pooled = transformer_recommend(user_emb, item_emb, kp)
    jax.block_until_ready((score, pooled))

    ref_score, ref_pooled = reference_forward(user_emb, item_emb, tp)
    assert score.shape == (B, 1) and pooled.shape == (B, D)
    # Score path is plain XLA f32 -> tight tolerance.
    assert jnp.allclose(score, ref_score, atol=1e-3, rtol=1e-3)
    # Pooled path goes through 4 layers of bf16-weight matmuls (f32 accum) ->
    # relaxed tolerance vs the all-f32 reference.
    assert jnp.allclose(pooled, ref_pooled, atol=5e-2, rtol=5e-2)
    print("KERNEL_OK")
</pallas_src>

<mosaic_0001>
module attributes {stable_mosaic.version = 11 : i64} {
  func.func @transformer_rec_kernel(%arg0: i32, %arg1: memref<8x128xf32, #tpu.memory_space<vmem>>, %arg2: memref<8x128xf32, #tpu.memory_space<vmem>>, %arg3: memref<128x8xbf16, #tpu.memory_space<vmem>>, %arg4: memref<8x128xbf16, #tpu.memory_space<vmem>>, %arg5: memref<4x128x384xbf16, #tpu.memory_space<vmem>>, %arg6: memref<4x1x384xf32, #tpu.memory_space<vmem>>, %arg7: memref<4x128x128xbf16, #tpu.memory_space<vmem>>, %arg8: memref<4x1x128xf32, #tpu.memory_space<vmem>>, %arg9: memref<4x1x128xf32, #tpu.memory_space<vmem>>, %arg10: memref<4x1x128xf32, #tpu.memory_space<vmem>>, %arg11: memref<4x128x512xbf16, #tpu.memory_space<vmem>>, %arg12: memref<4x1x512xf32, #tpu.memory_space<vmem>>, %arg13: memref<4x512x128xbf16, #tpu.memory_space<vmem>>, %arg14: memref<4x1x128xf32, #tpu.memory_space<vmem>>, %arg15: memref<4x1x128xf32, #tpu.memory_space<vmem>>, %arg16: memref<4x1x128xf32, #tpu.memory_space<vmem>>, %arg17: memref<1x128xf32, #tpu.memory_space<vmem>>, %arg18: memref<1x128xf32, #tpu.memory_space<vmem>>, %arg19: memref<8x128xf32, #tpu.memory_space<vmem>>) attributes {dimension_semantics = [#tpu.dimension_semantics<parallel>], iteration_bounds = array<i64: 1>, scalar_prefetch = 0 : i64, scratch_operands = 0 : i64, tpu.core_type = #tpu.core_type<tc>, window_params = [{transform_indices = @transform_0, window_bounds = array<i64: 8, 128>}, {transform_indices = @transform_1, window_bounds = array<i64: 8, 128>}, {pipeline_mode = #tpu.pipeline_mode<synchronous>, transform_indices = @transform_2, window_bounds = array<i64: 128, 8>}, {pipeline_mode = #tpu.pipeline_mode<synchronous>, transform_indices = @transform_3, window_bounds = array<i64: 8, 128>}, {pipeline_mode = #tpu.pipeline_mode<synchronous>, transform_indices = @transform_4, window_bounds = array<i64: 4, 128, 384>}, {pipeline_mode = #tpu.pipeline_mode<synchronous>, transform_indices = @transform_5, window_bounds = array<i64: 4, 1, 384>}, {pipeline_mode = #tpu.pipeline_mode<synchronous>, transform_indices = @transform_6, window_bounds = array<i64: 4, 128, 128>}, {pipeline_mode = #tpu.pipeline_mode<synchronous>, transform_indices = @transform_7, window_bounds = array<i64: 4, 1, 128>}, {pipeline_mode = #tpu.pipeline_mode<synchronous>, transform_indices = @transform_8, window_bounds = array<i64: 4, 1, 128>}, {pipeline_mode = #tpu.pipeline_mode<synchronous>, transform_indices = @transform_9, window_bounds = array<i64: 4, 1, 128>}, {pipeline_mode = #tpu.pipeline_mode<synchronous>, transform_indices = @transform_10, window_bounds = array<i64: 4, 128, 512>}, {pipeline_mode = #tpu.pipeline_mode<synchronous>, transform_indices = @transform_11, window_bounds = array<i64: 4, 1, 512>}, {pipeline_mode = #tpu.pipeline_mode<synchronous>, transform_indices = @transform_12, window_bounds = array<i64: 4, 512, 128>}, {pipeline_mode = #tpu.pipeline_mode<synchronous>, transform_indices = @transform_13, window_bounds = array<i64: 4, 1, 128>}, {pipeline_mode = #tpu.pipeline_mode<synchronous>, transform_indices = @transform_14, window_bounds = array<i64: 4, 1, 128>}, {pipeline_mode = #tpu.pipeline_mode<synchronous>, transform_indices = @transform_15, window_bounds = array<i64: 4, 1, 128>}, {pipeline_mode = #tpu.pipeline_mode<synchronous>, transform_indices = @transform_16, window_bounds = array<i64: 1, 128>}, {pipeline_mode = #tpu.pipeline_mode<synchronous>, transform_indices = @transform_17, window_bounds = array<i64: 1, 128>}, {transform_indices = @transform_18, window_bounds = array<i64: 8, 128>}]} {
    %c0 = arith.constant 0 : index
    %c0_0 = arith.constant 0 : index
    %0 = vector.load %arg1[%c0, %c0_0] : memref<8x128xf32, #tpu.memory_space<vmem>>, vector<8x128xf32>
    %c0_1 = arith.constant 0 : index
    %c0_2 = arith.constant 0 : index
    %1 = vector.load %arg2[%c0_1, %c0_2] : memref<8x128xf32, #tpu.memory_space<vmem>>, vector<8x128xf32>
    %c0_3 = arith.constant 0 : index
    %c0_4 = arith.constant 0 : index
    %2 = vector.load %arg3[%c0_3, %c0_4] : memref<128x8xbf16, #tpu.memory_space<vmem>>, vector<128x8xbf16>
    %c0_5 = arith.constant 0 : index
    %c0_6 = arith.constant 0 : index
    %3 = vector.load %arg4[%c0_5, %c0_6] : memref<8x128xbf16, #tpu.memory_space<vmem>>, vector<8x128xbf16>
    %4 = tpu.concatenate %0, %1 in 0 : vector<8x128xf32>, vector<8x128xf32> -> vector<16x128xf32>
    %c0_7 = arith.constant 0 : index
    %c0_8 = arith.constant 0 : index
    %c0_9 = arith.constant 0 : index
    %5 = vector.load %arg5[%c0_7, %c0_8, %c0_9] : memref<4x128x384xbf16, #tpu.memory_space<vmem>>, vector<1x128x384xbf16>
    %6 = vector.shape_cast %5 : vector<1x128x384xbf16> to vector<128x384xbf16>
    %7 = arith.truncf %4 : vector<16x128xf32> to vector<16x128xbf16>
    %cst = arith.constant dense<0.000000e+00> : vector<16x384xf32>
    %8 = tpu.matmul %7, %6, %cst {dimension_numbers = #tpu.dot_dimension_numbers<[1], [0], [0], [1], [0, 0, 1, 1], [], []>} : vector<16x128xbf16>, vector<128x384xbf16>, vector<16x384xf32> -> vector<16x384xf32>
    %c0_10 = arith.constant 0 : index
    %c0_11 = arith.constant 0 : index
    %c0_12 = arith.constant 0 : index
    %9 = vector.load %arg6[%c0_10, %c0_11, %c0_12] : memref<4x1x384xf32, #tpu.memory_space<vmem>>, vector<1x1x384xf32>
    %10 = vector.shape_cast %9 : vector<1x1x384xf32> to vector<1x384xf32>
    %11 = vector.broadcast %10 : vector<1x384xf32> to vector<16x384xf32>
    %12 = arith.addf %8, %11 : vector<16x384xf32>
    %13 = vector.extract_strided_slice %12 {offsets = [0, 0], sizes = [16, 128], strides = [1, 1]} : vector<16x384xf32> to vector<16x128xf32>
    %14 = vector.extract_strided_slice %12 {offsets = [0, 128], sizes = [16, 128], strides = [1, 1]} : vector<16x384xf32> to vector<16x128xf32>
    %15 = vector.extract_strided_slice %12 {offsets = [0, 256], sizes = [16, 128], strides = [1, 1]} : vector<16x384xf32> to vector<16x128xf32>
    %16 = vector.extract_strided_slice %13 {offsets = [0, 0], sizes = [8, 128], strides = [1, 1]} : vector<16x128xf32> to vector<8x128xf32>
    %17 = vector.extract_strided_slice %13 {offsets = [8, 0], sizes = [8, 128], strides = [1, 1]} : vector<16x128xf32> to vector<8x128xf32>
    %18 = vector.extract_strided_slice %14 {offsets = [0, 0], sizes = [8, 128], strides = [1, 1]} : vector<16x128xf32> to vector<8x128xf32>
    %19 = vector.extract_strided_slice %14 {offsets = [8, 0], sizes = [8, 128], strides = [1, 1]} : vector<16x128xf32> to vector<8x128xf32>
    %20 = vector.extract_strided_slice %15 {offsets = [0, 0], sizes = [8, 128], strides = [1, 1]} : vector<16x128xf32> to vector<8x128xf32>
    %21 = vector.extract_strided_slice %15 {offsets = [8, 0], sizes = [8, 128], strides = [1, 1]} : vector<16x128xf32> to vector<8x128xf32>
    %22 = arith.subf %18, %19 : vector<8x128xf32>
    %23 = arith.subf %20, %21 : vector<8x128xf32>
    %24 = arith.mulf %16, %22 : vector<8x128xf32>
    %25 = arith.mulf %17, %22 : vector<8x128xf32>
    %26 = tpu.concatenate %24, %25 in 0 : vector<8x128xf32>, vector<8x128xf32> -> vector<16x128xf32>
    %27 = arith.truncf %26 : vector<16x128xf32> to vector<16x128xbf16>
    %cst_13 = arith.constant dense<0.000000e+00> : vector<16x8xf32>
    %28 = tpu.matmul %27, %2, %cst_13 {dimension_numbers = #tpu.dot_dimension_numbers<[1], [0], [0], [1], [0, 0, 1, 1], [], []>} : vector<16x128xbf16>, vector<128x8xbf16>, vector<16x8xf32> -> vector<16x8xf32>
    %cst_14 = arith.constant 0.000000e+00 : f32
    %29 = vector.broadcast %cst_14 : f32 to vector<16x8xf32>
    %30 = arith.subf %29, %28 : vector<16x8xf32>
    %31 = math.exp %30 : vector<16x8xf32>
    %cst_15 = arith.constant 1.000000e+00 : f32
    %32 = vector.broadcast %cst_15 : f32 to vector<16x8xf32>
    %33 = arith.addf %32, %31 : vector<16x8xf32>
    %34 = tpu.reciprocal %33 {approx = true} : vector<16x8xf32> -> vector<16x8xf32>
    %35 = arith.truncf %34 : vector<16x8xf32> to vector<16x8xbf16>
    %cst_16 = arith.constant dense<0.000000e+00> : vector<16x128xf32>
    %36 = tpu.matmul %35, %3, %cst_16 {dimension_numbers = #tpu.dot_dimension_numbers<[1], [0], [0], [1], [0, 0, 1, 1], [], []>} : vector<16x8xbf16>, vector<8x128xbf16>, vector<16x128xf32> -> vector<16x128xf32>
    %37 = vector.extract_strided_slice %36 {offsets = [0, 0], sizes = [8, 128], strides = [1, 1]} : vector<16x128xf32> to vector<8x128xf32>
    %38 = arith.mulf %37, %23 : vector<8x128xf32>
    %39 = arith.addf %21, %38 : vector<8x128xf32>
    %40 = vector.extract_strided_slice %36 {offsets = [8, 0], sizes = [8, 128], strides = [1, 1]} : vector<16x128xf32> to vector<8x128xf32>
    %41 = arith.mulf %40, %23 : vector<8x128xf32>
    %42 = arith.addf %21, %41 : vector<8x128xf32>
    %43 = tpu.concatenate %39, %42 in 0 : vector<8x128xf32>, vector<8x128xf32> -> vector<16x128xf32>
    %c0_17 = arith.constant 0 : index
    %c0_18 = arith.constant 0 : index
    %c0_19 = arith.constant 0 : index
    %44 = vector.load %arg7[%c0_17, %c0_18, %c0_19] : memref<4x128x128xbf16, #tpu.memory_space<vmem>>, vector<1x128x128xbf16>
    %45 = vector.shape_cast %44 : vector<1x128x128xbf16> to vector<128x128xbf16>
    %46 = arith.truncf %43 : vector<16x128xf32> to vector<16x128xbf16>
    %cst_20 = arith.constant dense<0.000000e+00> : vector<16x128xf32>
    %47 = tpu.matmul %46, %45, %cst_20 {dimension_numbers = #tpu.dot_dimension_numbers<[1], [0], [0], [1], [0, 0, 1, 1], [], []>} : vector<16x128xbf16>, vector<128x128xbf16>, vector<16x128xf32> -> vector<16x128xf32>
    %c0_21 = arith.constant 0 : index
    %c0_22 = arith.constant 0 : index
    %c0_23 = arith.constant 0 : index
    %48 = vector.load %arg8[%c0_21, %c0_22, %c0_23] : memref<4x1x128xf32, #tpu.memory_space<vmem>>, vector<1x1x128xf32>
    %49 = vector.shape_cast %48 : vector<1x1x128xf32> to vector<1x128xf32>
    %50 = vector.broadcast %49 : vector<1x128xf32> to vector<16x128xf32>
    %51 = arith.addf %47, %50 : vector<16x128xf32>
    %52 = arith.addf %4, %51 : vector<16x128xf32>
    %c0_24 = arith.constant 0 : index
    %c0_25 = arith.constant 0 : index
    %c0_26 = arith.constant 0 : index
    %53 = vector.load %arg9[%c0_24, %c0_25, %c0_26] : memref<4x1x128xf32, #tpu.memory_space<vmem>>, vector<1x1x128xf32>
    %54 = vector.shape_cast %53 : vector<1x1x128xf32> to vector<1x128xf32>
    %c0_27 = arith.constant 0 : index
    %c0_28 = arith.constant 0 : index
    %c0_29 = arith.constant 0 : index
    %55 = vector.load %arg10[%c0_27, %c0_28, %c0_29] : memref<4x1x128xf32, #tpu.memory_space<vmem>>, vector<1x1x128xf32>
    %56 = vector.shape_cast %55 : vector<1x1x128xf32> to vector<1x128xf32>
    %cst_30 = arith.constant dense<0.000000e+00> : vector<16xf32>
    %57 = vector.multi_reduction <add>, %52, %cst_30 [1] : vector<16x128xf32> to vector<16xf32>
    %58 = vector.shape_cast %57 : vector<16xf32> to vector<16x1xf32>
    %cst_31 = arith.constant 1.280000e+02 : f32
    %59 = vector.broadcast %cst_31 : f32 to vector<16x1xf32>
    %60 = arith.divf %58, %59 : vector<16x1xf32>
    %61 = arith.mulf %52, %52 : vector<16x128xf32>
    %cst_32 = arith.constant dense<0.000000e+00> : vector<16xf32>
    %62 = vector.multi_reduction <add>, %61, %cst_32 [1] : vector<16x128xf32> to vector<16xf32>
    %63 = vector.shape_cast %62 : vector<16xf32> to vector<16x1xf32>
    %cst_33 = arith.constant 1.280000e+02 : f32
    %64 = vector.broadcast %cst_33 : f32 to vector<16x1xf32>
    %65 = arith.divf %63, %64 : vector<16x1xf32>
    %66 = arith.mulf %60, %60 : vector<16x1xf32>
    %67 = arith.subf %65, %66 : vector<16x1xf32>
    %68 = vector.broadcast %60 : vector<16x1xf32> to vector<16x128xf32>
    %69 = arith.subf %52, %68 : vector<16x128xf32>
    %cst_34 = arith.constant 9.99999974E-6 : f32
    %70 = vector.broadcast %cst_34 : f32 to vector<16x1xf32>
    %71 = arith.addf %67, %70 : vector<16x1xf32>
    %72 = math.rsqrt %71 : vector<16x1xf32>
    %73 = vector.broadcast %72 : vector<16x1xf32> to vector<16x128xf32>
    %74 = arith.mulf %69, %73 : vector<16x128xf32>
    %75 = vector.broadcast %54 : vector<1x128xf32> to vector<16x128xf32>
    %76 = arith.mulf %74, %75 : vector<16x128xf32>
    %77 = vector.broadcast %56 : vector<1x128xf32> to vector<16x128xf32>
    %78 = arith.addf %76, %77 : vector<16x128xf32>
    %c0_35 = arith.constant 0 : index
    %c0_36 = arith.constant 0 : index
    %c0_37 = arith.constant 0 : index
    %79 = vector.load %arg11[%c0_35, %c0_36, %c0_37] : memref<4x128x512xbf16, #tpu.memory_space<vmem>>, vector<1x128x512xbf16>
    %80 = vector.shape_cast %79 : vector<1x128x512xbf16> to vector<128x512xbf16>
    %81 = arith.truncf %78 : vector<16x128xf32> to vector<16x128xbf16>
    %cst_38 = arith.constant dense<0.000000e+00> : vector<16x512xf32>
    %82 = tpu.matmul %81, %80, %cst_38 {dimension_numbers = #tpu.dot_dimension_numbers<[1], [0], [0], [1], [0, 0, 1, 1], [], []>} : vector<16x128xbf16>, vector<128x512xbf16>, vector<16x512xf32> -> vector<16x512xf32>
    %c0_39 = arith.constant 0 : index
    %c0_40 = arith.constant 0 : index
    %c0_41 = arith.constant 0 : index
    %83 = vector.load %arg12[%c0_39, %c0_40, %c0_41] : memref<4x1x512xf32, #tpu.memory_space<vmem>>, vector<1x1x512xf32>
    %84 = vector.shape_cast %83 : vector<1x1x512xf32> to vector<1x512xf32>
    %85 = vector.broadcast %84 : vector<1x512xf32> to vector<16x512xf32>
    %86 = arith.addf %82, %85 : vector<16x512xf32>
    %cst_42 = arith.constant 0.000000e+00 : f32
    %87 = vector.broadcast %cst_42 : f32 to vector<16x512xf32>
    %88 = arith.maximumf %86, %87 : vector<16x512xf32>
    %c0_43 = arith.constant 0 : index
    %c0_44 = arith.constant 0 : index
    %c0_45 = arith.constant 0 : index
    %89 = vector.load %arg13[%c0_43, %c0_44, %c0_45] : memref<4x512x128xbf16, #tpu.memory_space<vmem>>, vector<1x512x128xbf16>
    %90 = vector.shape_cast %89 : vector<1x512x128xbf16> to vector<512x128xbf16>
    %91 = arith.truncf %88 : vector<16x512xf32> to vector<16x512xbf16>
    %cst_46 = arith.constant dense<0.000000e+00> : vector<16x128xf32>
    %92 = tpu.matmul %91, %90, %cst_46 {dimension_numbers = #tpu.dot_dimension_numbers<[1], [0], [0], [1], [0, 0, 1, 1], [], []>} : vector<16x512xbf16>, vector<512x128xbf16>, vector<16x128xf32> -> vector<16x128xf32>
    %c0_47 = arith.constant 0 : index
    %c0_48 = arith.constant 0 : index
    %c0_49 = arith.constant 0 : index
    %93 = vector.load %arg14[%c0_47, %c0_48, %c0_49] : memref<4x1x128xf32, #tpu.memory_space<vmem>>, vector<1x1x128xf32>
    %94 = vector.shape_cast %93 : vector<1x1x128xf32> to vector<1x128xf32>
    %95 = vector.broadcast %94 : vector<1x128xf32> to vector<16x128xf32>
    %96 = arith.addf %92, %95 : vector<16x128xf32>
    %97 = arith.addf %78, %96 : vector<16x128xf32>
    %c0_50 = arith.constant 0 : index
    %c0_51 = arith.constant 0 : index
    %c0_52 = arith.constant 0 : index
    %98 = vector.load %arg15[%c0_50, %c0_51, %c0_52] : memref<4x1x128xf32, #tpu.memory_space<vmem>>, vector<1x1x128xf32>
    %99 = vector.shape_cast %98 : vector<1x1x128xf32> to vector<1x128xf32>
    %c0_53 = arith.constant 0 : index
    %c0_54 = arith.constant 0 : index
    %c0_55 = arith.constant 0 : index
    %100 = vector.load %arg16[%c0_53, %c0_54, %c0_55] : memref<4x1x128xf32, #tpu.memory_space<vmem>>, vector<1x1x128xf32>
    %101 = vector.shape_cast %100 : vector<1x1x128xf32> to vector<1x128xf32>
    %cst_56 = arith.constant dense<0.000000e+00> : vector<16xf32>
    %102 = vector.multi_reduction <add>, %97, %cst_56 [1] : vector<16x128xf32> to vector<16xf32>
    %103 = vector.shape_cast %102 : vector<16xf32> to vector<16x1xf32>
    %cst_57 = arith.constant 1.280000e+02 : f32
    %104 = vector.broadcast %cst_57 : f32 to vector<16x1xf32>
    %105 = arith.divf %103, %104 : vector<16x1xf32>
    %106 = arith.mulf %97, %97 : vector<16x128xf32>
    %cst_58 = arith.constant dense<0.000000e+00> : vector<16xf32>
    %107 = vector.multi_reduction <add>, %106, %cst_58 [1] : vector<16x128xf32> to vector<16xf32>
    %108 = vector.shape_cast %107 : vector<16xf32> to vector<16x1xf32>
    %cst_59 = arith.constant 1.280000e+02 : f32
    %109 = vector.broadcast %cst_59 : f32 to vector<16x1xf32>
    %110 = arith.divf %108, %109 : vector<16x1xf32>
    %111 = arith.mulf %105, %105 : vector<16x1xf32>
    %112 = arith.subf %110, %111 : vector<16x1xf32>
    %113 = vector.broadcast %105 : vector<16x1xf32> to vector<16x128xf32>
    %114 = arith.subf %97, %113 : vector<16x128xf32>
    %cst_60 = arith.constant 9.99999974E-6 : f32
    %115 = vector.broadcast %cst_60 : f32 to vector<16x1xf32>
    %116 = arith.addf %112, %115 : vector<16x1xf32>
    %117 = math.rsqrt %116 : vector<16x1xf32>
    %118 = vector.broadcast %117 : vector<16x1xf32> to vector<16x128xf32>
    %119 = arith.mulf %114, %118 : vector<16x128xf32>
    %120 = vector.broadcast %99 : vector<1x128xf32> to vector<16x128xf32>
    %121 = arith.mulf %119, %120 : vector<16x128xf32>
    %122 = vector.broadcast %101 : vector<1x128xf32> to vector<16x128xf32>
    %123 = arith.addf %121, %122 : vector<16x128xf32>
    %c1 = arith.constant 1 : index
    %c0_61 = arith.constant 0 : index
    %c0_62 = arith.constant 0 : index
    %124 = vector.load %arg5[%c1, %c0_61, %c0_62] : memref<4x128x384xbf16, #tpu.memory_space<vmem>>, vector<1x128x384xbf16>
    %125 = vector.shape_cast %124 : vector<1x128x384xbf16> to vector<128x384xbf16>
    %126 = arith.truncf %123 : vector<16x128xf32> to vector<16x128xbf16>
    %cst_63 = arith.constant dense<0.000000e+00> : vector<16x384xf32>
    %127 = tpu.matmul %126, %125, %cst_63 {dimension_numbers = #tpu.dot_dimension_numbers<[1], [0], [0], [1], [0, 0, 1, 1], [], []>} : vector<16x128xbf16>, vector<128x384xbf16>, vector<16x384xf32> -> vector<16x384xf32>
    %c1_64 = arith.constant 1 : index
    %c0_65 = arith.constant 0 : index
    %c0_66 = arith.constant 0 : index
    %128 = vector.load %arg6[%c1_64, %c0_65, %c0_66] : memref<4x1x384xf32, #tpu.memory_space<vmem>>, vector<1x1x384xf32>
    %129 = vector.shape_cast %128 : vector<1x1x384xf32> to vector<1x384xf32>
    %130 = vector.broadcast %129 : vector<1x384xf32> to vector<16x384xf32>
    %131 = arith.addf %127, %130 : vector<16x384xf32>
    %132 = vector.extract_strided_slice %131 {offsets = [0, 0], sizes = [16, 128], strides = [1, 1]} : vector<16x384xf32> to vector<16x128xf32>
    %133 = vector.extract_strided_slice %131 {offsets = [0, 128], sizes = [16, 128], strides = [1, 1]} : vector<16x384xf32> to vector<16x128xf32>
    %134 = vector.extract_strided_slice %131 {offsets = [0, 256], sizes = [16, 128], strides = [1, 1]} : vector<16x384xf32> to vector<16x128xf32>
    %135 = vector.extract_strided_slice %132 {offsets = [0, 0], sizes = [8, 128], strides = [1, 1]} : vector<16x128xf32> to vector<8x128xf32>
    %136 = vector.extract_strided_slice %132 {offsets = [8, 0], sizes = [8, 128], strides = [1, 1]} : vector<16x128xf32> to vector<8x128xf32>
    %137 = vector.extract_strided_slice %133 {offsets = [0, 0], sizes = [8, 128], strides = [1, 1]} : vector<16x128xf32> to vector<8x128xf32>
    %138 = vector.extract_strided_slice %133 {offsets = [8, 0], sizes = [8, 128], strides = [1, 1]} : vector<16x128xf32> to vector<8x128xf32>
    %139 = vector.extract_strided_slice %134 {offsets = [0, 0], sizes = [8, 128], strides = [1, 1]} : vector<16x128xf32> to vector<8x128xf32>
    %140 = vector.extract_strided_slice %134 {offsets = [8, 0], sizes = [8, 128], strides = [1, 1]} : vector<16x128xf32> to vector<8x128xf32>
    %141 = arith.subf %137, %138 : vector<8x128xf32>
    %142 = arith.subf %139, %140 : vector<8x128xf32>
    %143 = arith.mulf %135, %141 : vector<8x128xf32>
    %144 = arith.mulf %136, %141 : vector<8x128xf32>
    %145 = tpu.concatenate %143, %144 in 0 : vector<8x128xf32>, vector<8x128xf32> -> vector<16x128xf32>
    %146 = arith.truncf %145 : vector<16x128xf32> to vector<16x128xbf16>
    %cst_67 = arith.constant dense<0.000000e+00> : vector<16x8xf32>
    %147 = tpu.matmul %146, %2, %cst_67 {dimension_numbers = #tpu.dot_dimension_numbers<[1], [0], [0], [1], [0, 0, 1, 1], [], []>} : vector<16x128xbf16>, vector<128x8xbf16>, vector<16x8xf32> -> vector<16x8xf32>
    %cst_68 = arith.constant 0.000000e+00 : f32
    %148 = vector.broadcast %cst_68 : f32 to vector<16x8xf32>
    %149 = arith.subf %148, %147 : vector<16x8xf32>
    %150 = math.exp %149 : vector<16x8xf32>
    %cst_69 = arith.constant 1.000000e+00 : f32
    %151 = vector.broadcast %cst_69 : f32 to vector<16x8xf32>
    %152 = arith.addf %151, %150 : vector<16x8xf32>
    %153 = tpu.reciprocal %152 {approx = true} : vector<16x8xf32> -> vector<16x8xf32>
    %154 = arith.truncf %153 : vector<16x8xf32> to vector<16x8xbf16>
    %cst_70 = arith.constant dense<0.000000e+00> : vector<16x128xf32>
    %155 = tpu.matmul %154, %3, %cst_70 {dimension_numbers = #tpu.dot_dimension_numbers<[1], [0], [0], [1], [0, 0, 1, 1], [], []>} : vector<16x8xbf16>, vector<8x128xbf16>, vector<16x128xf32> -> vector<16x128xf32>
    %156 = vector.extract_strided_slice %155 {offsets = [0, 0], sizes = [8, 128], strides = [1, 1]} : vector<16x128xf32> to vector<8x128xf32>
    %157 = arith.mulf %156, %142 : vector<8x128xf32>
    %158 = arith.addf %140, %157 : vector<8x128xf32>
    %159 = vector.extract_strided_slice %155 {offsets = [8, 0], sizes = [8, 128], strides = [1, 1]} : vector<16x128xf32> to vector<8x128xf32>
    %160 = arith.mulf %159, %142 : vector<8x128xf32>
    %161 = arith.addf %140, %160 : vector<8x128xf32>
    %162 = tpu.concatenate %158, %161 in 0 : vector<8x128xf32>, vector<8x128xf32> -> vector<16x128xf32>
    %c1_71 = arith.constant 1 : index
    %c0_72 = arith.constant 0 : index
    %c0_73 = arith.constant 0 : index
    %163 = vector.load %arg7[%c1_71, %c0_72, %c0_73] : memref<4x128x128xbf16, #tpu.memory_space<vmem>>, vector<1x128x128xbf16>
    %164 = vector.shape_cast %163 : vector<1x128x128xbf16> to vector<128x128xbf16>
    %165 = arith.truncf %162 : vector<16x128xf32> to vector<16x128xbf16>
    %cst_74 = arith.constant dense<0.000000e+00> : vector<16x128xf32>
    %166 = tpu.matmul %165, %164, %cst_74 {dimension_numbers = #tpu.dot_dimension_numbers<[1], [0], [0], [1], [0, 0, 1, 1], [], []>} : vector<16x128xbf16>, vector<128x128xbf16>, vector<16x128xf32> -> vector<16x128xf32>
    %c1_75 = arith.constant 1 : index
    %c0_76 = arith.constant 0 : index
    %c0_77 = arith.constant 0 : index
    %167 = vector.load %arg8[%c1_75, %c0_76, %c0_77] : memref<4x1x128xf32, #tpu.memory_space<vmem>>, vector<1x1x128xf32>
    %168 = vector.shape_cast %167 : vector<1x1x128xf32> to vector<1x128xf32>
    %169 = vector.broadcast %168 : vector<1x128xf32> to vector<16x128xf32>
    %170 = arith.addf %166, %169 : vector<16x128xf32>
    %171 = arith.addf %123, %170 : vector<16x128xf32>
    %c1_78 = arith.constant 1 : index
    %c0_79 = arith.constant 0 : index
    %c0_80 = arith.constant 0 : index
    %172 = vector.load %arg9[%c1_78, %c0_79, %c0_80] : memref<4x1x128xf32, #tpu.memory_space<vmem>>, vector<1x1x128xf32>
    %173 = vector.shape_cast %172 : vector<1x1x128xf32> to vector<1x128xf32>
    %c1_81 = arith.constant 1 : index
    %c0_82 = arith.constant 0 : index
    %c0_83 = arith.constant 0 : index
    %174 = vector.load %arg10[%c1_81, %c0_82, %c0_83] : memref<4x1x128xf32, #tpu.memory_space<vmem>>, vector<1x1x128xf32>
    %175 = vector.shape_cast %174 : vector<1x1x128xf32> to vector<1x128xf32>
    %cst_84 = arith.constant dense<0.000000e+00> : vector<16xf32>
    %176 = vector.multi_reduction <add>, %171, %cst_84 [1] : vector<16x128xf32> to vector<16xf32>
    %177 = vector.shape_cast %176 : vector<16xf32> to vector<16x1xf32>
    %cst_85 = arith.constant 1.280000e+02 : f32
    %178 = vector.broadcast %cst_85 : f32 to vector<16x1xf32>
    %179 = arith.divf %177, %178 : vector<16x1xf32>
    %180 = arith.mulf %171, %171 : vector<16x128xf32>
    %cst_86 = arith.constant dense<0.000000e+00> : vector<16xf32>
    %181 = vector.multi_reduction <add>, %180, %cst_86 [1] : vector<16x128xf32> to vector<16xf32>
    %182 = vector.shape_cast %181 : vector<16xf32> to vector<16x1xf32>
    %cst_87 = arith.constant 1.280000e+02 : f32
    %183 = vector.broadcast %cst_87 : f32 to vector<16x1xf32>
    %184 = arith.divf %182, %183 : vector<16x1xf32>
    %185 = arith.mulf %179, %179 : vector<16x1xf32>
    %186 = arith.subf %184, %185 : vector<16x1xf32>
    %187 = vector.broadcast %179 : vector<16x1xf32> to vector<16x128xf32>
    %188 = arith.subf %171, %187 : vector<16x128xf32>
    %cst_88 = arith.constant 9.99999974E-6 : f32
    %189 = vector.broadcast %cst_88 : f32 to vector<16x1xf32>
    %190 = arith.addf %186, %189 : vector<16x1xf32>
    %191 = math.rsqrt %190 : vector<16x1xf32>
    %192 = vector.broadcast %191 : vector<16x1xf32> to vector<16x128xf32>
    %193 = arith.mulf %188, %192 : vector<16x128xf32>
    %194 = vector.broadcast %173 : vector<1x128xf32> to vector<16x128xf32>
    %195 = arith.mulf %193, %194 : vector<16x128xf32>
    %196 = vector.broadcast %175 : vector<1x128xf32> to vector<16x128xf32>
    %197 = arith.addf %195, %196 : vector<16x128xf32>
    %c1_89 = arith.constant 1 : index
    %c0_90 = arith.constant 0 : index
    %c0_91 = arith.constant 0 : index
    %198 = vector.load %arg11[%c1_89, %c0_90, %c0_91] : memref<4x128x512xbf16, #tpu.memory_space<vmem>>, vector<1x128x512xbf16>
    %199 = vector.shape_cast %198 : vector<1x128x512xbf16> to vector<128x512xbf16>
    %200 = arith.truncf %197 : vector<16x128xf32> to vector<16x128xbf16>
    %cst_92 = arith.constant dense<0.000000e+00> : vector<16x512xf32>
    %201 = tpu.matmul %200, %199, %cst_92 {dimension_numbers = #tpu.dot_dimension_numbers<[1], [0], [0], [1], [0, 0, 1, 1], [], []>} : vector<16x128xbf16>, vector<128x512xbf16>, vector<16x512xf32> -> vector<16x512xf32>
    %c1_93 = arith.constant 1 : index
    %c0_94 = arith.constant 0 : index
    %c0_95 = arith.constant 0 : index
    %202 = vector.load %arg12[%c1_93, %c0_94, %c0_95] : memref<4x1x512xf32, #tpu.memory_space<vmem>>, vector<1x1x512xf32>
    %203 = vector.shape_cast %202 : vector<1x1x512xf32> to vector<1x512xf32>
    %204 = vector.broadcast %203 : vector<1x512xf32> to vector<16x512xf32>
    %205 = arith.addf %201, %204 : vector<16x512xf32>
    %cst_96 = arith.constant 0.000000e+00 : f32
    %206 = vector.broadcast %cst_96 : f32 to vector<16x512xf32>
    %207 = arith.maximumf %205, %206 : vector<16x512xf32>
    %c1_97 = arith.constant 1 : index
    %c0_98 = arith.constant 0 : index
    %c0_99 = arith.constant 0 : index
    %208 = vector.load %arg13[%c1_97, %c0_98, %c0_99] : memref<4x512x128xbf16, #tpu.memory_space<vmem>>, vector<1x512x128xbf16>
    %209 = vector.shape_cast %208 : vector<1x512x128xbf16> to vector<512x128xbf16>
    %210 = arith.truncf %207 : vector<16x512xf32> to vector<16x512xbf16>
    %cst_100 = arith.constant dense<0.000000e+00> : vector<16x128xf32>
    %211 = tpu.matmul %210, %209, %cst_100 {dimension_numbers = #tpu.dot_dimension_numbers<[1], [0], [0], [1], [0, 0, 1, 1], [], []>} : vector<16x512xbf16>, vector<512x128xbf16>, vector<16x128xf32> -> vector<16x128xf32>
    %c1_101 = arith.constant 1 : index
    %c0_102 = arith.constant 0 : index
    %c0_103 = arith.constant 0 : index
    %212 = vector.load %arg14[%c1_101, %c0_102, %c0_103] : memref<4x1x128xf32, #tpu.memory_space<vmem>>, vector<1x1x128xf32>
    %213 = vector.shape_cast %212 : vector<1x1x128xf32> to vector<1x128xf32>
    %214 = vector.broadcast %213 : vector<1x128xf32> to vector<16x128xf32>
    %215 = arith.addf %211, %214 : vector<16x128xf32>
    %216 = arith.addf %197, %215 : vector<16x128xf32>
    %c1_104 = arith.constant 1 : index
    %c0_105 = arith.constant 0 : index
    %c0_106 = arith.constant 0 : index
    %217 = vector.load %arg15[%c1_104, %c0_105, %c0_106] : memref<4x1x128xf32, #tpu.memory_space<vmem>>, vector<1x1x128xf32>
    %218 = vector.shape_cast %217 : vector<1x1x128xf32> to vector<1x128xf32>
    %c1_107 = arith.constant 1 : index
    %c0_108 = arith.constant 0 : index
    %c0_109 = arith.constant 0 : index
    %219 = vector.load %arg16[%c1_107, %c0_108, %c0_109] : memref<4x1x128xf32, #tpu.memory_space<vmem>>, vector<1x1x128xf32>
    %220 = vector.shape_cast %219 : vector<1x1x128xf32> to vector<1x128xf32>
    %cst_110 = arith.constant dense<0.000000e+00> : vector<16xf32>
    %221 = vector.multi_reduction <add>, %216, %cst_110 [1] : vector<16x128xf32> to vector<16xf32>
    %222 = vector.shape_cast %221 : vector<16xf32> to vector<16x1xf32>
    %cst_111 = arith.constant 1.280000e+02 : f32
    %223 = vector.broadcast %cst_111 : f32 to vector<16x1xf32>
    %224 = arith.divf %222, %223 : vector<16x1xf32>
    %225 = arith.mulf %216, %216 : vector<16x128xf32>
    %cst_112 = arith.constant dense<0.000000e+00> : vector<16xf32>
    %226 = vector.multi_reduction <add>, %225, %cst_112 [1] : vector<16x128xf32> to vector<16xf32>
    %227 = vector.shape_cast %226 : vector<16xf32> to vector<16x1xf32>
    %cst_113 = arith.constant 1.280000e+02 : f32
    %228 = vector.broadcast %cst_113 : f32 to vector<16x1xf32>
    %229 = arith.divf %227, %228 : vector<16x1xf32>
    %230 = arith.mulf %224, %224 : vector<16x1xf32>
    %231 = arith.subf %229, %230 : vector<16x1xf32>
    %232 = vector.broadcast %224 : vector<16x1xf32> to vector<16x128xf32>
    %233 = arith.subf %216, %232 : vector<16x128xf32>
    %cst_114 = arith.constant 9.99999974E-6 : f32
    %234 = vector.broadcast %cst_114 : f32 to vector<16x1xf32>
    %235 = arith.addf %231, %234 : vector<16x1xf32>
    %236 = math.rsqrt %235 : vector<16x1xf32>
    %237 = vector.broadcast %236 : vector<16x1xf32> to vector<16x128xf32>
    %238 = arith.mulf %233, %237 : vector<16x128xf32>
    %239 = vector.broadcast %218 : vector<1x128xf32> to vector<16x128xf32>
    %240 = arith.mulf %238, %239 : vector<16x128xf32>
    %241 = vector.broadcast %220 : vector<1x128xf32> to vector<16x128xf32>
    %242 = arith.addf %240, %241 : vector<16x128xf32>
    %c2 = arith.constant 2 : index
    %c0_115 = arith.constant 0 : index
    %c0_116 = arith.constant 0 : index
    %243 = vector.load %arg5[%c2, %c0_115, %c0_116] : memref<4x128x384xbf16, #tpu.memory_space<vmem>>, vector<1x128x384xbf16>
    %244 = vector.shape_cast %243 : vector<1x128x384xbf16> to vector<128x384xbf16>
    %245 = arith.truncf %242 : vector<16x128xf32> to vector<16x128xbf16>
    %cst_117 = arith.constant dense<0.000000e+00> : vector<16x384xf32>
    %246 = tpu.matmul %245, %244, %cst_117 {dimension_numbers = #tpu.dot_dimension_numbers<[1], [0], [0], [1], [0, 0, 1, 1], [], []>} : vector<16x128xbf16>, vector<128x384xbf16>, vector<16x384xf32> -> vector<16x384xf32>
    %c2_118 = arith.constant 2 : index
    %c0_119 = arith.constant 0 : index
    %c0_120 = arith.constant 0 : index
    %247 = vector.load %arg6[%c2_118, %c0_119, %c0_120] : memref<4x1x384xf32, #tpu.memory_space<vmem>>, vector<1x1x384xf32>
    %248 = vector.shape_cast %247 : vector<1x1x384xf32> to vector<1x384xf32>
    %249 = vector.broadcast %248 : vector<1x384xf32> to vector<16x384xf32>
    %250 = arith.addf %246, %249 : vector<16x384xf32>
    %251 = vector.extract_strided_slice %250 {offsets = [0, 0], sizes = [16, 128], strides = [1, 1]} : vector<16x384xf32> to vector<16x128xf32>
    %252 = vector.extract_strided_slice %250 {offsets = [0, 128], sizes = [16, 128], strides = [1, 1]} : vector<16x384xf32> to vector<16x128xf32>
    %253 = vector.extract_strided_slice %250 {offsets = [0, 256], sizes = [16, 128], strides = [1, 1]} : vector<16x384xf32> to vector<16x128xf32>
    %254 = vector.extract_strided_slice %251 {offsets = [0, 0], sizes = [8, 128], strides = [1, 1]} : vector<16x128xf32> to vector<8x128xf32>
    %255 = vector.extract_strided_slice %251 {offsets = [8, 0], sizes = [8, 128], strides = [1, 1]} : vector<16x128xf32> to vector<8x128xf32>
    %256 = vector.extract_strided_slice %252 {offsets = [0, 0], sizes = [8, 128], strides = [1, 1]} : vector<16x128xf32> to vector<8x128xf32>
    %257 = vector.extract_strided_slice %252 {offsets = [8, 0], sizes = [8, 128], strides = [1, 1]} : vector<16x128xf32> to vector<8x128xf32>
    %258 = vector.extract_strided_slice %253 {offsets = [0, 0], sizes = [8, 128], strides = [1, 1]} : vector<16x128xf32> to vector<8x128xf32>
    %259 = vector.extract_strided_slice %253 {offsets = [8, 0], sizes = [8, 128], strides = [1, 1]} : vector<16x128xf32> to vector<8x128xf32>
    %260 = arith.subf %256, %257 : vector<8x128xf32>
    %261 = arith.subf %258, %259 : vector<8x128xf32>
    %262 = arith.mulf %254, %260 : vector<8x128xf32>
    %263 = arith.mulf %255, %260 : vector<8x128xf32>
    %264 = tpu.concatenate %262, %263 in 0 : vector<8x128xf32>, vector<8x128xf32> -> vector<16x128xf32>
    %265 = arith.truncf %264 : vector<16x128xf32> to vector<16x128xbf16>
    %cst_121 = arith.constant dense<0.000000e+00> : vector<16x8xf32>
    %266 = tpu.matmul %265, %2, %cst_121 {dimension_numbers = #tpu.dot_dimension_numbers<[1], [0], [0], [1], [0, 0, 1, 1], [], []>} : vector<16x128xbf16>, vector<128x8xbf16>, vector<16x8xf32> -> vector<16x8xf32>
    %cst_122 = arith.constant 0.000000e+00 : f32
    %267 = vector.broadcast %cst_122 : f32 to vector<16x8xf32>
    %268 = arith.subf %267, %266 : vector<16x8xf32>
    %269 = math.exp %268 : vector<16x8xf32>
    %cst_123 = arith.constant 1.000000e+00 : f32
    %270 = vector.broadcast %cst_123 : f32 to vector<16x8xf32>
    %271 = arith.addf %270, %269 : vector<16x8xf32>
    %272 = tpu.reciprocal %271 {approx = true} : vector<16x8xf32> -> vector<16x8xf32>
    %273 = arith.truncf %272 : vector<16x8xf32> to vector<16x8xbf16>
    %cst_124 = arith.constant dense<0.000000e+00> : vector<16x128xf32>
    %274 = tpu.matmul %273, %3, %cst_124 {dimension_numbers = #tpu.dot_dimension_numbers<[1], [0], [0], [1], [0, 0, 1, 1], [], []>} : vector<16x8xbf16>, vector<8x128xbf16>, vector<16x128xf32> -> vector<16x128xf32>
    %275 = vector.extract_strided_slice %274 {offsets = [0, 0], sizes = [8, 128], strides = [1, 1]} : vector<16x128xf32> to vector<8x128xf32>
    %276 = arith.mulf %275, %261 : vector<8x128xf32>
    %277 = arith.addf %259, %276 : vector<8x128xf32>
    %278 = vector.extract_strided_slice %274 {offsets = [8, 0], sizes = [8, 128], strides = [1, 1]} : vector<16x128xf32> to vector<8x128xf32>
    %279 = arith.mulf %278, %261 : vector<8x128xf32>
    %280 = arith.addf %259, %279 : vector<8x128xf32>
    %281 = tpu.concatenate %277, %280 in 0 : vector<8x128xf32>, vector<8x128xf32> -> vector<16x128xf32>
    %c2_125 = arith.constant 2 : index
    %c0_126 = arith.constant 0 : index
    %c0_127 = arith.constant 0 : index
    %282 = vector.load %arg7[%c2_125, %c0_126, %c0_127] : memref<4x128x128xbf16, #tpu.memory_space<vmem>>, vector<1x128x128xbf16>
    %283 = vector.shape_cast %282 : vector<1x128x128xbf16> to vector<128x128xbf16>
    %284 = arith.truncf %281 : vector<16x128xf32> to vector<16x128xbf16>
    %cst_128 = arith.constant dense<0.000000e+00> : vector<16x128xf32>
    %285 = tpu.matmul %284, %283, %cst_128 {dimension_numbers = #tpu.dot_dimension_numbers<[1], [0], [0], [1], [0, 0, 1, 1], [], []>} : vector<16x128xbf16>, vector<128x128xbf16>, vector<16x128xf32> -> vector<16x128xf32>
    %c2_129 = arith.constant 2 : index
    %c0_130 = arith.constant 0 : index
    %c0_131 = arith.constant 0 : index
    %286 = vector.load %arg8[%c2_129, %c0_130, %c0_131] : memref<4x1x128xf32, #tpu.memory_space<vmem>>, vector<1x1x128xf32>
    %287 = vector.shape_cast %286 : vector<1x1x128xf32> to vector<1x128xf32>
    %288 = vector.broadcast %287 : vector<1x128xf32> to vector<16x128xf32>
    %289 = arith.addf %285, %288 : vector<16x128xf32>
    %290 = arith.addf %242, %289 : vector<16x128xf32>
    %c2_132 = arith.constant 2 : index
    %c0_133 = arith.constant 0 : index
    %c0_134 = arith.constant 0 : index
    %291 = vector.load %arg9[%c2_132, %c0_133, %c0_134] : memref<4x1x128xf32, #tpu.memory_space<vmem>>, vector<1x1x128xf32>
    %292 = vector.shape_cast %291 : vector<1x1x128xf32> to vector<1x128xf32>
    %c2_135 = arith.constant 2 : index
    %c0_136 = arith.constant 0 : index
    %c0_137 = arith.constant 0 : index
    %293 = vector.load %arg10[%c2_135, %c0_136, %c0_137] : memref<4x1x128xf32, #tpu.memory_space<vmem>>, vector<1x1x128xf32>
    %294 = vector.shape_cast %293 : vector<1x1x128xf32> to vector<1x128xf32>
    %cst_138 = arith.constant dense<0.000000e+00> : vector<16xf32>
    %295 = vector.multi_reduction <add>, %290, %cst_138 [1] : vector<16x128xf32> to vector<16xf32>
    %296 = vector.shape_cast %295 : vector<16xf32> to vector<16x1xf32>
    %cst_139 = arith.constant 1.280000e+02 : f32
    %297 = vector.broadcast %cst_139 : f32 to vector<16x1xf32>
    %298 = arith.divf %296, %297 : vector<16x1xf32>
    %299 = arith.mulf %290, %290 : vector<16x128xf32>
    %cst_140 = arith.constant dense<0.000000e+00> : vector<16xf32>
    %300 = vector.multi_reduction <add>, %299, %cst_140 [1] : vector<16x128xf32> to vector<16xf32>
    %301 = vector.shape_cast %300 : vector<16xf32> to vector<16x1xf32>
    %cst_141 = arith.constant 1.280000e+02 : f32
    %302 = vector.broadcast %cst_141 : f32 to vector<16x1xf32>
    %303 = arith.divf %301, %302 : vector<16x1xf32>
    %304 = arith.mulf %298, %298 : vector<16x1xf32>
    %305 = arith.subf %303, %304 : vector<16x1xf32>
    %306 = vector.broadcast %298 : vector<16x1xf32> to vector<16x128xf32>
    %307 = arith.subf %290, %306 : vector<16x128xf32>
    %cst_142 = arith.constant 9.99999974E-6 : f32
    %308 = vector.broadcast %cst_142 : f32 to vector<16x1xf32>
    %309 = arith.addf %305, %308 : vector<16x1xf32>
    %310 = math.rsqrt %309 : vector<16x1xf32>
    %311 = vector.broadcast %310 : vector<16x1xf32> to vector<16x128xf32>
    %312 = arith.mulf %307, %311 : vector<16x128xf32>
    %313 = vector.broadcast %292 : vector<1x128xf32> to vector<16x128xf32>
    %314 = arith.mulf %312, %313 : vector<16x128xf32>
    %315 = vector.broadcast %294 : vector<1x128xf32> to vector<16x128xf32>
    %316 = arith.addf %314, %315 : vector<16x128xf32>
    %c2_143 = arith.constant 2 : index
    %c0_144 = arith.constant 0 : index
    %c0_145 = arith.constant 0 : index
    %317 = vector.load %arg11[%c2_143, %c0_144, %c0_145] : memref<4x128x512xbf16, #tpu.memory_space<vmem>>, vector<1x128x512xbf16>
    %318 = vector.shape_cast %317 : vector<1x128x512xbf16> to vector<128x512xbf16>
    %319 = arith.truncf %316 : vector<16x128xf32> to vector<16x128xbf16>
    %cst_146 = arith.constant dense<0.000000e+00> : vector<16x512xf32>
    %320 = tpu.matmul %319, %318, %cst_146 {dimension_numbers = #tpu.dot_dimension_numbers<[1], [0], [0], [1], [0, 0, 1, 1], [], []>} : vector<16x128xbf16>, vector<128x512xbf16>, vector<16x512xf32> -> vector<16x512xf32>
    %c2_147 = arith.constant 2 : index
    %c0_148 = arith.constant 0 : index
    %c0_149 = arith.constant 0 : index
    %321 = vector.load %arg12[%c2_147, %c0_148, %c0_149] : memref<4x1x512xf32, #tpu.memory_space<vmem>>, vector<1x1x512xf32>
    %322 = vector.shape_cast %321 : vector<1x1x512xf32> to vector<1x512xf32>
    %323 = vector.broadcast %322 : vector<1x512xf32> to vector<16x512xf32>
    %324 = arith.addf %320, %323 : vector<16x512xf32>
    %cst_150 = arith.constant 0.000000e+00 : f32
    %325 = vector.broadcast %cst_150 : f32 to vector<16x512xf32>
    %326 = arith.maximumf %324, %325 : vector<16x512xf32>
    %c2_151 = arith.constant 2 : index
    %c0_152 = arith.constant 0 : index
    %c0_153 = arith.constant 0 : index
    %327 = vector.load %arg13[%c2_151, %c0_152, %c0_153] : memref<4x512x128xbf16, #tpu.memory_space<vmem>>, vector<1x512x128xbf16>
    %328 = vector.shape_cast %327 : vector<1x512x128xbf16> to vector<512x128xbf16>
    %329 = arith.truncf %326 : vector<16x512xf32> to vector<16x512xbf16>
    %cst_154 = arith.constant dense<0.000000e+00> : vector<16x128xf32>
    %330 = tpu.matmul %329, %328, %cst_154 {dimension_numbers = #tpu.dot_dimension_numbers<[1], [0], [0], [1], [0, 0, 1, 1], [], []>} : vector<16x512xbf16>, vector<512x128xbf16>, vector<16x128xf32> -> vector<16x128xf32>
    %c2_155 = arith.constant 2 : index
    %c0_156 = arith.constant 0 : index
    %c0_157 = arith.constant 0 : index
    %331 = vector.load %arg14[%c2_155, %c0_156, %c0_157] : memref<4x1x128xf32, #tpu.memory_space<vmem>>, vector<1x1x128xf32>
    %332 = vector.shape_cast %331 : vector<1x1x128xf32> to vector<1x128xf32>
    %333 = vector.broadcast %332 : vector<1x128xf32> to vector<16x128xf32>
    %334 = arith.addf %330, %333 : vector<16x128xf32>
    %335 = arith.addf %316, %334 : vector<16x128xf32>
    %c2_158 = arith.constant 2 : index
    %c0_159 = arith.constant 0 : index
    %c0_160 = arith.constant 0 : index
    %336 = vector.load %arg15[%c2_158, %c0_159, %c0_160] : memref<4x1x128xf32, #tpu.memory_space<vmem>>, vector<1x1x128xf32>
    %337 = vector.shape_cast %336 : vector<1x1x128xf32> to vector<1x128xf32>
    %c2_161 = arith.constant 2 : index
    %c0_162 = arith.constant 0 : index
    %c0_163 = arith.constant 0 : index
    %338 = vector.load %arg16[%c2_161, %c0_162, %c0_163] : memref<4x1x128xf32, #tpu.memory_space<vmem>>, vector<1x1x128xf32>
    %339 = vector.shape_cast %338 : vector<1x1x128xf32> to vector<1x128xf32>
    %cst_164 = arith.constant dense<0.000000e+00> : vector<16xf32>
    %340 = vector.multi_reduction <add>, %335, %cst_164 [1] : vector<16x128xf32> to vector<16xf32>
    %341 = vector.shape_cast %340 : vector<16xf32> to vector<16x1xf32>
    %cst_165 = arith.constant 1.280000e+02 : f32
    %342 = vector.broadcast %cst_165 : f32 to vector<16x1xf32>
    %343 = arith.divf %341, %342 : vector<16x1xf32>
    %344 = arith.mulf %335, %335 : vector<16x128xf32>
    %cst_166 = arith.constant dense<0.000000e+00> : vector<16xf32>
    %345 = vector.multi_reduction <add>, %344, %cst_166 [1] : vector<16x128xf32> to vector<16xf32>
    %346 = vector.shape_cast %345 : vector<16xf32> to vector<16x1xf32>
    %cst_167 = arith.constant 1.280000e+02 : f32
    %347 = vector.broadcast %cst_167 : f32 to vector<16x1xf32>
    %348 = arith.divf %346, %347 : vector<16x1xf32>
    %349 = arith.mulf %343, %343 : vector<16x1xf32>
    %350 = arith.subf %348, %349 : vector<16x1xf32>
    %351 = vector.broadcast %343 : vector<16x1xf32> to vector<16x128xf32>
    %352 = arith.subf %335, %351 : vector<16x128xf32>
    %cst_168 = arith.constant 9.99999974E-6 : f32
    %353 = vector.broadcast %cst_168 : f32 to vector<16x1xf32>
    %354 = arith.addf %350, %353 : vector<16x1xf32>
    %355 = math.rsqrt %354 : vector<16x1xf32>
    %356 = vector.broadcast %355 : vector<16x1xf32> to vector<16x128xf32>
    %357 = arith.mulf %352, %356 : vector<16x128xf32>
    %358 = vector.broadcast %337 : vector<1x128xf32> to vector<16x128xf32>
    %359 = arith.mulf %357, %358 : vector<16x128xf32>
    %360 = vector.broadcast %339 : vector<1x128xf32> to vector<16x128xf32>
    %361 = arith.addf %359, %360 : vector<16x128xf32>
    %c3 = arith.constant 3 : index
    %c0_169 = arith.constant 0 : index
    %c0_170 = arith.constant 0 : index
    %362 = vector.load %arg5[%c3, %c0_169, %c0_170] : memref<4x128x384xbf16, #tpu.memory_space<vmem>>, vector<1x128x384xbf16>
    %363 = vector.shape_cast %362 : vector<1x128x384xbf16> to vector<128x384xbf16>
    %364 = arith.truncf %361 : vector<16x128xf32> to vector<16x128xbf16>
    %cst_171 = arith.constant dense<0.000000e+00> : vector<16x384xf32>
    %365 = tpu.matmul %364, %363, %cst_171 {dimension_numbers = #tpu.dot_dimension_numbers<[1], [0], [0], [1], [0, 0, 1, 1], [], []>} : vector<16x128xbf16>, vector<128x384xbf16>, vector<16x384xf32> -> vector<16x384xf32>
    %c3_172 = arith.constant 3 : index
    %c0_173 = arith.constant 0 : index
    %c0_174 = arith.constant 0 : index
    %366 = vector.load %arg6[%c3_172, %c0_173, %c0_174] : memref<4x1x384xf32, #tpu.memory_space<vmem>>, vector<1x1x384xf32>
    %367 = vector.shape_cast %366 : vector<1x1x384xf32> to vector<1x384xf32>
    %368 = vector.broadcast %367 : vector<1x384xf32> to vector<16x384xf32>
    %369 = arith.addf %365, %368 : vector<16x384xf32>
    %370 = vector.extract_strided_slice %369 {offsets = [0, 0], sizes = [16, 128], strides = [1, 1]} : vector<16x384xf32> to vector<16x128xf32>
    %371 = vector.extract_strided_slice %369 {offsets = [0, 128], sizes = [16, 128], strides = [1, 1]} : vector<16x384xf32> to vector<16x128xf32>
    %372 = vector.extract_strided_slice %369 {offsets = [0, 256], sizes = [16, 128], strides = [1, 1]} : vector<16x384xf32> to vector<16x128xf32>
    %373 = vector.extract_strided_slice %370 {offsets = [0, 0], sizes = [8, 128], strides = [1, 1]} : vector<16x128xf32> to vector<8x128xf32>
    %374 = vector.extract_strided_slice %370 {offsets = [8, 0], sizes = [8, 128], strides = [1, 1]} : vector<16x128xf32> to vector<8x128xf32>
    %375 = vector.extract_strided_slice %371 {offsets = [0, 0], sizes = [8, 128], strides = [1, 1]} : vector<16x128xf32> to vector<8x128xf32>
    %376 = vector.extract_strided_slice %371 {offsets = [8, 0], sizes = [8, 128], strides = [1, 1]} : vector<16x128xf32> to vector<8x128xf32>
    %377 = vector.extract_strided_slice %372 {offsets = [0, 0], sizes = [8, 128], strides = [1, 1]} : vector<16x128xf32> to vector<8x128xf32>
    %378 = vector.extract_strided_slice %372 {offsets = [8, 0], sizes = [8, 128], strides = [1, 1]} : vector<16x128xf32> to vector<8x128xf32>
    %379 = arith.subf %375, %376 : vector<8x128xf32>
    %380 = arith.subf %377, %378 : vector<8x128xf32>
    %381 = arith.mulf %373, %379 : vector<8x128xf32>
    %382 = arith.mulf %374, %379 : vector<8x128xf32>
    %383 = tpu.concatenate %381, %382 in 0 : vector<8x128xf32>, vector<8x128xf32> -> vector<16x128xf32>
    %384 = arith.truncf %383 : vector<16x128xf32> to vector<16x128xbf16>
    %cst_175 = arith.constant dense<0.000000e+00> : vector<16x8xf32>
    %385 = tpu.matmul %384, %2, %cst_175 {dimension_numbers = #tpu.dot_dimension_numbers<[1], [0], [0], [1], [0, 0, 1, 1], [], []>} : vector<16x128xbf16>, vector<128x8xbf16>, vector<16x8xf32> -> vector<16x8xf32>
    %cst_176 = arith.constant 0.000000e+00 : f32
    %386 = vector.broadcast %cst_176 : f32 to vector<16x8xf32>
    %387 = arith.subf %386, %385 : vector<16x8xf32>
    %388 = math.exp %387 : vector<16x8xf32>
    %cst_177 = arith.constant 1.000000e+00 : f32
    %389 = vector.broadcast %cst_177 : f32 to vector<16x8xf32>
    %390 = arith.addf %389, %388 : vector<16x8xf32>
    %391 = tpu.reciprocal %390 {approx = true} : vector<16x8xf32> -> vector<16x8xf32>
    %392 = arith.truncf %391 : vector<16x8xf32> to vector<16x8xbf16>
    %cst_178 = arith.constant dense<0.000000e+00> : vector<16x128xf32>
    %393 = tpu.matmul %392, %3, %cst_178 {dimension_numbers = #tpu.dot_dimension_numbers<[1], [0], [0], [1], [0, 0, 1, 1], [], []>} : vector<16x8xbf16>, vector<8x128xbf16>, vector<16x128xf32> -> vector<16x128xf32>
    %394 = vector.extract_strided_slice %393 {offsets = [0, 0], sizes = [8, 128], strides = [1, 1]} : vector<16x128xf32> to vector<8x128xf32>
    %395 = arith.mulf %394, %380 : vector<8x128xf32>
    %396 = arith.addf %378, %395 : vector<8x128xf32>
    %397 = vector.extract_strided_slice %393 {offsets = [8, 0], sizes = [8, 128], strides = [1, 1]} : vector<16x128xf32> to vector<8x128xf32>
    %398 = arith.mulf %397, %380 : vector<8x128xf32>
    %399 = arith.addf %378, %398 : vector<8x128xf32>
    %400 = tpu.concatenate %396, %399 in 0 : vector<8x128xf32>, vector<8x128xf32> -> vector<16x128xf32>
    %c3_179 = arith.constant 3 : index
    %c0_180 = arith.constant 0 : index
    %c0_181 = arith.constant 0 : index
    %401 = vector.load %arg7[%c3_179, %c0_180, %c0_181] : memref<4x128x128xbf16, #tpu.memory_space<vmem>>, vector<1x128x128xbf16>
    %402 = vector.shape_cast %401 : vector<1x128x128xbf16> to vector<128x128xbf16>
    %403 = arith.truncf %400 : vector<16x128xf32> to vector<16x128xbf16>
    %cst_182 = arith.constant dense<0.000000e+00> : vector<16x128xf32>
    %404 = tpu.matmul %403, %402, %cst_182 {dimension_numbers = #tpu.dot_dimension_numbers<[1], [0], [0], [1], [0, 0, 1, 1], [], []>} : vector<16x128xbf16>, vector<128x128xbf16>, vector<16x128xf32> -> vector<16x128xf32>
    %c3_183 = arith.constant 3 : index
    %c0_184 = arith.constant 0 : index
    %c0_185 = arith.constant 0 : index
    %405 = vector.load %arg8[%c3_183, %c0_184, %c0_185] : memref<4x1x128xf32, #tpu.memory_space<vmem>>, vector<1x1x128xf32>
    %406 = vector.shape_cast %405 : vector<1x1x128xf32> to vector<1x128xf32>
    %407 = vector.broadcast %406 : vector<1x128xf32> to vector<16x128xf32>
    %408 = arith.addf %404, %407 : vector<16x128xf32>
    %409 = arith.addf %361, %408 : vector<16x128xf32>
    %c3_186 = arith.constant 3 : index
    %c0_187 = arith.constant 0 : index
    %c0_188 = arith.constant 0 : index
    %410 = vector.load %arg9[%c3_186, %c0_187, %c0_188] : memref<4x1x128xf32, #tpu.memory_space<vmem>>, vector<1x1x128xf32>
    %411 = vector.shape_cast %410 : vector<1x1x128xf32> to vector<1x128xf32>
    %c3_189 = arith.constant 3 : index
    %c0_190 = arith.constant 0 : index
    %c0_191 = arith.constant 0 : index
    %412 = vector.load %arg10[%c3_189, %c0_190, %c0_191] : memref<4x1x128xf32, #tpu.memory_space<vmem>>, vector<1x1x128xf32>
    %413 = vector.shape_cast %412 : vector<1x1x128xf32> to vector<1x128xf32>
    %cst_192 = arith.constant dense<0.000000e+00> : vector<16xf32>
    %414 = vector.multi_reduction <add>, %409, %cst_192 [1] : vector<16x128xf32> to vector<16xf32>
    %415 = vector.shape_cast %414 : vector<16xf32> to vector<16x1xf32>
    %cst_193 = arith.constant 1.280000e+02 : f32
    %416 = vector.broadcast %cst_193 : f32 to vector<16x1xf32>
    %417 = arith.divf %415, %416 : vector<16x1xf32>
    %418 = arith.mulf %409, %409 : vector<16x128xf32>
    %cst_194 = arith.constant dense<0.000000e+00> : vector<16xf32>
    %419 = vector.multi_reduction <add>, %418, %cst_194 [1] : vector<16x128xf32> to vector<16xf32>
    %420 = vector.shape_cast %419 : vector<16xf32> to vector<16x1xf32>
    %cst_195 = arith.constant 1.280000e+02 : f32
    %421 = vector.broadcast %cst_195 : f32 to vector<16x1xf32>
    %422 = arith.divf %420, %421 : vector<16x1xf32>
    %423 = arith.mulf %417, %417 : vector<16x1xf32>
    %424 = arith.subf %422, %423 : vector<16x1xf32>
    %425 = vector.broadcast %417 : vector<16x1xf32> to vector<16x128xf32>
    %426 = arith.subf %409, %425 : vector<16x128xf32>
    %cst_196 = arith.constant 9.99999974E-6 : f32
    %427 = vector.broadcast %cst_196 : f32 to vector<16x1xf32>
    %428 = arith.addf %424, %427 : vector<16x1xf32>
    %429 = math.rsqrt %428 : vector<16x1xf32>
    %430 = vector.broadcast %429 : vector<16x1xf32> to vector<16x128xf32>
    %431 = arith.mulf %426, %430 : vector<16x128xf32>
    %432 = vector.broadcast %411 : vector<1x128xf32> to vector<16x128xf32>
    %433 = arith.mulf %431, %432 : vector<16x128xf32>
    %434 = vector.broadcast %413 : vector<1x128xf32> to vector<16x128xf32>
    %435 = arith.addf %433, %434 : vector<16x128xf32>
    %c3_197 = arith.constant 3 : index
    %c0_198 = arith.constant 0 : index
    %c0_199 = arith.constant 0 : index
    %436 = vector.load %arg11[%c3_197, %c0_198, %c0_199] : memref<4x128x512xbf16, #tpu.memory_space<vmem>>, vector<1x128x512xbf16>
    %437 = vector.shape_cast %436 : vector<1x128x512xbf16> to vector<128x512xbf16>
    %438 = arith.truncf %435 : vector<16x128xf32> to vector<16x128xbf16>
    %cst_200 = arith.constant dense<0.000000e+00> : vector<16x512xf32>
    %439 = tpu.matmul %438, %437, %cst_200 {dimension_numbers = #tpu.dot_dimension_numbers<[1], [0], [0], [1], [0, 0, 1, 1], [], []>} : vector<16x128xbf16>, vector<128x512xbf16>, vector<16x512xf32> -> vector<16x512xf32>
    %c3_201 = arith.constant 3 : index
    %c0_202 = arith.constant 0 : index
    %c0_203 = arith.constant 0 : index
    %440 = vector.load %arg12[%c3_201, %c0_202, %c0_203] : memref<4x1x512xf32, #tpu.memory_space<vmem>>, vector<1x1x512xf32>
    %441 = vector.shape_cast %440 : vector<1x1x512xf32> to vector<1x512xf32>
    %442 = vector.broadcast %441 : vector<1x512xf32> to vector<16x512xf32>
    %443 = arith.addf %439, %442 : vector<16x512xf32>
    %cst_204 = arith.constant 0.000000e+00 : f32
    %444 = vector.broadcast %cst_204 : f32 to vector<16x512xf32>
    %445 = arith.maximumf %443, %444 : vector<16x512xf32>
    %c3_205 = arith.constant 3 : index
    %c0_206 = arith.constant 0 : index
    %c0_207 = arith.constant 0 : index
    %446 = vector.load %arg13[%c3_205, %c0_206, %c0_207] : memref<4x512x128xbf16, #tpu.memory_space<vmem>>, vector<1x512x128xbf16>
    %447 = vector.shape_cast %446 : vector<1x512x128xbf16> to vector<512x128xbf16>
    %448 = arith.truncf %445 : vector<16x512xf32> to vector<16x512xbf16>
    %cst_208 = arith.constant dense<0.000000e+00> : vector<16x128xf32>
    %449 = tpu.matmul %448, %447, %cst_208 {dimension_numbers = #tpu.dot_dimension_numbers<[1], [0], [0], [1], [0, 0, 1, 1], [], []>} : vector<16x512xbf16>, vector<512x128xbf16>, vector<16x128xf32> -> vector<16x128xf32>
    %c3_209 = arith.constant 3 : index
    %c0_210 = arith.constant 0 : index
    %c0_211 = arith.constant 0 : index
    %450 = vector.load %arg14[%c3_209, %c0_210, %c0_211] : memref<4x1x128xf32, #tpu.memory_space<vmem>>, vector<1x1x128xf32>
    %451 = vector.shape_cast %450 : vector<1x1x128xf32> to vector<1x128xf32>
    %452 = vector.broadcast %451 : vector<1x128xf32> to vector<16x128xf32>
    %453 = arith.addf %449, %452 : vector<16x128xf32>
    %454 = arith.addf %435, %453 : vector<16x128xf32>
    %c3_212 = arith.constant 3 : index
    %c0_213 = arith.constant 0 : index
    %c0_214 = arith.constant 0 : index
    %455 = vector.load %arg15[%c3_212, %c0_213, %c0_214] : memref<4x1x128xf32, #tpu.memory_space<vmem>>, vector<1x1x128xf32>
    %456 = vector.shape_cast %455 : vector<1x1x128xf32> to vector<1x128xf32>
    %c3_215 = arith.constant 3 : index
    %c0_216 = arith.constant 0 : index
    %c0_217 = arith.constant 0 : index
    %457 = vector.load %arg16[%c3_215, %c0_216, %c0_217] : memref<4x1x128xf32, #tpu.memory_space<vmem>>, vector<1x1x128xf32>
    %458 = vector.shape_cast %457 : vector<1x1x128xf32> to vector<1x128xf32>
    %cst_218 = arith.constant dense<0.000000e+00> : vector<16xf32>
    %459 = vector.multi_reduction <add>, %454, %cst_218 [1] : vector<16x128xf32> to vector<16xf32>
    %460 = vector.shape_cast %459 : vector<16xf32> to vector<16x1xf32>
    %cst_219 = arith.constant 1.280000e+02 : f32
    %461 = vector.broadcast %cst_219 : f32 to vector<16x1xf32>
    %462 = arith.divf %460, %461 : vector<16x1xf32>
    %463 = arith.mulf %454, %454 : vector<16x128xf32>
    %cst_220 = arith.constant dense<0.000000e+00> : vector<16xf32>
    %464 = vector.multi_reduction <add>, %463, %cst_220 [1] : vector<16x128xf32> to vector<16xf32>
    %465 = vector.shape_cast %464 : vector<16xf32> to vector<16x1xf32>
    %cst_221 = arith.constant 1.280000e+02 : f32
    %466 = vector.broadcast %cst_221 : f32 to vector<16x1xf32>
    %467 = arith.divf %465, %466 : vector<16x1xf32>
    %468 = arith.mulf %462, %462 : vector<16x1xf32>
    %469 = arith.subf %467, %468 : vector<16x1xf32>
    %470 = vector.broadcast %462 : vector<16x1xf32> to vector<16x128xf32>
    %471 = arith.subf %454, %470 : vector<16x128xf32>
    %cst_222 = arith.constant 9.99999974E-6 : f32
    %472 = vector.broadcast %cst_222 : f32 to vector<16x1xf32>
    %473 = arith.addf %469, %472 : vector<16x1xf32>
    %474 = math.rsqrt %473 : vector<16x1xf32>
    %475 = vector.broadcast %474 : vector<16x1xf32> to vector<16x128xf32>
    %476 = arith.mulf %471, %475 : vector<16x128xf32>
    %477 = vector.broadcast %456 : vector<1x128xf32> to vector<16x128xf32>
    %478 = arith.mulf %476, %477 : vector<16x128xf32>
    %479 = vector.broadcast %458 : vector<1x128xf32> to vector<16x128xf32>
    %480 = arith.addf %478, %479 : vector<16x128xf32>
    %481 = vector.extract_strided_slice %480 {offsets = [0, 0], sizes = [8, 128], strides = [1, 1]} : vector<16x128xf32> to vector<8x128xf32>
    %482 = vector.extract_strided_slice %480 {offsets = [8, 0], sizes = [8, 128], strides = [1, 1]} : vector<16x128xf32> to vector<8x128xf32>
    %483 = arith.addf %481, %482 : vector<8x128xf32>
    %cst_223 = arith.constant 5.000000e-01 : f32
    %484 = vector.broadcast %cst_223 : f32 to vector<8x128xf32>
    %485 = arith.mulf %483, %484 : vector<8x128xf32>
    %c0_224 = arith.constant 0 : index
    %c0_225 = arith.constant 0 : index
    %486 = vector.load %arg17[%c0_224, %c0_225] : memref<1x128xf32, #tpu.memory_space<vmem>>, vector<1x128xf32>
    %c0_226 = arith.constant 0 : index
    %c0_227 = arith.constant 0 : index
    %487 = vector.load %arg18[%c0_226, %c0_227] : memref<1x128xf32, #tpu.memory_space<vmem>>, vector<1x128xf32>
    %cst_228 = arith.constant dense<0.000000e+00> : vector<8xf32>
    %488 = vector.multi_reduction <add>, %485, %cst_228 [1] : vector<8x128xf32> to vector<8xf32>
    %489 = vector.shape_cast %488 : vector<8xf32> to vector<8x1xf32>
    %cst_229 = arith.constant 1.280000e+02 : f32
    %490 = vector.broadcast %cst_229 : f32 to vector<8x1xf32>
    %491 = arith.divf %489, %490 : vector<8x1xf32>
    %492 = arith.mulf %485, %485 : vector<8x128xf32>
    %cst_230 = arith.constant dense<0.000000e+00> : vector<8xf32>
    %493 = vector.multi_reduction <add>, %492, %cst_230 [1] : vector<8x128xf32> to vector<8xf32>
    %494 = vector.shape_cast %493 : vector<8xf32> to vector<8x1xf32>
    %cst_231 = arith.constant 1.280000e+02 : f32
    %495 = vector.broadcast %cst_231 : f32 to vector<8x1xf32>
    %496 = arith.divf %494, %495 : vector<8x1xf32>
    %497 = arith.mulf %491, %491 : vector<8x1xf32>
    %498 = arith.subf %496, %497 : vector<8x1xf32>
    %499 = vector.broadcast %491 : vector<8x1xf32> to vector<8x128xf32>
    %500 = arith.subf %485, %499 : vector<8x128xf32>
    %cst_232 = arith.constant 9.99999974E-6 : f32
    %501 = vector.broadcast %cst_232 : f32 to vector<8x1xf32>
    %502 = arith.addf %498, %501 : vector<8x1xf32>
    %503 = math.rsqrt %502 : vector<8x1xf32>
    %504 = vector.broadcast %503 : vector<8x1xf32> to vector<8x128xf32>
    %505 = arith.mulf %500, %504 : vector<8x128xf32>
    %506 = vector.broadcast %486 : vector<1x128xf32> to vector<8x128xf32>
    %507 = arith.mulf %505, %506 : vector<8x128xf32>
    %508 = vector.broadcast %487 : vector<1x128xf32> to vector<8x128xf32>
    %509 = arith.addf %507, %508 : vector<8x128xf32>
    %c0_233 = arith.constant 0 : index
    %c0_234 = arith.constant 0 : index
    %510 = vector.load %arg19[%c0_233, %c0_234] : memref<8x128xf32, #tpu.memory_space<vmem>>, vector<8x128xf32>
    tpu.vector_store %arg19[%c0_233, %c0_234], %509 {strides = array<i32>} : memref<8x128xf32, #tpu.memory_space<vmem>>, vector<8x128xf32>,
    return
  }
  func.func @transform_0(%arg0: i32) -> (i32, i32) {
    %c0_i32 = arith.constant 0 : i32
    %c0_i32_0 = arith.constant 0 : i32
    return %arg0, %c0_i32 : i32, i32
  }
  func.func @transform_1(%arg0: i32) -> (i32, i32) {
    %c0_i32 = arith.constant 0 : i32
    %c0_i32_0 = arith.constant 0 : i32
    return %arg0, %c0_i32 : i32, i32
  }
  func.func @transform_2(%arg0: i32) -> (i32, i32) {
    %c0_i32 = arith.constant 0 : i32
    %c0_i32_0 = arith.constant 0 : i32
    %c0_i32_1 = arith.constant 0 : i32
    return %c0_i32, %c0_i32_0 : i32, i32
  }
  func.func @transform_3(%arg0: i32) -> (i32, i32) {
    %c0_i32 = arith.constant 0 : i32
    %c0_i32_0 = arith.constant 0 : i32
    %c0_i32_1 = arith.constant 0 : i32
    return %c0_i32, %c0_i32_0 : i32, i32
  }
  func.func @transform_4(%arg0: i32) -> (i32, i32, i32) {
    %c0_i32 = arith.constant 0 : i32
    %c0_i32_0 = arith.constant 0 : i32
    %c0_i32_1 = arith.constant 0 : i32
    %c0_i32_2 = arith.constant 0 : i32
    return %c0_i32, %c0_i32_0, %c0_i32_1 : i32, i32, i32
  }
  func.func @transform_5(%arg0: i32) -> (i32, i32, i32) {
    %c0_i32 = arith.constant 0 : i32
    %c0_i32_0 = arith.constant 0 : i32
    %c0_i32_1 = arith.constant 0 : i32
    %c0_i32_2 = arith.constant 0 : i32
    return %c0_i32, %c0_i32_0, %c0_i32_1 : i32, i32, i32
  }
  func.func @transform_6(%arg0: i32) -> (i32, i32, i32) {
    %c0_i32 = arith.constant 0 : i32
    %c0_i32_0 = arith.constant 0 : i32
    %c0_i32_1 = arith.constant 0 : i32
    %c0_i32_2 = arith.constant 0 : i32
    return %c0_i32, %c0_i32_0, %c0_i32_1 : i32, i32, i32
  }
  func.func @transform_7(%arg0: i32) -> (i32, i32, i32) {
    %c0_i32 = arith.constant 0 : i32
    %c0_i32_0 = arith.constant 0 : i32
    %c0_i32_1 = arith.constant 0 : i32
    %c0_i32_2 = arith.constant 0 : i32
    return %c0_i32, %c0_i32_0, %c0_i32_1 : i32, i32, i32
  }
  func.func @transform_8(%arg0: i32) -> (i32, i32, i32) {
    %c0_i32 = arith.constant 0 : i32
    %c0_i32_0 = arith.constant 0 : i32
    %c0_i32_1 = arith.constant 0 : i32
    %c0_i32_2 = arith.constant 0 : i32
    return %c0_i32, %c0_i32_0, %c0_i32_1 : i32, i32, i32
  }
  func.func @transform_9(%arg0: i32) -> (i32, i32, i32) {
    %c0_i32 = arith.constant 0 : i32
    %c0_i32_0 = arith.constant 0 : i32
    %c0_i32_1 = arith.constant 0 : i32
    %c0_i32_2 = arith.constant 0 : i32
    return %c0_i32, %c0_i32_0, %c0_i32_1 : i32, i32, i32
  }
  func.func @transform_10(%arg0: i32) -> (i32, i32, i32) {
    %c0_i32 = arith.constant 0 : i32
    %c0_i32_0 = arith.constant 0 : i32
    %c0_i32_1 = arith.constant 0 : i32
    %c0_i32_2 = arith.constant 0 : i32
    return %c0_i32, %c0_i32_0, %c0_i32_1 : i32, i32, i32
  }
  func.func @transform_11(%arg0: i32) -> (i32, i32, i32) {
    %c0_i32 = arith.constant 0 : i32
    %c0_i32_0 = arith.constant 0 : i32
    %c0_i32_1 = arith.constant 0 : i32
    %c0_i32_2 = arith.constant 0 : i32
    return %c0_i32, %c0_i32_0, %c0_i32_1 : i32, i32, i32
  }
  func.func @transform_12(%arg0: i32) -> (i32, i32, i32) {
    %c0_i32 = arith.constant 0 : i32
    %c0_i32_0 = arith.constant 0 : i32
    %c0_i32_1 = arith.constant 0 : i32
    %c0_i32_2 = arith.constant 0 : i32
    return %c0_i32, %c0_i32_0, %c0_i32_1 : i32, i32, i32
  }
  func.func @transform_13(%arg0: i32) -> (i32, i32, i32) {
    %c0_i32 = arith.constant 0 : i32
    %c0_i32_0 = arith.constant 0 : i32
    %c0_i32_1 = arith.constant 0 : i32
    %c0_i32_2 = arith.constant 0 : i32
    return %c0_i32, %c0_i32_0, %c0_i32_1 : i32, i32, i32
  }
  func.func @transform_14(%arg0: i32) -> (i32, i32, i32) {
    %c0_i32 = arith.constant 0 : i32
    %c0_i32_0 = arith.constant 0 : i32
    %c0_i32_1 = arith.constant 0 : i32
    %c0_i32_2 = arith.constant 0 : i32
    return %c0_i32, %c0_i32_0, %c0_i32_1 : i32, i32, i32
  }
  func.func @transform_15(%arg0: i32) -> (i32, i32, i32) {
    %c0_i32 = arith.constant 0 : i32
    %c0_i32_0 = arith.constant 0 : i32
    %c0_i32_1 = arith.constant 0 : i32
    %c0_i32_2 = arith.constant 0 : i32
    return %c0_i32, %c0_i32_0, %c0_i32_1 : i32, i32, i32
  }
  func.func @transform_16(%arg0: i32) -> (i32, i32) {
    %c0_i32 = arith.constant 0 : i32
    %c0_i32_0 = arith.constant 0 : i32
    %c0_i32_1 = arith.constant 0 : i32
    return %c0_i32, %c0_i32_0 : i32, i32
  }
  func.func @transform_17(%arg0: i32) -> (i32, i32) {
    %c0_i32 = arith.constant 0 : i32
    %c0_i32_0 = arith.constant 0 : i32
    %c0_i32_1 = arith.constant 0 : i32
    return %c0_i32, %c0_i32_0 : i32, i32
  }
  func.func @transform_18(%arg0: i32) -> (i32, i32) {
    %c0_i32 = arith.constant 0 : i32
    %c0_i32_0 = arith.constant 0 : i32
    return %arg0, %c0_i32 : i32, i32
  }
}

</mosaic_0001>

<llo_original>
// kernel: tpu_custom_call.1
$region0: #{tpu_custom_call.1}
  #allocation0 [shape = 'u32[]', space=smem, size = 0x4, offset = 0x4, fixed_abs, tag = 'smem constant byte address 0x4 - core index']
  #allocation1 [shape = 'u32[144,128]{1,0:T(1,128)}', space=vmem, size = 0x12000, scoped, tag = 'internal scratch']
  %s0 = inlined_call_operand.vmem [shape: f32[8,128], index: 0, kind: input, shape index: {}]
  %s1 = inlined_call_operand.vmem [shape: f32[8,128], index: 1, kind: input, shape index: {}]
  %s2 = inlined_call_operand.vmem [shape: bf16[128,8], index: 2, kind: input, shape index: {}]
  %s3 = inlined_call_operand.vmem [shape: bf16[8,128], index: 3, kind: input, shape index: {}]
  %s4 = inlined_call_operand.hbm [shape: bf16[4,128,384], index: 4, kind: input, shape index: {}]
  %s5 = inlined_call_operand.vmem [shape: f32[4,1,384], index: 5, kind: input, shape index: {}]
  %s6 = inlined_call_operand.hbm [shape: bf16[4,128,128], index: 6, kind: input, shape index: {}]
  %s7 = inlined_call_operand.vmem [shape: f32[4,1,128], index: 7, kind: input, shape index: {}]
  %s8 = inlined_call_operand.vmem [shape: f32[4,1,128], index: 8, kind: input, shape index: {}]
  %s9 = inlined_call_operand.vmem [shape: f32[4,1,128], index: 9, kind: input, shape index: {}]
  %s10 = inlined_call_operand.hbm [shape: bf16[4,128,512], index: 10, kind: input, shape index: {}]
  %s11 = inlined_call_operand.vmem [shape: f32[4,1,512], index: 11, kind: input, shape index: {}]
  %s12 = inlined_call_operand.hbm [shape: bf16[4,512,128], index: 12, kind: input, shape index: {}]
  %s13 = inlined_call_operand.vmem [shape: f32[4,1,128], index: 13, kind: input, shape index: {}]
  %s14 = inlined_call_operand.vmem [shape: f32[4,1,128], index: 14, kind: input, shape index: {}]
  %s15 = inlined_call_operand.vmem [shape: f32[4,1,128], index: 15, kind: input, shape index: {}]
  %s16 = inlined_call_operand.vmem [shape: f32[1,128], index: 16, kind: input, shape index: {}]
  %s17 = inlined_call_operand.vmem [shape: f32[1,128], index: 17, kind: input, shape index: {}]
  %s18 = inlined_call_operand.hbm [shape: f32[8,128], index: 18, kind: output, shape index: {}]
  %s19 = sld [smem:[#allocation0]]
  $region98: #{tpu_custom_call.1} parent=0
    _
  %s21 = ssub.s32 1, %s19
  %s22 = scalar_select 0, %s21, %s19
  $region1: #{tpu_custom_call.1} parent=0
    #allocation2 [shape = 'u8[393216]{0}', space=vmem, size = 0x60000, scoped, tag = 'input window, operand 4, single buffered']
    #allocation3 [shape = 's32[1]{0}', space=sflag, size = 0x4, scoped, tag = 'scoped memory for tpu_custom_call.1']
    #allocation4 [shape = 's32[1]{0}', space=sflag, size = 0x4, scoped, tag = 'scoped memory for tpu_custom_call.1']
    #allocation5 [shape = 'u8[131072]{0}', space=vmem, size = 0x20000, scoped, tag = 'input window, operand 6, single buffered']
    #allocation6 [shape = 's32[1]{0}', space=sflag, size = 0x4, scoped, tag = 'scoped memory for tpu_custom_call.1']
    #allocation7 [shape = 'u8[524288]{0}', space=vmem, size = 0x80000, scoped, tag = 'input window, operand 10, single buffered']
    #allocation8 [shape = 'u8[524288]{0}', space=vmem, size = 0x80000, scoped, tag = 'input window, operand 12, single buffered']
    #allocation9 [shape = 's32[1]{0}', space=sflag, size = 0x4, scoped, tag = 'scoped memory for tpu_custom_call.1']
    #allocation10 [shape = 'u8[4096]{0}', space=vmem, size = 0x1000, scoped, tag = 'output window, operand 0, single buffered']
    %23 = vsyncpa [#allocation3], 0
    %24 = vsyncpa [#allocation6], 0
    %25 = vsyncpa [#allocation9], 0
    %26 = vsyncpa [#allocation4], 0
    // Predicated region
    $region2: #{tpu_custom_call.1} parent=1 // pred_check
      _
    $region3: #{tpu_custom_call.1} parent=1 // pred_check_branch
      %28 = sbr.rel (0) target = $region5
    $region4: #{tpu_custom_call.1} parent=1 // pred_region
      _
    $region5: #{tpu_custom_call.1} parent=1 // pred_fallthru
      _
    // Predicated region
    $region6: #{tpu_custom_call.1} parent=1 // pred_check
      _
    $region7: #{tpu_custom_call.1} parent=1 // pred_check_branch
      %30 = sbr.rel (0) target = $region9
    $region8: #{tpu_custom_call.1} parent=1 // pred_region
      _
    $region9: #{tpu_custom_call.1} parent=1 // pred_fallthru
      _
    // Predicated region
    $region10: #{tpu_custom_call.1} parent=1 // pred_check
      _
    $region11: #{tpu_custom_call.1} parent=1 // pred_check_branch
      %32 = sbr.rel (0) target = $region13
    $region12: #{tpu_custom_call.1} parent=1 // pred_region
      _
    $region13: #{tpu_custom_call.1} parent=1 // pred_fallthru
      _
    // Predicated region
    $region14: #{tpu_custom_call.1} parent=1 // pred_check
      _
    $region15: #{tpu_custom_call.1} parent=1 // pred_check_branch
      %34 = sbr.rel (0) target = $region17
    $region16: #{tpu_custom_call.1} parent=1 // pred_region
      _
    $region17: #{tpu_custom_call.1} parent=1 // pred_fallthru
      _
    // Predicated region
    $region18: #{tpu_custom_call.1} parent=1 // pred_check
      _
    $region19: #{tpu_custom_call.1} parent=1 // pred_check_branch
      %36 = sbr.rel (0) target = $region21
    $region20: #{tpu_custom_call.1} parent=1 // pred_region
      %s38 = ssub.s32 12288, 12288
      %39 = vsyncadd [#allocation3], %s38
      %s40 = sshll.u32 [#allocation2], 4
      %s41 = int_to_ptr.vmem [resolvable:$true] %s40
      %46 = dma.hbm_to_vmem [thread:$0]  %s4, 12288, %s41, [#allocation3], 192, 192, 12
    $region21: #{tpu_custom_call.1} parent=1 // pred_fallthru
      _
    // Predicated region
    $region22: #{tpu_custom_call.1} parent=1 // pred_check
      _
    $region23: #{tpu_custom_call.1} parent=1 // pred_check_branch
      %48 = sbr.rel (0) target = $region25
    $region24: #{tpu_custom_call.1} parent=1 // pred_region
      _
    $region25: #{tpu_custom_call.1} parent=1 // pred_fallthru
      _
    // Predicated region
    $region26: #{tpu_custom_call.1} parent=1 // pred_check
      _
    $region27: #{tpu_custom_call.1} parent=1 // pred_check_branch
      %50 = sbr.rel (0) target = $region29
    $region28: #{tpu_custom_call.1} parent=1 // pred_region
      %s52 = ssub.s32 4096, 4096
      %53 = vsyncadd [#allocation6], %s52
      %s54 = sshll.u32 [#allocation5], 4
      %s55 = int_to_ptr.vmem [resolvable:$true] %s54
      %60 = dma.hbm_to_vmem [thread:$0]  %s6, 4096, %s55, [#allocation6], 64, 64, 4
    $region29: #{tpu_custom_call.1} parent=1 // pred_fallthru
      _
    // Predicated region
    $region30: #{tpu_custom_call.1} parent=1 // pred_check
      _
    $region31: #{tpu_custom_call.1} parent=1 // pred_check_branch
      %62 = sbr.rel (0) target = $region33
    $region32: #{tpu_custom_call.1} parent=1 // pred_region
      _
    $region33: #{tpu_custom_call.1} parent=1 // pred_fallthru
      _
    // Predicated region
    $region34: #{tpu_custom_call.1} parent=1 // pred_check
      _
    $region35: #{tpu_custom_call.1} parent=1 // pred_check_branch
      %64 = sbr.rel (0) target = $region37
    $region36: #{tpu_custom_call.1} parent=1 // pred_region
      _
    $region37: #{tpu_custom_call.1} parent=1 // pred_fallthru
      _
    // Predicated region
    $region38: #{tpu_custom_call.1} parent=1 // pred_check
      _
    $region39: #{tpu_custom_call.1} parent=1 // pred_check_branch
      %66 = sbr.rel (0) target = $region41
    $region40: #{tpu_custom_call.1} parent=1 // pred_region
      _
    $region41: #{tpu_custom_call.1} parent=1 // pred_fallthru
      _
    // Predicated region
    $region42: #{tpu_custom_call.1} parent=1 // pred_check
      _
    $region43: #{tpu_custom_call.1} parent=1 // pred_check_branch
      %68 = sbr.rel (0) target = $region45
    $region44: #{tpu_custom_call.1} parent=1 // pred_region
      %s70 = ssub.s32 16384, 16384
      %71 = vsyncadd [#allocation6], %s70
      %s72 = sshll.u32 [#allocation7], 4
      %s73 = int_to_ptr.vmem [resolvable:$true] %s72
      %78 = dma.hbm_to_vmem [thread:$0]  %s10, 16384, %s73, [#allocation6], 256, 256, 16
    $region45: #{tpu_custom_call.1} parent=1 // pred_fallthru
      _
    // Predicated region
    $region46: #{tpu_custom_call.1} parent=1 // pred_check
      _
    $region47: #{tpu_custom_call.1} parent=1 // pred_check_branch
      %80 = sbr.rel (0) target = $region49
    $region48: #{tpu_custom_call.1} parent=1 // pred_region
      _
    $region49: #{tpu_custom_call.1} parent=1 // pred_fallthru
      _
    // Predicated region
    $region50: #{tpu_custom_call.1} parent=1 // pred_check
      _
    $region51: #{tpu_custom_call.1} parent=1 // pred_check_branch
      %82 = sbr.rel (0) target = $region53
    $region52: #{tpu_custom_call.1} parent=1 // pred_region
      %s84 = ssub.s32 16384, 16384
      %85 = vsyncadd [#allocation9], %s84
      %s86 = sshll.u32 [#allocation8], 4
      %s87 = int_to_ptr.vmem [resolvable:$true] %s86
      %92 = dma.hbm_to_vmem [thread:$0]  %s12, 16384, %s87, [#allocation9], 64, 64, 4
    $region53: #{tpu_custom_call.1} parent=1 // pred_fallthru
      _
    // Predicated region
    $region54: #{tpu_custom_call.1} parent=1 // pred_check
      _
    $region55: #{tpu_custom_call.1} parent=1 // pred_check_branch
      %94 = sbr.rel (0) target = $region57
    $region56: #{tpu_custom_call.1} parent=1 // pred_region
      _
    $region57: #{tpu_custom_call.1} parent=1 // pred_fallthru
      _
    // Predicated region
    $region58: #{tpu_custom_call.1} parent=1 // pred_check
      _
    $region59: #{tpu_custom_call.1} parent=1 // pred_check_branch
      %96 = sbr.rel (0) target = $region61
    $region60: #{tpu_custom_call.1} parent=1 // pred_region
      _
    $region61: #{tpu_custom_call.1} parent=1 // pred_fallthru
      _
    // Predicated region
    $region62: #{tpu_custom_call.1} parent=1 // pred_check
      _
    $region63: #{tpu_custom_call.1} parent=1 // pred_check_branch
      %98 = sbr.rel (0) target = $region65
    $region64: #{tpu_custom_call.1} parent=1 // pred_region
      _
    $region65: #{tpu_custom_call.1} parent=1 // pred_fallthru
      _
    // Predicated region
    $region66: #{tpu_custom_call.1} parent=1 // pred_check
      _
    $region67: #{tpu_custom_call.1} parent=1 // pred_check_branch
      %100 = sbr.rel (0) target = $region69
    $region68: #{tpu_custom_call.1} parent=1 // pred_region
      _
    $region69: #{tpu_custom_call.1} parent=1 // pred_fallthru
      _
    // Predicated region
    $region70: #{tpu_custom_call.1} parent=1 // pred_check
      _
    $region71: #{tpu_custom_call.1} parent=1 // pred_check_branch
      %102 = sbr.rel (0) target = $region73
    $region72: #{tpu_custom_call.1} parent=1 // pred_region
      _
    $region73: #{tpu_custom_call.1} parent=1 // pred_fallthru
      _
    // Predicated region
    $region74: #{tpu_custom_call.1} parent=1 // pred_check
      _
    $region75: #{tpu_custom_call.1} parent=1 // pred_check_branch
      %104 = sbr.rel (0) target = $region77
    $region76: #{tpu_custom_call.1} parent=1 // pred_region
      %105 = dma.done [#allocation3], 12288
    $region77: #{tpu_custom_call.1} parent=1 // pred_fallthru
      _
    // Predicated region
    $region78: #{tpu_custom_call.1} parent=1 // pred_check
      _
    $region79: #{tpu_custom_call.1} parent=1 // pred_check_branch
      %107 = sbr.rel (0) target = $region81
    $region80: #{tpu_custom_call.1} parent=1 // pred_region
      %108 = dma.done [#allocation6], 4096
    $region81: #{tpu_custom_call.1} parent=1 // pred_fallthru
      _
    // Predicated region
    $region82: #{tpu_custom_call.1} parent=1 // pred_check
      _
    $region83: #{tpu_custom_call.1} parent=1 // pred_check_branch
      %110 = sbr.rel (0) target = $region85
    $region84: #{tpu_custom_call.1} parent=1 // pred_region
      %111 = dma.done [#allocation6], 16384
    $region85: #{tpu_custom_call.1} parent=1 // pred_fallthru
      _
    // Predicated region
    $region86: #{tpu_custom_call.1} parent=1 // pred_check
      _
    $region87: #{tpu_custom_call.1} parent=1 // pred_check_branch
      %113 = sbr.rel (0) target = $region89
    $region88: #{tpu_custom_call.1} parent=1 // pred_region
      %114 = dma.done [#allocation9], 16384
    $region89: #{tpu_custom_call.1} parent=1 // pred_fallthru
      _
    %v116 = vld [vmem:[%s0] sm:$0xff]
    %v117 = vld [vmem:[%s1] sm:$0xff]
    %v118 = vld [vmem:[%s2] sm:$0xf]
    %v119 = vld [vmem:[%s2 + $0x4] sm:$0xf]
    %v120 = vld [vmem:[%s2 + $0x8] sm:$0xf]
    %v121 = vld [vmem:[%s2 + $0xc] sm:$0xf]
    %v122 = vld [vmem:[%s2 + $0x10] sm:$0xf]
    %v123 = vld [vmem:[%s2 + $0x14] sm:$0xf]
    %v124 = vld [vmem:[%s2 + $0x18] sm:$0xf]
    %v125 = vld [vmem:[%s2 + $0x1c] sm:$0xf]
    %v126 = vld [vmem:[%s2 + $0x20] sm:$0xf]
    %v127 = vld [vmem:[%s2 + $0x24] sm:$0xf]
    %v128 = vld [vmem:[%s2 + $0x28] sm:$0xf]
    %v129 = vld [vmem:[%s2 + $0x2c] sm:$0xf]
    %v130 = vld [vmem:[%s2 + $0x30] sm:$0xf]
    %v131 = vld [vmem:[%s2 + $0x34] sm:$0xf]
    %v132 = vld [vmem:[%s2 + $0x38] sm:$0xf]
    %v133 = vld [vmem:[%s2 + $0x3c] sm:$0xf]
    %v134 = vld [vmem:[%s3] sm:$0xf]
    %v135 = vld [vmem:[#allocation2] sm:$0xff]
    %v136 = vld [vmem:[#allocation2 + $0x8] sm:$0xf]
    %v137 = vld [vmem:[#allocation2 + $0xc] sm:$0xff]
    %v138 = vld [vmem:[#allocation2 + $0x14] sm:$0xf]
    %v139 = vld [vmem:[#allocation2 + $0x18] sm:$0xff]
    %v140 = vld [vmem:[#allocation2 + $0x20] sm:$0xf]
    %v141 = vld [vmem:[#allocation2 + $0x24] sm:$0xff]
    %v142 = vld [vmem:[#allocation2 + $0x2c] sm:$0xf]
    %v143 = vld [vmem:[#allocation2 + $0x30] sm:$0xff]
    %v144 = vld [vmem:[#allocation2 + $0x38] sm:$0xf]
    %v145 = vld [vmem:[#allocation2 + $0x3c] sm:$0xff]
    %v146 = vld [vmem:[#allocation2 + $0x44] sm:$0xf]
    %v147 = vld [vmem:[#allocation2 + $0x48] sm:$0xff]
    %v148 = vld [vmem:[#allocation2 + $0x50] sm:$0xf]
    %v149 = vld [vmem:[#allocation2 + $0x54] sm:$0xff]
    %v150 = vld [vmem:[#allocation2 + $0x5c] sm:$0xf]
    %v151 = vld [vmem:[#allocation2 + $0x60] sm:$0xff]
    %v152 = vld [vmem:[#allocation2 + $0x68] sm:$0xf]
    %v153 = vld [vmem:[#allocation2 + $0x6c] sm:$0xff]
    %v154 = vld [vmem:[#allocation2 + $0x74] sm:$0xf]
    %v155 = vld [vmem:[#allocation2 + $0x78] sm:$0xff]
    %v156 = vld [vmem:[#allocation2 + $0x80] sm:$0xf]
    %v157 = vld [vmem:[#allocation2 + $0x84] sm:$0xff]
    %v158 = vld [vmem:[#allocation2 + $0x8c] sm:$0xf]
    %v159 = vld [vmem:[#allocation2 + $0x90] sm:$0xff]
    %v160 = vld [vmem:[#allocation2 + $0x98] sm:$0xf]
    %v161 = vld [vmem:[#allocation2 + $0x9c] sm:$0xff]
    %v162 = vld [vmem:[#allocation2 + $0xa4] sm:$0xf]
    %v163 = vld [vmem:[#allocation2 + $0xa8] sm:$0xff]
    %v164 = vld [vmem:[#allocation2 + $0xb0] sm:$0xf]
    %v165 = vld [vmem:[#allocation2 + $0xb4] sm:$0xff]
    %v166 = vld [vmem:[#allocation2 + $0xbc] sm:$0xf]
    %v167 = vpack.c.bf16 %v117, %v116
    %v168 = vld [vmem:[%s5] sm:$0x7]
    %v170 = vlaneseq
    %v171 = vshrl.u32 %v170, 7
    %v172 = vsub.s32 0, %v171
    %v173 = vrot.slane %v168, %v172
    %v174 = vlaneseq
    %v175 = vshrl.u32 %v174, 7
    %v176 = vsub.s32 1, %v175
    %v177 = vrot.slane %v168, %v176
    %v178 = vlaneseq
    %v179 = vshrl.u32 %v178, 7
    %v180 = vsub.s32 2, %v179
    %v181 = vrot.slane %v168, %v180
    %v217 = vunpack.c.l.b16 %v135
    %v218 = vunpack.c.h.b16 %v135
    %v219 = vunpack.c.l.b16 %v136
    %v220 = vunpack.c.l.b16 %v137
    %v221 = vunpack.c.h.b16 %v137
    %v222 = vunpack.c.l.b16 %v138
    %v223 = vunpack.c.l.b16 %v139
    %v224 = vunpack.c.h.b16 %v139
    %v225 = vunpack.c.l.b16 %v140
    %v226 = vunpack.c.l.b16 %v141
    %v227 = vunpack.c.h.b16 %v141
    %v228 = vunpack.c.l.b16 %v142
    %v229 = vunpack.c.l.b16 %v143
    %v230 = vunpack.c.h.b16 %v143
    %v231 = vunpack.c.l.b16 %v144
    %v232 = vunpack.c.l.b16 %v145
    %v233 = vunpack.c.h.b16 %v145
    %v234 = vunpack.c.l.b16 %v146
    %v235 = vunpack.c.l.b16 %v147
    %v236 = vunpack.c.h.b16 %v147
    %v237 = vunpack.c.l.b16 %v148
    %v238 = vunpack.c.l.b16 %v149
    %v239 = vunpack.c.h.b16 %v149
    %v240 = vunpack.c.l.b16 %v150
    %v241 = vunpack.c.l.b16 %v151
    %v242 = vunpack.c.h.b16 %v151
    %v243 = vunpack.c.l.b16 %v152
    %v244 = vunpack.c.l.b16 %v153
    %v245 = vunpack.c.h.b16 %v153
    %v246 = vunpack.c.l.b16 %v154
    %v247 = vunpack.c.l.b16 %v155
    %v248 = vunpack.c.h.b16 %v155
    %v249 = vunpack.c.l.b16 %v156
    %v250 = vunpack.c.l.b16 %v157
    %v251 = vunpack.c.h.b16 %v157
    %v252 = vunpack.c.l.b16 %v158
    %v253 = vunpack.c.l.b16 %v159
    %v254 = vunpack.c.h.b16 %v159
    %v255 = vunpack.c.l.b16 %v160
    %v256 = vunpack.c.l.b16 %v161
    %v257 = vunpack.c.h.b16 %v161
    %v258 = vunpack.c.l.b16 %v162
    %v259 = vunpack.c.l.b16 %v163
    %v260 = vunpack.c.h.b16 %v163
    %v261 = vunpack.c.l.b16 %v164
    %v262 = vunpack.c.l.b16 %v165
    %v263 = vunpack.c.h.b16 %v165
    %v264 = vunpack.c.l.b16 %v166
    %v265 = vpack.c.b16 %v220, %v217
    %v266 = vpack.c.b16 %v221, %v218
    %v267 = vpack.c.b16 %v222, %v219
    %v268 = vpack.c.b16 %v226, %v223
    %v269 = vpack.c.b16 %v227, %v224
    %v270 = vpack.c.b16 %v228, %v225
    %v271 = vpack.c.b16 %v232, %v229
    %v272 = vpack.c.b16 %v233, %v230
    %v273 = vpack.c.b16 %v234, %v231
    %v274 = vpack.c.b16 %v238, %v235
    %v275 = vpack.c.b16 %v239, %v236
    %v276 = vpack.c.b16 %v240, %v237
    %v277 = vpack.c.b16 %v244, %v241
    %v278 = vpack.c.b16 %v245, %v242
    %v279 = vpack.c.b16 %v246, %v243
    %v280 = vpack.c.b16 %v250, %v247
    %v281 = vpack.c.b16 %v251, %v248
    %v282 = vpack.c.b16 %v252, %v249
    %v283 = vpack.c.b16 %v256, %v253
    %v284 = vpack.c.b16 %v257, %v254
    %v285 = vpack.c.b16 %v258, %v255
    %v286 = vpack.c.b16 %v262, %v259
    %v287 = vpack.c.b16 %v263, %v260
    %v288 = vpack.c.b16 %v264, %v261
    %313 = vmatprep.subr.bf16.mxu0 %v266
    %314 = vmatpush1.bf16.msra.mxu0 %v265
    %315 = vmatprep.subr.bf16.mxu0 %v269
    %316 = vmatpush1.bf16.msra.mxu0 %v268
    %317 = vmatprep.subr.bf16.mxu0 %v272
    %318 = vmatpush1.bf16.msra.mxu0 %v271
    %319 = vmatprep.subr.bf16.mxu0 %v275
    %320 = vmatpush1.bf16.msra.mxu0 %v274
    %321 = vmatprep.subr.bf16.mxu0 %v278
    %322 = vmatpush1.bf16.msra.mxu0 %v277
    %323 = vmatprep.subr.bf16.mxu0 %v281
    %324 = vmatpush1.bf16.msra.mxu0 %v280
    %325 = vmatprep.subr.bf16.mxu0 %v284
    %326 = vmatpush1.bf16.msra.mxu0 %v283
    %327 = vmatprep.subr.bf16.mxu0 %v287
    %328 = vmatpush1.bf16.msra.mxu0 %v286
    %329 = vmatprep.subr.bf16.mxu0 0
    %330 = vmatpush1.bf16.msra.mxu0 0
    %331 = vmatprep.subr.bf16.mxu0 0
    %332 = vmatpush1.bf16.msra.mxu0 0
    %333 = vmatprep.subr.bf16.mxu0 0
    %334 = vmatpush1.bf16.msra.mxu0 0
    %335 = vmatprep.subr.bf16.mxu0 0
    %336 = vmatpush1.bf16.msra.mxu0 0
    %337 = vmatprep.subr.bf16.mxu0 0
    %338 = vmatpush1.bf16.msra.mxu0 0
    %339 = vmatprep.subr.bf16.mxu0 0
    %340 = vmatpush1.bf16.msra.mxu0 0
    %341 = vmatprep.subr.bf16.mxu0 0
    %342 = vmatpush1.bf16.msra.mxu0 0
    %343 = vmatprep.subr.bf16.mxu0 0
    %344 = vmatpush1.bf16.msra.mxu0 0
    %345 = vmatprep.mubr.bf16.mxu0 0
    %346 = vmatmul.mubr.bf16.gmra.mrb[0].mxu0 %v167
    %v347 = vpop.f32.mrb[0].mxu0
    %v348 = vadd.f32 %v173, %v347
    %v349 = vpop.f32.mrb[0].mxu0
    %v350 = vadd.f32 %v177, %v349
    %v351 = vpop.f32.mrb[0].mxu0
    %v352 = vadd.f32 %v173, %v351
    %v353 = vpop.f32.mrb[0].mxu0
    %v354 = vadd.f32 %v177, %v353
    %355 = vdwg.mxu0
    %356 = vmatprep.subr.bf16.mxu0 0
    %357 = vmatpush1.bf16.msra.mxu0 %v267
    %358 = vmatprep.subr.bf16.mxu0 0
    %359 = vmatpush1.bf16.msra.mxu0 %v270
    %360 = vmatprep.subr.bf16.mxu0 0
    %361 = vmatpush1.bf16.msra.mxu0 %v273
    %362 = vmatprep.subr.bf16.mxu0 0
    %363 = vmatpush1.bf16.msra.mxu0 %v276
    %364 = vmatprep.subr.bf16.mxu0 0
    %365 = vmatpush1.bf16.msra.mxu0 %v279
    %366 = vmatprep.subr.bf16.mxu0 0
    %367 = vmatpush1.bf16.msra.mxu0 %v282
    %368 = vmatprep.subr.bf16.mxu0 0
    %369 = vmatpush1.bf16.msra.mxu0 %v285
    %370 = vmatprep.subr.bf16.mxu0 0
    %371 = vmatpush1.bf16.msra.mxu0 %v288
    %372 = vmatprep.subr.bf16.mxu0 0
    %373 = vmatpush1.bf16.msra.mxu0 0
    %374 = vmatprep.subr.bf16.mxu0 0
    %375 = vmatpush1.bf16.msra.mxu0 0
    %376 = vmatprep.subr.bf16.mxu0 0
    %377 = vmatpush1.bf16.msra.mxu0 0
    %378 = vmatprep.subr.bf16.mxu0 0
    %379 = vmatpush1.bf16.msra.mxu0 0
    %380 = vmatprep.subr.bf16.mxu0 0
    %381 = vmatpush1.bf16.msra.mxu0 0
    %382 = vmatprep.subr.bf16.mxu0 0
    %383 = vmatpush1.bf16.msra.mxu0 0
    %384 = vmatprep.subr.bf16.mxu0 0
    %385 = vmatpush1.bf16.msra.mxu0 0
    %386 = vmatprep.subr.bf16.mxu0 0
    %387 = vmatpush1.bf16.msra.mxu0 0
    %388 = vmatprep.mubr.bf16.mxu0 0
    %389 = vmatmul.mubr.bf16.gmra.mrb[0].mxu0 %v167
    %v390 = vpop.f32.mrb[0].mxu0
    %v391 = vadd.f32 %v181, %v390
    %v392 = vpop.f32.mrb[0].mxu0
    %v393 = vpop.f32.mrb[0].mxu0
    %v394 = vadd.f32 %v181, %v393
    %v395 = vpop.f32.mrb[0].mxu0
    %396 = vdwg.mxu0
    %v397 = vsub.f32 %v350, %v354
    %v398 = vsub.f32 %v391, %v394
    %v399 = vmul.f32 %v348, %v397
    %v400 = vmul.f32 %v352, %v397
    %v401 = vpack.c.bf16 %v400, %v399
    %v418 = vunpack.c.l.b16 %v118
    %v419 = vunpack.c.l.b16 %v119
    %v420 = vunpack.c.l.b16 %v120
    %v421 = vunpack.c.l.b16 %v121
    %v422 = vunpack.c.l.b16 %v122
    %v423 = vunpack.c.l.b16 %v123
    %v424 = vunpack.c.l.b16 %v124
    %v425 = vunpack.c.l.b16 %v125
    %v426 = vunpack.c.l.b16 %v126
    %v427 = vunpack.c.l.b16 %v127
    %v428 = vunpack.c.l.b16 %v128
    %v429 = vunpack.c.l.b16 %v129
    %v430 = vunpack.c.l.b16 %v130
    %v431 = vunpack.c.l.b16 %v131
    %v432 = vunpack.c.l.b16 %v132
    %v433 = vunpack.c.l.b16 %v133
    %v434 = vpack.c.b16 %v419, %v418
    %v435 = vpack.c.b16 %v421, %v420
    %v436 = vpack.c.b16 %v423, %v422
    %v437 = vpack.c.b16 %v425, %v424
    %v438 = vpack.c.b16 %v427, %v426
    %v439 = vpack.c.b16 %v429, %v428
    %v440 = vpack.c.b16 %v431, %v430
    %v441 = vpack.c.b16 %v433, %v432
    %450 = vmatprep.subr.bf16.mxu0 0
    %451 = vmatpush1.bf16.msra.mxu0 %v434
    %452 = vmatprep.subr.bf16.mxu0 0
    %453 = vmatpush1.bf16.msra.mxu0 %v435
    %454 = vmatprep.subr.bf16.mxu0 0
    %455 = vmatpush1.bf16.msra.mxu0 %v436
    %456 = vmatprep.subr.bf16.mxu0 0
    %457 = vmatpush1.bf16.msra.mxu0 %v437
    %458 = vmatprep.subr.bf16.mxu0 0
    %459 = vmatpush1.bf16.msra.mxu0 %v438
    %460 = vmatprep.subr.bf16.mxu0 0
    %461 = vmatpush1.bf16.msra.mxu0 %v439
    %462 = vmatprep.subr.bf16.mxu0 0
    %463 = vmatpush1.bf16.msra.mxu0 %v440
    %464 = vmatprep.subr.bf16.mxu0 0
    %465 = vmatpush1.bf16.msra.mxu0 %v441
    %466 = vmatprep.subr.bf16.mxu0 0
    %467 = vmatpush1.bf16.msra.mxu0 0
    %468 = vmatprep.subr.bf16.mxu0 0
    %469 = vmatpush1.bf16.msra.mxu0 0
    %470 = vmatprep.subr.bf16.mxu0 0
    %471 = vmatpush1.bf16.msra.mxu0 0
    %472 = vmatprep.subr.bf16.mxu0 0
    %473 = vmatpush1.bf16.msra.mxu0 0
    %474 = vmatprep.subr.bf16.mxu0 0
    %475 = vmatpush1.bf16.msra.mxu0 0
    %476 = vmatprep.subr.bf16.mxu0 0
    %477 = vmatpush1.bf16.msra.mxu0 0
    %478 = vmatprep.subr.bf16.mxu0 0
    %479 = vmatpush1.bf16.msra.mxu0 0
    %480 = vmatprep.subr.bf16.mxu0 0
    %481 = vmatpush1.bf16.msra.mxu0 0
    %482 = vmatprep.mubr.bf16.mxu0 0
    %483 = vmatmul.mubr.bf16.gmra.mrb[0].mxu0 %v401
    %v484 = vpop.f32.mrb[0].mxu0
    %v485 = vadd.f32 0.0, %v484
    %v486 = vpop.f32.mrb[0].mxu0
    %v487 = vpop.f32.mrb[0].mxu0
    %v488 = vadd.f32 0.0, %v487
    %v489 = vpop.f32.mrb[0].mxu0
    %490 = vdwg.mxu0
    %v491 = vsub.f32 0.0, %v485
    %v492 = vsub.f32 0.0, %v488
    %v493 = vmul.f32 %v491, 1.442695
    %v494 = vpow.pop %v493
    %v495 = vmul.f32 %v492, 1.442695
    %v496 = vpow.pop %v495
    %v497 = vadd.f32 %v494, 1.0
    %v498 = vadd.f32 %v496, 1.0
    %v499 = vrcp.pop %v497
    %v500 = vrcp.pop %v498
    %v501 = vpack.c.bf16 %v500, %v499
    %vm502 = vcmask 64512
    %v504 = vsel %vm502, %v501, 0
    %vm506 = vcmask 1043456
    %v508 = vsel %vm506, %v134, 0
    %510 = vmatprep.subr.bf16.mxu0 0
    %511 = vmatpush1.bf16.msra.mxu0 %v508
    %512 = vmatprep.subr.bf16.mxu0 0
    %513 = vmatpush1.bf16.msra.mxu0 0
    %514 = vmatprep.subr.bf16.mxu0 0
    %515 = vmatpush1.bf16.msra.mxu0 0
    %516 = vmatprep.subr.bf16.mxu0 0
    %517 = vmatpush1.bf16.msra.mxu0 0
    %518 = vmatprep.subr.bf16.mxu0 0
    %519 = vmatpush1.bf16.msra.mxu0 0
    %520 = vmatprep.subr.bf16.mxu0 0
    %521 = vmatpush1.bf16.msra.mxu0 0
    %522 = vmatprep.subr.bf16.mxu0 0
    %523 = vmatpush1.bf16.msra.mxu0 0
    %524 = vmatprep.subr.bf16.mxu0 0
    %525 = vmatpush1.bf16.msra.mxu0 0
    %526 = vmatprep.subr.bf16.mxu0 0
    %527 = vmatpush1.bf16.msra.mxu0 0
    %528 = vmatprep.subr.bf16.mxu0 0
    %529 = vmatpush1.bf16.msra.mxu0 0
    %530 = vmatprep.subr.bf16.mxu0 0
    %531 = vmatpush1.bf16.msra.mxu0 0
    %532 = vmatprep.subr.bf16.mxu0 0
    %533 = vmatpush1.bf16.msra.mxu0 0
    %534 = vmatprep.subr.bf16.mxu0 0
    %535 = vmatpush1.bf16.msra.mxu0 0
    %536 = vmatprep.subr.bf16.mxu0 0
    %537 = vmatpush1.bf16.msra.mxu0 0
    %538 = vmatprep.subr.bf16.mxu0 0
    %539 = vmatpush1.bf16.msra.mxu0 0
    %540 = vmatprep.subr.bf16.mxu0 0
    %541 = vmatpush1.bf16.msra.mxu0 0
    %542 = vmatprep.mubr.bf16.mxu0 0
    %543 = vmatmul.mubr.bf16.gmra.mrb[0].mxu0 %v504
    %v544 = vpop.f32.mrb[0].mxu0
    %v545 = vadd.f32 0.0, %v544
    %v546 = vpop.f32.mrb[0].mxu0
    %v547 = vpop.f32.mrb[0].mxu0
    %v548 = vadd.f32 0.0, %v547
    %v549 = vpop.f32.mrb[0].mxu0
    %550 = vdwg.mxu0
    %v551 = vmul.f32 %v545, %v398
    %v552 = vadd.f32 %v394, %v551
    %v553 = vmul.f32 %v548, %v398
    %v554 = vadd.f32 %v394, %v553
    %v555 = vld [vmem:[#allocation5] sm:$0xf]
    %v556 = vld [vmem:[#allocation5 + $0x4] sm:$0xf]
    %v557 = vld [vmem:[#allocation5 + $0x8] sm:$0xf]
    %v558 = vld [vmem:[#allocation5 + $0xc] sm:$0xf]
    %v559 = vld [vmem:[#allocation5 + $0x10] sm:$0xf]
    %v560 = vld [vmem:[#allocation5 + $0x14] sm:$0xf]
    %v561 = vld [vmem:[#allocation5 + $0x18] sm:$0xf]
    %v562 = vld [vmem:[#allocation5 + $0x1c] sm:$0xf]
    %v563 = vld [vmem:[#allocation5 + $0x20] sm:$0xf]
    %v564 = vld [vmem:[#allocation5 + $0x24] sm:$0xf]
    %v565 = vld [vmem:[#allocation5 + $0x28] sm:$0xf]
    %v566 = vld [vmem:[#allocation5 + $0x2c] sm:$0xf]
    %v567 = vld [vmem:[#allocation5 + $0x30] sm:$0xf]
    %v568 = vld [vmem:[#allocation5 + $0x34] sm:$0xf]
    %v569 = vld [vmem:[#allocation5 + $0x38] sm:$0xf]
    %v570 = vld [vmem:[#allocation5 + $0x3c] sm:$0xf]
    %v571 = vpack.c.bf16 %v554, %v552
    %v572 = vld [vmem:[%s7] sm:$0x1]
    %v574 = vlaneseq
    %v575 = vshrl.u32 %v574, 7
    %v576 = vsub.s32 0, %v575
    %v577 = vrot.slane %v572, %v576
    %v595 = vunpack.c.l.b16 %v555
    %v596 = vunpack.c.l.b16 %v556
    %v597 = vunpack.c.l.b16 %v557
    %v598 = vunpack.c.l.b16 %v558
    %v599 = vunpack.c.l.b16 %v559
    %v600 = vunpack.c.l.b16 %v560
    %v601 = vunpack.c.l.b16 %v561
    %v602 = vunpack.c.l.b16 %v562
    %v603 = vunpack.c.l.b16 %v563
    %v604 = vunpack.c.l.b16 %v564
    %v605 = vunpack.c.l.b16 %v565
    %v606 = vunpack.c.l.b16 %v566
    %v607 = vunpack.c.l.b16 %v567
    %v608 = vunpack.c.l.b16 %v568
    %v609 = vunpack.c.l.b16 %v569
    %v610 = vunpack.c.l.b16 %v570
    %v611 = vpack.c.b16 %v596, %v595
    %v612 = vpack.c.b16 %v598, %v597
    %v613 = vpack.c.b16 %v600, %v599
    %v614 = vpack.c.b16 %v602, %v601
    %v615 = vpack.c.b16 %v604, %v603
    %v616 = vpack.c.b16 %v606, %v605
    %v617 = vpack.c.b16 %v608, %v607
    %v618 = vpack.c.b16 %v610, %v609
    %627 = vmatprep.subr.bf16.mxu0 0
    %628 = vmatpush1.bf16.msra.mxu0 %v611
    %629 = vmatprep.subr.bf16.mxu0 0
    %630 = vmatpush1.bf16.msra.mxu0 %v612
    %631 = vmatprep.subr.bf16.mxu0 0
    %632 = vmatpush1.bf16.msra.mxu0 %v613
    %633 = vmatprep.subr.bf16.mxu0 0
    %634 = vmatpush1.bf16.msra.mxu0 %v614
    %635 = vmatprep.subr.bf16.mxu0 0
    %636 = vmatpush1.bf16.msra.mxu0 %v615
    %637 = vmatprep.subr.bf16.mxu0 0
    %638 = vmatpush1.bf16.msra.mxu0 %v616
    %639 = vmatprep.subr.bf16.mxu0 0
    %640 = vmatpush1.bf16.msra.mxu0 %v617
    %641 = vmatprep.subr.bf16.mxu0 0
    %642 = vmatpush1.bf16.msra.mxu0 %v618
    %643 = vmatprep.subr.bf16.mxu0 0
    %644 = vmatpush1.bf16.msra.mxu0 0
    %645 = vmatprep.subr.bf16.mxu0 0
    %646 = vmatpush1.bf16.msra.mxu0 0
    %647 = vmatprep.subr.bf16.mxu0 0
    %648 = vmatpush1.bf16.msra.mxu0 0
    %649 = vmatprep.subr.bf16.mxu0 0
    %650 = vmatpush1.bf16.msra.mxu0 0
    %651 = vmatprep.subr.bf16.mxu0 0
    %652 = vmatpush1.bf16.msra.mxu0 0
    %653 = vmatprep.subr.bf16.mxu0 0
    %654 = vmatpush1.bf16.msra.mxu0 0
    %655 = vmatprep.subr.bf16.mxu0 0
    %656 = vmatpush1.bf16.msra.mxu0 0
    %657 = vmatprep.subr.bf16.mxu0 0
    %658 = vmatpush1.bf16.msra.mxu0 0
    %659 = vmatprep.mubr.bf16.mxu0 0
    %660 = vmatmul.mubr.bf16.gmra.mrb[0].mxu0 %v571
    %v661 = vpop.f32.mrb[0].mxu0
    %v662 = vadd.f32 %v577, %v661
    %v663 = vpop.f32.mrb[0].mxu0
    %v664 = vpop.f32.mrb[0].mxu0
    %v665 = vadd.f32 %v577, %v664
    %v666 = vpop.f32.mrb[0].mxu0
    %667 = vdwg.mxu0
    %v668 = vadd.f32 %v116, %v662
    %v669 = vadd.f32 %v117, %v665
    %v670 = vld [vmem:[%s8] sm:$0x1]
    %v671 = vld [vmem:[%s9] sm:$0x1]
    %672 = vadd.xlane.f32.xlu0 %v668
    %v673 = vpop.xlane.xlu0 %672
    %674 = vadd.xlane.f32.xlu0 %v669
    %v675 = vpop.xlane.xlu0 %674
    %v676 = vrcp.pop 128.0
    %v677 = vmul.f32 %v673, %v676
    %v678 = vmul.f32 %v675, %v676
    %v679 = vmul.f32 %v668, %v668
    %v680 = vmul.f32 %v669, %v669
    %681 = vadd.xlane.f32.xlu0 %v679
    %v682 = vpop.xlane.xlu0 %681
    %683 = vadd.xlane.f32.xlu0 %v680
    %v684 = vpop.xlane.xlu0 %683
    %v685 = vmul.f32 %v682, %v676
    %v686 = vmul.f32 %v684, %v676
    %v687 = vmul.f32 %v677, %v677
    %v688 = vmul.f32 %v678, %v678
    %v689 = vsub.f32 %v685, %v687
    %v690 = vsub.f32 %v686, %v688
    %v691 = vsub.f32 %v668, %v677
    %v692 = vsub.f32 %v669, %v678
    %v693 = vadd.f32 %v689, 1e-05
    %v694 = vadd.f32 %v690, 1e-05
    %v695 = vrsqrt.pop %v693
    %v696 = vrsqrt.pop %v694
    %v697 = vmul.f32 %v691, %v695
    %v698 = vmul.f32 %v692, %v696
    %v700 = vlaneseq
    %v701 = vshrl.u32 %v700, 7
    %v702 = vsub.s32 0, %v701
    %v703 = vrot.slane %v670, %v702
    %v705 = vmul.f32 %v697, %v703
    %v706 = vmul.f32 %v698, %v703
    %v708 = vlaneseq
    %v709 = vshrl.u32 %v708, 7
    %v710 = vsub.s32 0, %v709
    %v711 = vrot.slane %v671, %v710
    %v713 = vadd.f32 %v705, %v711
    %v714 = vadd.f32 %v706, %v711
    %v715 = vld [vmem:[#allocation7] sm:$0xff]
    %v716 = vld [vmem:[#allocation7 + $0x8] sm:$0xff]
    %v717 = vld [vmem:[#allocation7 + $0x10] sm:$0xff]
    %v718 = vld [vmem:[#allocation7 + $0x18] sm:$0xff]
    %v719 = vld [vmem:[#allocation7 + $0x20] sm:$0xff]
    %v720 = vld [vmem:[#allocation7 + $0x28] sm:$0xff]
    %v721 = vld [vmem:[#allocation7 + $0x30] sm:$0xff]
    %v722 = vld [vmem:[#allocation7 + $0x38] sm:$0xff]
    %v723 = vld [vmem:[#allocation7 + $0x40] sm:$0xff]
    %v724 = vld [vmem:[#allocation7 + $0x48] sm:$0xff]
    %v725 = vld [vmem:[#allocation7 + $0x50] sm:$0xff]
    %v726 = vld [vmem:[#allocation7 + $0x58] sm:$0xff]
    %v727 = vld [vmem:[#allocation7 + $0x60] sm:$0xff]
    %v728 = vld [vmem:[#allocation7 + $0x68] sm:$0xff]
    %v729 = vld [vmem:[#allocation7 + $0x70] sm:$0xff]
    %v730 = vld [vmem:[#allocation7 + $0x78] sm:$0xff]
    %v731 = vld [vmem:[#allocation7 + $0x80] sm:$0xff]
    %v732 = vld [vmem:[#allocation7 + $0x88] sm:$0xff]
    %v733 = vld [vmem:[#allocation7 + $0x90] sm:$0xff]
    %v734 = vld [vmem:[#allocation7 + $0x98] sm:$0xff]
    %v735 = vld [vmem:[#allocation7 + $0xa0] sm:$0xff]
    %v736 = vld [vmem:[#allocation7 + $0xa8] sm:$0xff]
    %v737 = vld [vmem:[#allocation7 + $0xb0] sm:$0xff]
    %v738 = vld [vmem:[#allocation7 + $0xb8] sm:$0xff]
    %v739 = vld [vmem:[#allocation7 + $0xc0] sm:$0xff]
    %v740 = vld [vmem:[#allocation7 + $0xc8] sm:$0xff]
    %v741 = vld [vmem:[#allocation7 + $0xd0] sm:$0xff]
    %v742 = vld [vmem:[#allocation7 + $0xd8] sm:$0xff]
    %v743 = vld [vmem:[#allocation7 + $0xe0] sm:$0xff]
    %v744 = vld [vmem:[#allocation7 + $0xe8] sm:$0xff]
    %v745 = vld [vmem:[#allocation7 + $0xf0] sm:$0xff]
    %v746 = vld [vmem:[#allocation7 + $0xf8] sm:$0xff]
    %v747 = vpack.c.bf16 %v714, %v713
    %v748 = vld [vmem:[%s11] sm:$0xf]
    %v750 = vlaneseq
    %v751 = vshrl.u32 %v750, 7
    %v752 = vsub.s32 0, %v751
    %v753 = vrot.slane %v748, %v752
    %v754 = vlaneseq
    %v755 = vshrl.u32 %v754, 7
    %v756 = vsub.s32 1, %v755
    %v757 = vrot.slane %v748, %v756
    %v758 = vlaneseq
    %v759 = vshrl.u32 %v758, 7
    %v760 = vsub.s32 2, %v759
    %v761 = vrot.slane %v748, %v760
    %v762 = vlaneseq
    %v763 = vshrl.u32 %v762, 7
    %v764 = vsub.s32 3, %v763
    %v765 = vrot.slane %v748, %v764
    %v802 = vunpack.c.l.b16 %v715
    %v803 = vunpack.c.h.b16 %v715
    %v804 = vunpack.c.l.b16 %v716
    %v805 = vunpack.c.h.b16 %v716
    %v806 = vunpack.c.l.b16 %v717
    %v807 = vunpack.c.h.b16 %v717
    %v808 = vunpack.c.l.b16 %v718
    %v809 = vunpack.c.h.b16 %v718
    %v810 = vunpack.c.l.b16 %v719
    %v811 = vunpack.c.h.b16 %v719
    %v812 = vunpack.c.l.b16 %v720
    %v813 = vunpack.c.h.b16 %v720
    %v814 = vunpack.c.l.b16 %v721
    %v815 = vunpack.c.h.b16 %v721
    %v816 = vunpack.c.l.b16 %v722
    %v817 = vunpack.c.h.b16 %v722
    %v818 = vunpack.c.l.b16 %v723
    %v819 = vunpack.c.h.b16 %v723
    %v820 = vunpack.c.l.b16 %v724
    %v821 = vunpack.c.h.b16 %v724
    %v822 = vunpack.c.l.b16 %v725
    %v823 = vunpack.c.h.b16 %v725
    %v824 = vunpack.c.l.b16 %v726
    %v825 = vunpack.c.h.b16 %v726
    %v826 = vunpack.c.l.b16 %v727
    %v827 = vunpack.c.h.b16 %v727
    %v828 = vunpack.c.l.b16 %v728
    %v829 = vunpack.c.h.b16 %v728
    %v830 = vunpack.c.l.b16 %v729
    %v831 = vunpack.c.h.b16 %v729
    %v832 = vunpack.c.l.b16 %v730
    %v833 = vunpack.c.h.b16 %v730
    %v834 = vunpack.c.l.b16 %v731
    %v835 = vunpack.c.h.b16 %v731
    %v836 = vunpack.c.l.b16 %v732
    %v837 = vunpack.c.h.b16 %v732
    %v838 = vunpack.c.l.b16 %v733
    %v839 = vunpack.c.h.b16 %v733
    %v840 = vunpack.c.l.b16 %v734
    %v841 = vunpack.c.h.b16 %v734
    %v842 = vunpack.c.l.b16 %v735
    %v843 = vunpack.c.h.b16 %v735
    %v844 = vunpack.c.l.b16 %v736
    %v845 = vunpack.c.h.b16 %v736
    %v846 = vunpack.c.l.b16 %v737
    %v847 = vunpack.c.h.b16 %v737
    %v848 = vunpack.c.l.b16 %v738
    %v849 = vunpack.c.h.b16 %v738
    %v850 = vunpack.c.l.b16 %v739
    %v851 = vunpack.c.h.b16 %v739
    %v852 = vunpack.c.l.b16 %v740
    %v853 = vunpack.c.h.b16 %v740
    %v854 = vunpack.c.l.b16 %v741
    %v855 = vunpack.c.h.b16 %v741
    %v856 = vunpack.c.l.b16 %v742
    %v857 = vunpack.c.h.b16 %v742
    %v858 = vunpack.c.l.b16 %v743
    %v859 = vunpack.c.h.b16 %v743
    %v860 = vunpack.c.l.b16 %v744
    %v861 = vunpack.c.h.b16 %v744
    %v862 = vunpack.c.l.b16 %v745
    %v863 = vunpack.c.h.b16 %v745
    %v864 = vunpack.c.l.b16 %v746
    %v865 = vunpack.c.h.b16 %v746
    %v866 = vpack.c.b16 %v806, %v802
    %v867 = vpack.c.b16 %v807, %v803
    %v868 = vpack.c.b16 %v808, %v804
    %v869 = vpack.c.b16 %v809, %v805
    %v870 = vpack.c.b16 %v814, %v810
    %v871 = vpack.c.b16 %v815, %v811
    %v872 = vpack.c.b16 %v816, %v812
    %v873 = vpack.c.b16 %v817, %v813
    %v874 = vpack.c.b16 %v822, %v818
    %v875 = vpack.c.b16 %v823, %v819
    %v876 = vpack.c.b16 %v824, %v820
    %v877 = vpack.c.b16 %v825, %v821
    %v878 = vpack.c.b16 %v830, %v826
    %v879 = vpack.c.b16 %v831, %v827
    %v880 = vpack.c.b16 %v832, %v828
    %v881 = vpack.c.b16 %v833, %v829
    %v882 = vpack.c.b16 %v838, %v834
    %v883 = vpack.c.b16 %v839, %v835
    %v884 = vpack.c.b16 %v840, %v836
    %v885 = vpack.c.b16 %v841, %v837
    %v886 = vpack.c.b16 %v846, %v842
    %v887 = vpack.c.b16 %v847, %v843
    %v888 = vpack.c.b16 %v848, %v844
    %v889 = vpack.c.b16 %v849, %v845
    %v890 = vpack.c.b16 %v854, %v850
    %v891 = vpack.c.b16 %v855, %v851
    %v892 = vpack.c.b16 %v856, %v852
    %v893 = vpack.c.b16 %v857, %v853
    %v894 = vpack.c.b16 %v862, %v858
    %v895 = vpack.c.b16 %v863, %v859
    %v896 = vpack.c.b16 %v864, %v860
    %v897 = vpack.c.b16 %v865, %v861
    %930 = vmatprep.subr.bf16.mxu0 %v867
    %931 = vmatpush1.bf16.msra.mxu0 %v866
    %932 = vmatprep.subr.bf16.mxu0 %v871
    %933 = vmatpush1.bf16.msra.mxu0 %v870
    %934 = vmatprep.subr.bf16.mxu0 %v875
    %935 = vmatpush1.bf16.msra.mxu0 %v874
    %936 = vmatprep.subr.bf16.mxu0 %v879
    %937 = vmatpush1.bf16.msra.mxu0 %v878
    %938 = vmatprep.subr.bf16.mxu0 %v883
    %939 = vmatpush1.bf16.msra.mxu0 %v882
    %940 = vmatprep.subr.bf16.mxu0 %v887
    %941 = vmatpush1.bf16.msra.mxu0 %v886
    %942 = vmatprep.subr.bf16.mxu0 %v891
    %943 = vmatpush1.bf16.msra.mxu0 %v890
    %944 = vmatprep.subr.bf16.mxu0 %v895
    %945 = vmatpush1.bf16.msra.mxu0 %v894
    %946 = vmatprep.subr.bf16.mxu0 0
    %947 = vmatpush1.bf16.msra.mxu0 0
    %948 = vmatprep.subr.bf16.mxu0 0
    %949 = vmatpush1.bf16.msra.mxu0 0
    %950 = vmatprep.subr.bf16.mxu0 0
    %951 = vmatpush1.bf16.msra.mxu0 0
    %952 = vmatprep.subr.bf16.mxu0 0
    %953 = vmatpush1.bf16.msra.mxu0 0
    %954 = vmatprep.subr.bf16.mxu0 0
    %955 = vmatpush1.bf16.msra.mxu0 0
    %956 = vmatprep.subr.bf16.mxu0 0
    %957 = vmatpush1.bf16.msra.mxu0 0
    %958 = vmatprep.subr.bf16.mxu0 0
    %959 = vmatpush1.bf16.msra.mxu0 0
    %960 = vmatprep.subr.bf16.mxu0 0
    %961 = vmatpush1.bf16.msra.mxu0 0
    %962 = vmatprep.mubr.bf16.mxu0 0
    %963 = vmatmul.mubr.bf16.gmra.mrb[0].mxu0 %v747
    %v964 = vpop.f32.mrb[0].mxu0
    %v965 = vadd.f32 %v753, %v964
    %v966 = vpop.f32.mrb[0].mxu0
    %v967 = vadd.f32 %v757, %v966
    %v968 = vpop.f32.mrb[0].mxu0
    %v969 = vadd.f32 %v753, %v968
    %v970 = vpop.f32.mrb[0].mxu0
    %v971 = vadd.f32 %v757, %v970
    %972 = vdwg.mxu0
    %973 = vmatprep.subr.bf16.mxu0 %v869
    %974 = vmatpush1.bf16.msra.mxu0 %v868
    %975 = vmatprep.subr.bf16.mxu0 %v873
    %976 = vmatpush1.bf16.msra.mxu0 %v872
    %977 = vmatprep.subr.bf16.mxu0 %v877
    %978 = vmatpush1.bf16.msra.mxu0 %v876
    %979 = vmatprep.subr.bf16.mxu0 %v881
    %980 = vmatpush1.bf16.msra.mxu0 %v880
    %981 = vmatprep.subr.bf16.mxu0 %v885
    %982 = vmatpush1.bf16.msra.mxu0 %v884
    %983 = vmatprep.subr.bf16.mxu0 %v889
    %984 = vmatpush1.bf16.msra.mxu0 %v888
    %985 = vmatprep.subr.bf16.mxu0 %v893
    %986 = vmatpush1.bf16.msra.mxu0 %v892
    %987 = vmatprep.subr.bf16.mxu0 %v897
    %988 = vmatpush1.bf16.msra.mxu0 %v896
    %989 = vmatprep.subr.bf16.mxu0 0
    %990 = vmatpush1.bf16.msra.mxu0 0
    %991 = vmatprep.subr.bf16.mxu0 0
    %992 = vmatpush1.bf16.msra.mxu0 0
    %993 = vmatprep.subr.bf16.mxu0 0
    %994 = vmatpush1.bf16.msra.mxu0 0
    %995 = vmatprep.subr.bf16.mxu0 0
    %996 = vmatpush1.bf16.msra.mxu0 0
    %997 = vmatprep.subr.bf16.mxu0 0
    %998 = vmatpush1.bf16.msra.mxu0 0
    %999 = vmatprep.subr.bf16.mxu0 0
    %1000 = vmatpush1.bf16.msra.mxu0 0
    %1001 = vmatprep.subr.bf16.mxu0 0
    %1002 = vmatpush1.bf16.msra.mxu0 0
    %1003 = vmatprep.subr.bf16.mxu0 0
    %1004 = vmatpush1.bf16.msra.mxu0 0
    %1005 = vmatprep.mubr.bf16.mxu0 0
    %1006 = vmatmul.mubr.bf16.gmra.mrb[0].mxu0 %v747
    %v1007 = vpop.f32.mrb[0].mxu0
    %v1008 = vadd.f32 %v761, %v1007
    %v1009 = vpop.f32.mrb[0].mxu0
    %v1010 = vadd.f32 %v765, %v1009
    %v1011 = vpop.f32.mrb[0].mxu0
    %v1012 = vadd.f32 %v761, %v1011
    %v1013 = vpop.f32.mrb[0].mxu0
    %v1014 = vadd.f32 %v765, %v1013
    %1015 = vdwg.mxu0
    %v1016 = vmax.f32 %v965, 0.0
    %v1017 = vmax.f32 %v967, 0.0
    %v1018 = vmax.f32 %v1008, 0.0
    %v1019 = vmax.f32 %v1010, 0.0
    %v1020 = vmax.f32 %v969, 0.0
    %v1021 = vmax.f32 %v971, 0.0
    %v1022 = vmax.f32 %v1012, 0.0
    %v1023 = vmax.f32 %v1014, 0.0
    %v1024 = vld [vmem:[#allocation8] sm:$0xf]
    %v1025 = vld [vmem:[#allocation8 + $0x4] sm:$0xf]
    %v1026 = vld [vmem:[#allocation8 + $0x8] sm:$0xf]
    %v1027 = vld [vmem:[#allocation8 + $0xc] sm:$0xf]
    %v1028 = vld [vmem:[#allocation8 + $0x10] sm:$0xf]
    %v1029 = vld [vmem:[#allocation8 + $0x14] sm:$0xf]
    %v1030 = vld [vmem:[#allocation8 + $0x18] sm:$0xf]
    %v1031 = vld [vmem:[#allocation8 + $0x1c] sm:$0xf]
    %v1032 = vld [vmem:[#allocation8 + $0x20] sm:$0xf]
    %v1033 = vld [vmem:[#allocation8 + $0x24] sm:$0xf]
    %v1034 = vld [vmem:[#allocation8 + $0x28] sm:$0xf]
    %v1035 = vld [vmem:[#allocation8 + $0x2c] sm:$0xf]
    %v1036 = vld [vmem:[#allocation8 + $0x30] sm:$0xf]
    %v1037 = vld [vmem:[#allocation8 + $0x34] sm:$0xf]
    %v1038 = vld [vmem:[#allocation8 + $0x38] sm:$0xf]
    %v1039 = vld [vmem:[#allocation8 + $0x3c] sm:$0xf]
    %v1040 = vld [vmem:[#allocation8 + $0x40] sm:$0xf]
    %v1041 = vld [vmem:[#allocation8 + $0x44] sm:$0xf]
    %v1042 = vld [vmem:[#allocation8 + $0x48] sm:$0xf]
    %v1043 = vld [vmem:[#allocation8 + $0x4c] sm:$0xf]
    %v1044 = vld [vmem:[#allocation8 + $0x50] sm:$0xf]
    %v1045 = vld [vmem:[#allocation8 + $0x54] sm:$0xf]
    %v1046 = vld [vmem:[#allocation8 + $0x58] sm:$0xf]
    %v1047 = vld [vmem:[#allocation8 + $0x5c] sm:$0xf]
    %v1048 = vld [vmem:[#allocation8 + $0x60] sm:$0xf]
    %v1049 = vld [vmem:[#allocation8 + $0x64] sm:$0xf]
    %v1050 = vld [vmem:[#allocation8 + $0x68] sm:$0xf]
    %v1051 = vld [vmem:[#allocation8 + $0x6c] sm:$0xf]
    %v1052 = vld [vmem:[#allocation8 + $0x70] sm:$0xf]
    %v1053 = vld [vmem:[#allocation8 + $0x74] sm:$0xf]
    %v1054 = vld [vmem:[#allocation8 + $0x78] sm:$0xf]
    %v1055 = vld [vmem:[#allocation8 + $0x7c] sm:$0xf]
    %v1056 = vld [vmem:[#allocation8 + $0x80] sm:$0xf]
    %v1057 = vld [vmem:[#allocation8 + $0x84] sm:$0xf]
    %v1058 = vld [vmem:[#allocation8 + $0x88] sm:$0xf]
    %v1059 = vld [vmem:[#allocation8 + $0x8c] sm:$0xf]
    %v1060 = vld [vmem:[#allocation8 + $0x90] sm:$0xf]
    %v1061 = vld [vmem:[#allocation8 + $0x94] sm:$0xf]
    %v1062 = vld [vmem:[#allocation8 + $0x98] sm:$0xf]
    %v1063 = vld [vmem:[#allocation8 + $0x9c] sm:$0xf]
    %v1064 = vld [vmem:[#allocation8 + $0xa0] sm:$0xf]
    %v1065 = vld [vmem:[#allocation8 + $0xa4] sm:$0xf]
    %v1066 = vld [vmem:[#allocation8 + $0xa8] sm:$0xf]
    %v1067 = vld [vmem:[#allocation8 + $0xac] sm:$0xf]
    %v1068 = vld [vmem:[#allocation8 + $0xb0] sm:$0xf]
    %v1069 = vld [vmem:[#allocation8 + $0xb4] sm:$0xf]
    %v1070 = vld [vmem:[#allocation8 + $0xb8] sm:$0xf]
    %v1071 = vld [vmem:[#allocation8 + $0xbc] sm:$0xf]
    %v1072 = vld [vmem:[#allocation8 + $0xc0] sm:$0xf]
    %v1073 = vld [vmem:[#allocation8 + $0xc4] sm:$0xf]
    %v1074 = vld [vmem:[#allocation8 + $0xc8] sm:$0xf]
    %v1075 = vld [vmem:[#allocation8 + $0xcc] sm:$0xf]
    %v1076 = vld [vmem:[#allocation8 + $0xd0] sm:$0xf]
    %v1077 = vld [vmem:[#allocation8 + $0xd4] sm:$0xf]
    %v1078 = vld [vmem:[#allocation8 + $0xd8] sm:$0xf]
    %v1079 = vld [vmem:[#allocation8 + $0xdc] sm:$0xf]
    %v1080 = vld [vmem:[#allocation8 + $0xe0] sm:$0xf]
    %v1081 = vld [vmem:[#allocation8 + $0xe4] sm:$0xf]
    %v1082 = vld [vmem:[#allocation8 + $0xe8] sm:$0xf]
    %v1083 = vld [vmem:[#allocation8 + $0xec] sm:$0xf]
    %v1084 = vld [vmem:[#allocation8 + $0xf0] sm:$0xf]
    %v1085 = vld [vmem:[#allocation8 + $0xf4] sm:$0xf]
    %v1086 = vld [vmem:[#allocation8 + $0xf8] sm:$0xf]
    %v1087 = vld [vmem:[#allocation8 + $0xfc] sm:$0xf]
    %v1088 = vpack.c.bf16 %v1020, %v1016
    %v1089 = vpack.c.bf16 %v1021, %v1017
    %v1090 = vpack.c.bf16 %v1022, %v1018
    %v1091 = vpack.c.bf16 %v1023, %v1019
    %v1092 = vld [vmem:[%s13] sm:$0x1]
    %v1094 = vlaneseq
    %v1095 = vshrl.u32 %v1094, 7
    %v1096 = vsub.s32 0, %v1095
    %v1097 = vrot.slane %v1092, %v1096
    %v1163 = vunpack.c.l.b16 %v1024
    %v1164 = vunpack.c.l.b16 %v1025
    %v1165 = vunpack.c.l.b16 %v1026
    %v1166 = vunpack.c.l.b16 %v1027
    %v1167 = vunpack.c.l.b16 %v1028
    %v1168 = vunpack.c.l.b16 %v1029
    %v1169 = vunpack.c.l.b16 %v1030
    %v1170 = vunpack.c.l.b16 %v1031
    %v1171 = vunpack.c.l.b16 %v1032
    %v1172 = vunpack.c.l.b16 %v1033
    %v1173 = vunpack.c.l.b16 %v1034
    %v1174 = vunpack.c.l.b16 %v1035
    %v1175 = vunpack.c.l.b16 %v1036
    %v1176 = vunpack.c.l.b16 %v1037
    %v1177 = vunpack.c.l.b16 %v1038
    %v1178 = vunpack.c.l.b16 %v1039
    %v1179 = vunpack.c.l.b16 %v1040
    %v1180 = vunpack.c.l.b16 %v1041
    %v1181 = vunpack.c.l.b16 %v1042
    %v1182 = vunpack.c.l.b16 %v1043
    %v1183 = vunpack.c.l.b16 %v1044
    %v1184 = vunpack.c.l.b16 %v1045
    %v1185 = vunpack.c.l.b16 %v1046
    %v1186 = vunpack.c.l.b16 %v1047
    %v1187 = vunpack.c.l.b16 %v1048
    %v1188 = vunpack.c.l.b16 %v1049
    %v1189 = vunpack.c.l.b16 %v1050
    %v1190 = vunpack.c.l.b16 %v1051
    %v1191 = vunpack.c.l.b16 %v1052
    %v1192 = vunpack.c.l.b16 %v1053
    %v1193 = vunpack.c.l.b16 %v1054
    %v1194 = vunpack.c.l.b16 %v1055
    %v1195 = vunpack.c.l.b16 %v1056
    %v1196 = vunpack.c.l.b16 %v1057
    %v1197 = vunpack.c.l.b16 %v1058
    %v1198 = vunpack.c.l.b16 %v1059
    %v1199 = vunpack.c.l.b16 %v1060
    %v1200 = vunpack.c.l.b16 %v1061
    %v1201 = vunpack.c.l.b16 %v1062
    %v1202 = vunpack.c.l.b16 %v1063
    %v1203 = vunpack.c.l.b16 %v1064
    %v1204 = vunpack.c.l.b16 %v1065
    %v1205 = vunpack.c.l.b16 %v1066
    %v1206 = vunpack.c.l.b16 %v1067
    %v1207 = vunpack.c.l.b16 %v1068
    %v1208 = vunpack.c.l.b16 %v1069
    %v1209 = vunpack.c.l.b16 %v1070
    %v1210 = vunpack.c.l.b16 %v1071
    %v1211 = vunpack.c.l.b16 %v1072
    %v1212 = vunpack.c.l.b16 %v1073
    %v1213 = vunpack.c.l.b16 %v1074
    %v1214 = vunpack.c.l.b16 %v1075
    %v1215 = vunpack.c.l.b16 %v1076
    %v1216 = vunpack.c.l.b16 %v1077
    %v1217 = vunpack.c.l.b16 %v1078
    %v1218 = vunpack.c.l.b16 %v1079
    %v1219 = vunpack.c.l.b16 %v1080
    %v1220 = vunpack.c.l.b16 %v1081
    %v1221 = vunpack.c.l.b16 %v1082
    %v1222 = vunpack.c.l.b16 %v1083
    %v1223 = vunpack.c.l.b16 %v1084
    %v1224 = vunpack.c.l.b16 %v1085
    %v1225 = vunpack.c.l.b16 %v1086
    %v1226 = vunpack.c.l.b16 %v1087
    %v1227 = vpack.c.b16 %v1164, %v1163
    %v1228 = vpack.c.b16 %v1166, %v1165
    %v1229 = vpack.c.b16 %v1168, %v1167
    %v1230 = vpack.c.b16 %v1170, %v1169
    %v1231 = vpack.c.b16 %v1172, %v1171
    %v1232 = vpack.c.b16 %v1174, %v1173
    %v1233 = vpack.c.b16 %v1176, %v1175
    %v1234 = vpack.c.b16 %v1178, %v1177
    %v1235 = vpack.c.b16 %v1180, %v1179
    %v1236 = vpack.c.b16 %v1182, %v1181
    %v1237 = vpack.c.b16 %v1184, %v1183
    %v1238 = vpack.c.b16 %v1186, %v1185
    %v1239 = vpack.c.b16 %v1188, %v1187
    %v1240 = vpack.c.b16 %v1190, %v1189
    %v1241 = vpack.c.b16 %v1192, %v1191
    %v1242 = vpack.c.b16 %v1194, %v1193
    %v1243 = vpack.c.b16 %v1196, %v1195
    %v1244 = vpack.c.b16 %v1198, %v1197
    %v1245 = vpack.c.b16 %v1200, %v1199
    %v1246 = vpack.c.b16 %v1202, %v1201
    %v1247 = vpack.c.b16 %v1204, %v1203
    %v1248 = vpack.c.b16 %v1206, %v1205
    %v1249 = vpack.c.b16 %v1208, %v1207
    %v1250 = vpack.c.b16 %v1210, %v1209
    %v1251 = vpack.c.b16 %v1212, %v1211
    %v1252 = vpack.c.b16 %v1214, %v1213
    %v1253 = vpack.c.b16 %v1216, %v1215
    %v1254 = vpack.c.b16 %v1218, %v1217
    %v1255 = vpack.c.b16 %v1220, %v1219
    %v1256 = vpack.c.b16 %v1222, %v1221
    %v1257 = vpack.c.b16 %v1224, %v1223
    %v1258 = vpack.c.b16 %v1226, %v1225
    %1291 = vmatprep.subr.bf16.mxu0 0
    %1292 = vmatpush1.bf16.msra.mxu0 %v1227
    %1293 = vmatprep.subr.bf16.mxu0 0
    %1294 = vmatpush1.bf16.msra.mxu0 %v1228
    %1295 = vmatprep.subr.bf16.mxu0 0
    %1296 = vmatpush1.bf16.msra.mxu0 %v1229
    %1297 = vmatprep.subr.bf16.mxu0 0
    %1298 = vmatpush1.bf16.msra.mxu0 %v1230
    %1299 = vmatprep.subr.bf16.mxu0 0
    %1300 = vmatpush1.bf16.msra.mxu0 %v1231
    %1301 = vmatprep.subr.bf16.mxu0 0
    %1302 = vmatpush1.bf16.msra.mxu0 %v1232
    %1303 = vmatprep.subr.bf16.mxu0 0
    %1304 = vmatpush1.bf16.msra.mxu0 %v1233
    %1305 = vmatprep.subr.bf16.mxu0 0
    %1306 = vmatpush1.bf16.msra.mxu0 %v1234
    %1307 = vmatprep.subr.bf16.mxu0 0
    %1308 = vmatpush1.bf16.msra.mxu0 %v1235
    %1309 = vmatprep.subr.bf16.mxu0 0
    %1310 = vmatpush1.bf16.msra.mxu0 %v1236
    %1311 = vmatprep.subr.bf16.mxu0 0
    %1312 = vmatpush1.bf16.msra.mxu0 %v1237
    %1313 = vmatprep.subr.bf16.mxu0 0
    %1314 = vmatpush1.bf16.msra.mxu0 %v1238
    %1315 = vmatprep.subr.bf16.mxu0 0
    %1316 = vmatpush1.bf16.msra.mxu0 %v1239
    %1317 = vmatprep.subr.bf16.mxu0 0
    %1318 = vmatpush1.bf16.msra.mxu0 %v1240
    %1319 = vmatprep.subr.bf16.mxu0 0
    %1320 = vmatpush1.bf16.msra.mxu0 %v1241
    %1321 = vmatprep.subr.bf16.mxu0 0
    %1322 = vmatpush1.bf16.msra.mxu0 %v1242
    %1323 = vmatprep.mubr.bf16.mxu0 %v1089
    %1324 = vmatmul.mubr.bf16.gmra.mrb[0].mxu0 %v1088
    %v1325 = vpop.f32.mrb[0].mxu0
    %v1326 = vadd.f32 %v1097, %v1325
    %v1327 = vpop.f32.mrb[0].mxu0
    %v1328 = vpop.f32.mrb[0].mxu0
    %v1329 = vadd.f32 %v1097, %v1328
    %v1330 = vpop.f32.mrb[0].mxu0
    %1331 = vdwg.mxu0
    %1332 = vmatprep.subr.bf16.mxu0 0
    %1333 = vmatpush1.bf16.msra.mxu0 %v1243
    %1334 = vmatprep.subr.bf16.mxu0 0
    %1335 = vmatpush1.bf16.msra.mxu0 %v1244
    %1336 = vmatprep.subr.bf16.mxu0 0
    %1337 = vmatpush1.bf16.msra.mxu0 %v1245
    %1338 = vmatprep.subr.bf16.mxu0 0
    %1339 = vmatpush1.bf16.msra.mxu0 %v1246
    %1340 = vmatprep.subr.bf16.mxu0 0
    %1341 = vmatpush1.bf16.msra.mxu0 %v1247
    %1342 = vmatprep.subr.bf16.mxu0 0
    %1343 = vmatpush1.bf16.msra.mxu0 %v1248
    %1344 = vmatprep.subr.bf16.mxu0 0
    %1345 = vmatpush1.bf16.msra.mxu0 %v1249
    %1346 = vmatprep.subr.bf16.mxu0 0
    %1347 = vmatpush1.bf16.msra.mxu0 %v1250
    %1348 = vmatprep.subr.bf16.mxu0 0
    %1349 = vmatpush1.bf16.msra.mxu0 %v1251
    %1350 = vmatprep.subr.bf16.mxu0 0
    %1351 = vmatpush1.bf16.msra.mxu0 %v1252
    %1352 = vmatprep.subr.bf16.mxu0 0
    %1353 = vmatpush1.bf16.msra.mxu0 %v1253
    %1354 = vmatprep.subr.bf16.mxu0 0
    %1355 = vmatpush1.bf16.msra.mxu0 %v1254
    %1356 = vmatprep.subr.bf16.mxu0 0
    %1357 = vmatpush1.bf16.msra.mxu0 %v1255
    %1358 = vmatprep.subr.bf16.mxu0 0
    %1359 = vmatpush1.bf16.msra.mxu0 %v1256
    %1360 = vmatprep.subr.bf16.mxu0 0
    %1361 = vmatpush1.bf16.msra.mxu0 %v1257
    %1362 = vmatprep.subr.bf16.mxu0 0
    %1363 = vmatpush1.bf16.msra.mxu0 %v1258
    %1364 = vmatprep.mubr.bf16.mxu0 %v1091
    %1365 = vmatmul.mubr.bf16.gmra.mrb[0].mxu0 %v1090
    %v1366 = vpop.f32.mrb[0].mxu0
    %v1367 = vadd.f32 %v1326, %v1366
    %v1368 = vpop.f32.mrb[0].mxu0
    %v1369 = vpop.f32.mrb[0].mxu0
    %v1370 = vadd.f32 %v1329, %v1369
    %v1371 = vpop.f32.mrb[0].mxu0
    %1372 = vdwg.mxu0
    %v1373 = vadd.f32 %v713, %v1367
    %v1374 = vadd.f32 %v714, %v1370
    %v1375 = vld [vmem:[%s14] sm:$0x1]
    %v1376 = vld [vmem:[%s15] sm:$0x1]
    %1377 = vadd.xlane.f32.xlu0 %v1373
    %v1378 = vpop.xlane.xlu0 %1377
    %1379 = vadd.xlane.f32.xlu0 %v1374
    %v1380 = vpop.xlane.xlu0 %1379
    %v1381 = vmul.f32 %v1378, %v676
    %v1382 = vmul.f32 %v1380, %v676
    %v1383 = vmul.f32 %v1373, %v1373
    %v1384 = vmul.f32 %v1374, %v1374
    %1385 = vadd.xlane.f32.xlu0 %v1383
    %v1386 = vpop.xlane.xlu0 %1385
    %1387 = vadd.xlane.f32.xlu0 %v1384
    %v1388 = vpop.xlane.xlu0 %1387
    %v1389 = vmul.f32 %v1386, %v676
    %v1390 = vmul.f32 %v1388, %v676
    %v1391 = vmul.f32 %v1381, %v1381
    %v1392 = vmul.f32 %v1382, %v1382
    %v1393 = vsub.f32 %v1389, %v1391
    %v1394 = vsub.f32 %v1390, %v1392
    %v1395 = vsub.f32 %v1373, %v1381
    %v1396 = vsub.f32 %v1374, %v1382
    %v1397 = vadd.f32 %v1393, 1e-05
    %v1398 = vadd.f32 %v1394, 1e-05
    %v1399 = vrsqrt.pop %v1397
    %v1400 = vrsqrt.pop %v1398
    %v1401 = vmul.f32 %v1395, %v1399
    %v1402 = vmul.f32 %v1396, %v1400
    %v1404 = vlaneseq
    %v1405 = vshrl.u32 %v1404, 7
    %v1406 = vsub.s32 0, %v1405
    %v1407 = vrot.slane %v1375, %v1406
    %v1409 = vmul.f32 %v1401, %v1407
    %v1410 = vmul.f32 %v1402, %v1407
    %v1412 = vlaneseq
    %v1413 = vshrl.u32 %v1412, 7
    %v1414 = vsub.s32 0, %v1413
    %v1415 = vrot.slane %v1376, %v1414
    %v1417 = vadd.f32 %v1409, %v1415
    %v1418 = vadd.f32 %v1410, %v1415
    %s1419 = scalar_lea.vmem [#allocation2], 192
    %v1420 = vld [vmem:[%s1419] sm:$0xff]
    %v1421 = vld [vmem:[%s1419 + $0x8] sm:$0xf]
    %v1422 = vld [vmem:[%s1419 + $0xc] sm:$0xff]
    %v1423 = vld [vmem:[%s1419 + $0x14] sm:$0xf]
    %v1424 = vld [vmem:[%s1419 + $0x18] sm:$0xff]
    %v1425 = vld [vmem:[%s1419 + $0x20] sm:$0xf]
    %v1426 = vld [vmem:[%s1419 + $0x24] sm:$0xff]
    %v1427 = vld [vmem:[%s1419 + $0x2c] sm:$0xf]
    %v1428 = vld [vmem:[%s1419 + $0x30] sm:$0xff]
    %v1429 = vld [vmem:[%s1419 + $0x38] sm:$0xf]
    %v1430 = vld [vmem:[%s1419 + $0x3c] sm:$0xff]
    %v1431 = vld [vmem:[%s1419 + $0x44] sm:$0xf]
    %v1432 = vld [vmem:[%s1419 + $0x48] sm:$0xff]
    %v1433 = vld [vmem:[%s1419 + $0x50] sm:$0xf]
    %v1434 = vld [vmem:[%s1419 + $0x54] sm:$0xff]
    %v1435 = vld [vmem:[%s1419 + $0x5c] sm:$0xf]
    %v1436 = vld [vmem:[%s1419 + $0x60] sm:$0xff]
    %v1437 = vld [vmem:[%s1419 + $0x68] sm:$0xf]
    %v1438 = vld [vmem:[%s1419 + $0x6c] sm:$0xff]
    %v1439 = vld [vmem:[%s1419 + $0x74] sm:$0xf]
    %v1440 = vld [vmem:[%s1419 + $0x78] sm:$0xff]
    %v1441 = vld [vmem:[%s1419 + $0x80] sm:$0xf]
    %v1442 = vld [vmem:[%s1419 + $0x84] sm:$0xff]
    %v1443 = vld [vmem:[%s1419 + $0x8c] sm:$0xf]
    %v1444 = vld [vmem:[%s1419 + $0x90] sm:$0xff]
    %v1445 = vld [vmem:[%s1419 + $0x98] sm:$0xf]
    %v1446 = vld [vmem:[%s1419 + $0x9c] sm:$0xff]
    %v1447 = vld [vmem:[%s1419 + $0xa4] sm:$0xf]
    %v1448 = vld [vmem:[%s1419 + $0xa8] sm:$0xff]
    %v1449 = vld [vmem:[%s1419 + $0xb0] sm:$0xf]
    %v1450 = vld [vmem:[%s1419 + $0xb4] sm:$0xff]
    %v1451 = vld [vmem:[%s1419 + $0xbc] sm:$0xf]
    %v1452 = vpack.c.bf16 %v1418, %v1417
    %s1453 = scalar_lea.vmem %s5, 3
    %v1454 = vld [vmem:[%s1453] sm:$0x7]
    %v1456 = vlaneseq
    %v1457 = vshrl.u32 %v1456, 7
    %v1458 = vsub.s32 0, %v1457
    %v1459 = vrot.slane %v1454, %v1458
    %v1460 = vlaneseq
    %v1461 = vshrl.u32 %v1460, 7
    %v1462 = vsub.s32 1, %v1461
    %v1463 = vrot.slane %v1454, %v1462
    %v1464 = vlaneseq
    %v1465 = vshrl.u32 %v1464, 7
    %v1466 = vsub.s32 2, %v1465
    %v1467 = vrot.slane %v1454, %v1466
    %v1503 = vunpack.c.l.b16 %v1420
    %v1504 = vunpack.c.h.b16 %v1420
    %v1505 = vunpack.c.l.b16 %v1421
    %v1506 = vunpack.c.l.b16 %v1422
    %v1507 = vunpack.c.h.b16 %v1422
    %v1508 = vunpack.c.l.b16 %v1423
    %v1509 = vunpack.c.l.b16 %v1424
    %v1510 = vunpack.c.h.b16 %v1424
    %v1511 = vunpack.c.l.b16 %v1425
    %v1512 = vunpack.c.l.b16 %v1426
    %v1513 = vunpack.c.h.b16 %v1426
    %v1514 = vunpack.c.l.b16 %v1427
    %v1515 = vunpack.c.l.b16 %v1428
    %v1516 = vunpack.c.h.b16 %v1428
    %v1517 = vunpack.c.l.b16 %v1429
    %v1518 = vunpack.c.l.b16 %v1430
    %v1519 = vunpack.c.h.b16 %v1430
    %v1520 = vunpack.c.l.b16 %v1431
    %v1521 = vunpack.c.l.b16 %v1432
    %v1522 = vunpack.c.h.b16 %v1432
    %v1523 = vunpack.c.l.b16 %v1433
    %v1524 = vunpack.c.l.b16 %v1434
    %v1525 = vunpack.c.h.b16 %v1434
    %v1526 = vunpack.c.l.b16 %v1435
    %v1527 = vunpack.c.l.b16 %v1436
    %v1528 = vunpack.c.h.b16 %v1436
    %v1529 = vunpack.c.l.b16 %v1437
    %v1530 = vunpack.c.l.b16 %v1438
    %v1531 = vunpack.c.h.b16 %v1438
    %v1532 = vunpack.c.l.b16 %v1439
    %v1533 = vunpack.c.l.b16 %v1440
    %v1534 = vunpack.c.h.b16 %v1440
    %v1535 = vunpack.c.l.b16 %v1441
    %v1536 = vunpack.c.l.b16 %v1442
    %v1537 = vunpack.c.h.b16 %v1442
    %v1538 = vunpack.c.l.b16 %v1443
    %v1539 = vunpack.c.l.b16 %v1444
    %v1540 = vunpack.c.h.b16 %v1444
    %v1541 = vunpack.c.l.b16 %v1445
    %v1542 = vunpack.c.l.b16 %v1446
    %v1543 = vunpack.c.h.b16 %v1446
    %v1544 = vunpack.c.l.b16 %v1447
    %v1545 = vunpack.c.l.b16 %v1448
    %v1546 = vunpack.c.h.b16 %v1448
    %v1547 = vunpack.c.l.b16 %v1449
    %v1548 = vunpack.c.l.b16 %v1450
    %v1549 = vunpack.c.h.b16 %v1450
    %v1550 = vunpack.c.l.b16 %v1451
    %v1551 = vpack.c.b16 %v1506, %v1503
    %v1552 = vpack.c.b16 %v1507, %v1504
    %v1553 = vpack.c.b16 %v1508, %v1505
    %v1554 = vpack.c.b16 %v1512, %v1509
    %v1555 = vpack.c.b16 %v1513, %v1510
    %v1556 = vpack.c.b16 %v1514, %v1511
    %v1557 = vpack.c.b16 %v1518, %v1515
    %v1558 = vpack.c.b16 %v1519, %v1516
    %v1559 = vpack.c.b16 %v1520, %v1517
    %v1560 = vpack.c.b16 %v1524, %v1521
    %v1561 = vpack.c.b16 %v1525, %v1522
    %v1562 = vpack.c.b16 %v1526, %v1523
    %v1563 = vpack.c.b16 %v1530, %v1527
    %v1564 = vpack.c.b16 %v1531, %v1528
    %v1565 = vpack.c.b16 %v1532, %v1529
    %v1566 = vpack.c.b16 %v1536, %v1533
    %v1567 = vpack.c.b16 %v1537, %v1534
    %v1568 = vpack.c.b16 %v1538, %v1535
    %v1569 = vpack.c.b16 %v1542, %v1539
    %v1570 = vpack.c.b16 %v1543, %v1540
    %v1571 = vpack.c.b16 %v1544, %v1541
    %v1572 = vpack.c.b16 %v1548, %v1545
    %v1573 = vpack.c.b16 %v1549, %v1546
    %v1574 = vpack.c.b16 %v1550, %v1547
    %1599 = vmatprep.subr.bf16.mxu0 %v1552
    %1600 = vmatpush1.bf16.msra.mxu0 %v1551
    %1601 = vmatprep.subr.bf16.mxu0 %v1555
    %1602 = vmatpush1.bf16.msra.mxu0 %v1554
    %1603 = vmatprep.subr.bf16.mxu0 %v1558
    %1604 = vmatpush1.bf16.msra.mxu0 %v1557
    %1605 = vmatprep.subr.bf16.mxu0 %v1561
    %1606 = vmatpush1.bf16.msra.mxu0 %v1560
    %1607 = vmatprep.subr.bf16.mxu0 %v1564
    %1608 = vmatpush1.bf16.msra.mxu0 %v1563
    %1609 = vmatprep.subr.bf16.mxu0 %v1567
    %1610 = vmatpush1.bf16.msra.mxu0 %v1566
    %1611 = vmatprep.subr.bf16.mxu0 %v1570
    %1612 = vmatpush1.bf16.msra.mxu0 %v1569
    %1613 = vmatprep.subr.bf16.mxu0 %v1573
    %1614 = vmatpush1.bf16.msra.mxu0 %v1572
    %1615 = vmatprep.subr.bf16.mxu0 0
    %1616 = vmatpush1.bf16.msra.mxu0 0
    %1617 = vmatprep.subr.bf16.mxu0 0
    %1618 = vmatpush1.bf16.msra.mxu0 0
    %1619 = vmatprep.subr.bf16.mxu0 0
    %1620 = vmatpush1.bf16.msra.mxu0 0
    %1621 = vmatprep.subr.bf16.mxu0 0
    %1622 = vmatpush1.bf16.msra.mxu0 0
    %1623 = vmatprep.subr.bf16.mxu0 0
    %1624 = vmatpush1.bf16.msra.mxu0 0
    %1625 = vmatprep.subr.bf16.mxu0 0
    %1626 = vmatpush1.bf16.msra.mxu0 0
    %1627 = vmatprep.subr.bf16.mxu0 0
    %1628 = vmatpush1.bf16.msra.mxu0 0
    %1629 = vmatprep.subr.bf16.mxu0 0
    %1630 = vmatpush1.bf16.msra.mxu0 0
    %1631 = vmatprep.mubr.bf16.mxu0 0
    %1632 = vmatmul.mubr.bf16.gmra.mrb[0].mxu0 %v1452
    %v1633 = vpop.f32.mrb[0].mxu0
    %v1634 = vadd.f32 %v1459, %v1633
    %v1635 = vpop.f32.mrb[0].mxu0
    %v1636 = vadd.f32 %v1463, %v1635
    %v1637 = vpop.f32.mrb[0].mxu0
    %v1638 = vadd.f32 %v1459, %v1637
    %v1639 = vpop.f32.mrb[0].mxu0
    %v1640 = vadd.f32 %v1463, %v1639
    %1641 = vdwg.mxu0
    %1642 = vmatprep.subr.bf16.mxu0 0
    %1643 = vmatpush1.bf16.msra.mxu0 %v1553
    %1644 = vmatprep.subr.bf16.mxu0 0
    %1645 = vmatpush1.bf16.msra.mxu0 %v1556
    %1646 = vmatprep.subr.bf16.mxu0 0
    %1647 = vmatpush1.bf16.msra.mxu0 %v1559
    %1648 = vmatprep.subr.bf16.mxu0 0
    %1649 = vmatpush1.bf16.msra.mxu0 %v1562
    %1650 = vmatprep.subr.bf16.mxu0 0
    %1651 = vmatpush1.bf16.msra.mxu0 %v1565
    %1652 = vmatprep.subr.bf16.mxu0 0
    %1653 = vmatpush1.bf16.msra.mxu0 %v1568
    %1654 = vmatprep.subr.bf16.mxu0 0
    %1655 = vmatpush1.bf16.msra.mxu0 %v1571
    %1656 = vmatprep.subr.bf16.mxu0 0
    %1657 = vmatpush1.bf16.msra.mxu0 %v1574
    %1658 = vmatprep.subr.bf16.mxu0 0
    %1659 = vmatpush1.bf16.msra.mxu0 0
    %1660 = vmatprep.subr.bf16.mxu0 0
    %1661 = vmatpush1.bf16.msra.mxu0 0
    %1662 = vmatprep.subr.bf16.mxu0 0
    %1663 = vmatpush1.bf16.msra.mxu0 0
    %1664 = vmatprep.subr.bf16.mxu0 0
    %1665 = vmatpush1.bf16.msra.mxu0 0
    %1666 = vmatprep.subr.bf16.mxu0 0
    %1667 = vmatpush1.bf16.msra.mxu0 0
    %1668 = vmatprep.subr.bf16.mxu0 0
    %1669 = vmatpush1.bf16.msra.mxu0 0
    %1670 = vmatprep.subr.bf16.mxu0 0
    %1671 = vmatpush1.bf16.msra.mxu0 0
    %1672 = vmatprep.subr.bf16.mxu0 0
    %1673 = vmatpush1.bf16.msra.mxu0 0
    %1674 = vmatprep.mubr.bf16.mxu0 0
    %1675 = vmatmul.mubr.bf16.gmra.mrb[0].mxu0 %v1452
    %v1676 = vpop.f32.mrb[0].mxu0
    %v1677 = vadd.f32 %v1467, %v1676
    %v1678 = vpop.f32.mrb[0].mxu0
    %v1679 = vpop.f32.mrb[0].mxu0
    %v1680 = vadd.f32 %v1467, %v1679
    %v1681 = vpop.f32.mrb[0].mxu0
    %1682 = vdwg.mxu0
    %v1683 = vsub.f32 %v1636, %v1640
    %v1684 = vsub.f32 %v1677, %v1680
    %v1685 = vmul.f32 %v1634, %v1683
    %v1686 = vmul.f32 %v1638, %v1683
    %v1687 = vpack.c.bf16 %v1686, %v1685
    %1688 = vmatprep.subr.bf16.mxu0 0
    %1689 = vmatpush1.bf16.msra.mxu0 %v434
    %1690 = vmatprep.subr.bf16.mxu0 0
    %1691 = vmatpush1.bf16.msra.mxu0 %v435
    %1692 = vmatprep.subr.bf16.mxu0 0
    %1693 = vmatpush1.bf16.msra.mxu0 %v436
    %1694 = vmatprep.subr.bf16.mxu0 0
    %1695 = vmatpush1.bf16.msra.mxu0 %v437
    %1696 = vmatprep.subr.bf16.mxu0 0
    %1697 = vmatpush1.bf16.msra.mxu0 %v438
    %1698 = vmatprep.subr.bf16.mxu0 0
    %1699 = vmatpush1.bf16.msra.mxu0 %v439
    %1700 = vmatprep.subr.bf16.mxu0 0
    %1701 = vmatpush1.bf16.msra.mxu0 %v440
    %1702 = vmatprep.subr.bf16.mxu0 0
    %1703 = vmatpush1.bf16.msra.mxu0 %v441
    %1704 = vmatprep.subr.bf16.mxu0 0
    %1705 = vmatpush1.bf16.msra.mxu0 0
    %1706 = vmatprep.subr.bf16.mxu0 0
    %1707 = vmatpush1.bf16.msra.mxu0 0
    %1708 = vmatprep.subr.bf16.mxu0 0
    %1709 = vmatpush1.bf16.msra.mxu0 0
    %1710 = vmatprep.subr.bf16.mxu0 0
    %1711 = vmatpush1.bf16.msra.mxu0 0
    %1712 = vmatprep.subr.bf16.mxu0 0
    %1713 = vmatpush1.bf16.msra.mxu0 0
    %1714 = vmatprep.subr.bf16.mxu0 0
    %1715 = vmatpush1.bf16.msra.mxu0 0
    %1716 = vmatprep.subr.bf16.mxu0 0
    %1717 = vmatpush1.bf16.msra.mxu0 0
    %1718 = vmatprep.subr.bf16.mxu0 0
    %1719 = vmatpush1.bf16.msra.mxu0 0
    %1720 = vmatprep.mubr.bf16.mxu0 0
    %1721 = vmatmul.mubr.bf16.gmra.mrb[0].mxu0 %v1687
    %v1722 = vpop.f32.mrb[0].mxu0
    %v1723 = vadd.f32 0.0, %v1722
    %v1724 = vpop.f32.mrb[0].mxu0
    %v1725 = vpop.f32.mrb[0].mxu0
    %v1726 = vadd.f32 0.0, %v1725
    %v1727 = vpop.f32.mrb[0].mxu0
    %1728 = vdwg.mxu0
    %v1729 = vsub.f32 0.0, %v1723
    %v1730 = vsub.f32 0.0, %v1726
    %v1731 = vmul.f32 %v1729, 1.442695
    %v1732 = vpow.pop %v1731
    %v1733 = vmul.f32 %v1730, 1.442695
    %v1734 = vpow.pop %v1733
    %v1735 = vadd.f32 %v1732, 1.0
    %v1736 = vadd.f32 %v1734, 1.0
    %v1737 = vrcp.pop %v1735
    %v1738 = vrcp.pop %v1736
    %v1739 = vpack.c.bf16 %v1738, %v1737
    %v1741 = vsel %vm502, %v1739, 0
    %1743 = vmatprep.subr.bf16.mxu0 0
    %1744 = vmatpush1.bf16.msra.mxu0 %v508
    %1745 = vmatprep.subr.bf16.mxu0 0
    %1746 = vmatpush1.bf16.msra.mxu0 0
    %1747 = vmatprep.subr.bf16.mxu0 0
    %1748 = vmatpush1.bf16.msra.mxu0 0
    %1749 = vmatprep.subr.bf16.mxu0 0
    %1750 = vmatpush1.bf16.msra.mxu0 0
    %1751 = vmatprep.subr.bf16.mxu0 0
    %1752 = vmatpush1.bf16.msra.mxu0 0
    %1753 = vmatprep.subr.bf16.mxu0 0
    %1754 = vmatpush1.bf16.msra.mxu0 0
    %1755 = vmatprep.subr.bf16.mxu0 0
    %1756 = vmatpush1.bf16.msra.mxu0 0
    %1757 = vmatprep.subr.bf16.mxu0 0
    %1758 = vmatpush1.bf16.msra.mxu0 0
    %1759 = vmatprep.subr.bf16.mxu0 0
    %1760 = vmatpush1.bf16.msra.mxu0 0
    %1761 = vmatprep.subr.bf16.mxu0 0
    %1762 = vmatpush1.bf16.msra.mxu0 0
    %1763 = vmatprep.subr.bf16.mxu0 0
    %1764 = vmatpush1.bf16.msra.mxu0 0
    %1765 = vmatprep.subr.bf16.mxu0 0
    %1766 = vmatpush1.bf16.msra.mxu0 0
    %1767 = vmatprep.subr.bf16.mxu0 0
    %1768 = vmatpush1.bf16.msra.mxu0 0
    %1769 = vmatprep.subr.bf16.mxu0 0
    %1770 = vmatpush1.bf16.msra.mxu0 0
    %1771 = vmatprep.subr.bf16.mxu0 0
    %1772 = vmatpush1.bf16.msra.mxu0 0
    %1773 = vmatprep.subr.bf16.mxu0 0
    %1774 = vmatpush1.bf16.msra.mxu0 0
    %1775 = vmatprep.mubr.bf16.mxu0 0
    %1776 = vmatmul.mubr.bf16.gmra.mrb[0].mxu0 %v1741
    %v1777 = vpop.f32.mrb[0].mxu0
    %v1778 = vadd.f32 0.0, %v1777
    %v1779 = vpop.f32.mrb[0].mxu0
    %v1780 = vpop.f32.mrb[0].mxu0
    %v1781 = vadd.f32 0.0, %v1780
    %v1782 = vpop.f32.mrb[0].mxu0
    %1783 = vdwg.mxu0
    %v1784 = vmul.f32 %v1778, %v1684
    %v1785 = vadd.f32 %v1680, %v1784
    %v1786 = vmul.f32 %v1781, %v1684
    %v1787 = vadd.f32 %v1680, %v1786
    %s1788 = scalar_lea.vmem [#allocation5], 64
    %v1789 = vld [vmem:[%s1788] sm:$0xf]
    %v1790 = vld [vmem:[%s1788 + $0x4] sm:$0xf]
    %v1791 = vld [vmem:[%s1788 + $0x8] sm:$0xf]
    %v1792 = vld [vmem:[%s1788 + $0xc] sm:$0xf]
    %v1793 = vld [vmem:[%s1788 + $0x10] sm:$0xf]
    %v1794 = vld [vmem:[%s1788 + $0x14] sm:$0xf]
    %v1795 = vld [vmem:[%s1788 + $0x18] sm:$0xf]
    %v1796 = vld [vmem:[%s1788 + $0x1c] sm:$0xf]
    %v1797 = vld [vmem:[%s1788 + $0x20] sm:$0xf]
    %v1798 = vld [vmem:[%s1788 + $0x24] sm:$0xf]
    %v1799 = vld [vmem:[%s1788 + $0x28] sm:$0xf]
    %v1800 = vld [vmem:[%s1788 + $0x2c] sm:$0xf]
    %v1801 = vld [vmem:[%s1788 + $0x30] sm:$0xf]
    %v1802 = vld [vmem:[%s1788 + $0x34] sm:$0xf]
    %v1803 = vld [vmem:[%s1788 + $0x38] sm:$0xf]
    %v1804 = vld [vmem:[%s1788 + $0x3c] sm:$0xf]
    %v1805 = vpack.c.bf16 %v1787, %v1785
    %s1806 = scalar_lea.vmem %s7, 1
    %v1807 = vld [vmem:[%s1806] sm:$0x1]
    %v1809 = vlaneseq
    %v1810 = vshrl.u32 %v1809, 7
    %v1811 = vsub.s32 0, %v1810
    %v1812 = vrot.slane %v1807, %v1811
    %v1830 = vunpack.c.l.b16 %v1789
    %v1831 = vunpack.c.l.b16 %v1790
    %v1832 = vunpack.c.l.b16 %v1791
    %v1833 = vunpack.c.l.b16 %v1792
    %v1834 = vunpack.c.l.b16 %v1793
    %v1835 = vunpack.c.l.b16 %v1794
    %v1836 = vunpack.c.l.b16 %v1795
    %v1837 = vunpack.c.l.b16 %v1796
    %v1838 = vunpack.c.l.b16 %v1797
    %v1839 = vunpack.c.l.b16 %v1798
    %v1840 = vunpack.c.l.b16 %v1799
    %v1841 = vunpack.c.l.b16 %v1800
    %v1842 = vunpack.c.l.b16 %v1801
    %v1843 = vunpack.c.l.b16 %v1802
    %v1844 = vunpack.c.l.b16 %v1803
    %v1845 = vunpack.c.l.b16 %v1804
    %v1846 = vpack.c.b16 %v1831, %v1830
    %v1847 = vpack.c.b16 %v1833, %v1832
    %v1848 = vpack.c.b16 %v1835, %v1834
    %v1849 = vpack.c.b16 %v1837, %v1836
    %v1850 = vpack.c.b16 %v1839, %v1838
    %v1851 = vpack.c.b16 %v1841, %v1840
    %v1852 = vpack.c.b16 %v1843, %v1842
    %v1853 = vpack.c.b16 %v1845, %v1844
    %1862 = vmatprep.subr.bf16.mxu0 0
    %1863 = vmatpush1.bf16.msra.mxu0 %v1846
    %1864 = vmatprep.subr.bf16.mxu0 0
    %1865 = vmatpush1.bf16.msra.mxu0 %v1847
    %1866 = vmatprep.subr.bf16.mxu0 0
    %1867 = vmatpush1.bf16.msra.mxu0 %v1848
    %1868 = vmatprep.subr.bf16.mxu0 0
    %1869 = vmatpush1.bf16.msra.mxu0 %v1849
    %1870 = vmatprep.subr.bf16.mxu0 0
    %1871 = vmatpush1.bf16.msra.mxu0 %v1850
    %1872 = vmatprep.subr.bf16.mxu0 0
    %1873 = vmatpush1.bf16.msra.mxu0 %v1851
    %1874 = vmatprep.subr.bf16.mxu0 0
    %1875 = vmatpush1.bf16.msra.mxu0 %v1852
    %1876 = vmatprep.subr.bf16.mxu0 0
    %1877 = vmatpush1.bf16.msra.mxu0 %v1853
    %1878 = vmatprep.subr.bf16.mxu0 0
    %1879 = vmatpush1.bf16.msra.mxu0 0
    %1880 = vmatprep.subr.bf16.mxu0 0
    %1881 = vmatpush1.bf16.msra.mxu0 0
    %1882 = vmatprep.subr.bf16.mxu0 0
    %1883 = vmatpush1.bf16.msra.mxu0 0
    %1884 = vmatprep.subr.bf16.mxu0 0
    %1885 = vmatpush1.bf16.msra.mxu0 0
    %1886 = vmatprep.subr.bf16.mxu0 0
    %1887 = vmatpush1.bf16.msra.mxu0 0
    %1888 = vmatprep.subr.bf16.mxu0 0
    %1889 = vmatpush1.bf16.msra.mxu0 0
    %1890 = vmatprep.subr.bf16.mxu0 0
    %1891 = vmatpush1.bf16.msra.mxu0 0
    %1892 = vmatprep.subr.bf16.mxu0 0
    %1893 = vmatpush1.bf16.msra.mxu0 0
    %1894 = vmatprep.mubr.bf16.mxu0 0
    %1895 = vmatmul.mubr.bf16.gmra.mrb[0].mxu0 %v1805
    %v1896 = vpop.f32.mrb[0].mxu0
    %v1897 = vadd.f32 %v1812, %v1896
    %v1898 = vpop.f32.mrb[0].mxu0
    %v1899 = vpop.f32.mrb[0].mxu0
    %v1900 = vadd.f32 %v1812, %v1899
    %v1901 = vpop.f32.mrb[0].mxu0
    %1902 = vdwg.mxu0
    %v1903 = vadd.f32 %v1417, %v1897
    %v1904 = vadd.f32 %v1418, %v1900
    %s1905 = scalar_lea.vmem %s8, 1
    %v1906 = vld [vmem:[%s1905] sm:$0x1]
    %s1907 = scalar_lea.vmem %s9, 1
    %v1908 = vld [vmem:[%s1907] sm:$0x1]
    %1909 = vadd.xlane.f32.xlu0 %v1903
    %v1910 = vpop.xlane.xlu0 %1909
    %1911 = vadd.xlane.f32.xlu0 %v1904
    %v1912 = vpop.xlane.xlu0 %1911
    %v1913 = vmul.f32 %v1910, %v676
    %v1914 = vmul.f32 %v1912, %v676
    %v1915 = vmul.f32 %v1903, %v1903
    %v1916 = vmul.f32 %v1904, %v1904
    %1917 = vadd.xlane.f32.xlu0 %v1915
    %v1918 = vpop.xlane.xlu0 %1917
    %1919 = vadd.xlane.f32.xlu0 %v1916
    %v1920 = vpop.xlane.xlu0 %1919
    %v1921 = vmul.f32 %v1918, %v676
    %v1922 = vmul.f32 %v1920, %v676
    %v1923 = vmul.f32 %v1913, %v1913
    %v1924 = vmul.f32 %v1914, %v1914
    %v1925 = vsub.f32 %v1921, %v1923
    %v1926 = vsub.f32 %v1922, %v1924
    %v1927 = vsub.f32 %v1903, %v1913
    %v1928 = vsub.f32 %v1904, %v1914
    %v1929 = vadd.f32 %v1925, 1e-05
    %v1930 = vadd.f32 %v1926, 1e-05
    %v1931 = vrsqrt.pop %v1929
    %v1932 = vrsqrt.pop %v1930
    %v1933 = vmul.f32 %v1927, %v1931
    %v1934 = vmul.f32 %v1928, %v1932
    %v1936 = vlaneseq
    %v1937 = vshrl.u32 %v1936, 7
    %v1938 = vsub.s32 0, %v1937
    %v1939 = vrot.slane %v1906, %v1938
    %v1941 = vmul.f32 %v1933, %v1939
    %v1942 = vmul.f32 %v1934, %v1939
    %v1944 = vlaneseq
    %v1945 = vshrl.u32 %v1944, 7
    %v1946 = vsub.s32 0, %v1945
    %v1947 = vrot.slane %v1908, %v1946
    %v1949 = vadd.f32 %v1941, %v1947
    %v1950 = vadd.f32 %v1942, %v1947
    %s1951 = scalar_lea.vmem [#allocation7], 256
    %v1952 = vld [vmem:[%s1951] sm:$0xff]
    %v1953 = vld [vmem:[%s1951 + $0x8] sm:$0xff]
    %v1954 = vld [vmem:[%s1951 + $0x10] sm:$0xff]
    %v1955 = vld [vmem:[%s1951 + $0x18] sm:$0xff]
    %v1956 = vld [vmem:[%s1951 + $0x20] sm:$0xff]
    %v1957 = vld [vmem:[%s1951 + $0x28] sm:$0xff]
    %v1958 = vld [vmem:[%s1951 + $0x30] sm:$0xff]
    %v1959 = vld [vmem:[%s1951 + $0x38] sm:$0xff]
    %v1960 = vld [vmem:[%s1951 + $0x40] sm:$0xff]
    %v1961 = vld [vmem:[%s1951 + $0x48] sm:$0xff]
    %v1962 = vld [vmem:[%s1951 + $0x50] sm:$0xff]
    %v1963 = vld [vmem:[%s1951 + $0x58] sm:$0xff]
    %v1964 = vld [vmem:[%s1951 + $0x60] sm:$0xff]
    %v1965 = vld [vmem:[%s1951 + $0x68] sm:$0xff]
    %v1966 = vld [vmem:[%s1951 + $0x70] sm:$0xff]
    %v1967 = vld [vmem:[%s1951 + $0x78] sm:$0xff]
    %v1968 = vld [vmem:[%s1951 + $0x80] sm:$0xff]
    %v1969 = vld [vmem:[%s1951 + $0x88] sm:$0xff]
    %v1970 = vld [vmem:[%s1951 + $0x90] sm:$0xff]
    %v1971 = vld [vmem:[%s1951 + $0x98] sm:$0xff]
    %v1972 = vld [vmem:[%s1951 + $0xa0] sm:$0xff]
    %v1973 = vld [vmem:[%s1951 + $0xa8] sm:$0xff]
    %v1974 = vld [vmem:[%s1951 + $0xb0] sm:$0xff]
    %v1975 = vld [vmem:[%s1951 + $0xb8] sm:$0xff]
    %v1976 = vld [vmem:[%s1951 + $0xc0] sm:$0xff]
    %v1977 = vld [vmem:[%s1951 + $0xc8] sm:$0xff]
    %v1978 = vld [vmem:[%s1951 + $0xd0] sm:$0xff]
    %v1979 = vld [vmem:[%s1951 + $0xd8] sm:$0xff]
    %v1980 = vld [vmem:[%s1951 + $0xe0] sm:$0xff]
    %v1981 = vld [vmem:[%s1951 + $0xe8] sm:$0xff]
    %v1982 = vld [vmem:[%s1951 + $0xf0] sm:$0xff]
    %v1983 = vld [vmem:[%s1951 + $0xf8] sm:$0xff]
    %v1984 = vpack.c.bf16 %v1950, %v1949
    %s1985 = scalar_lea.vmem %s11, 4
    %v1986 = vld [vmem:[%s1985] sm:$0xf]
    %v1988 = vlaneseq
    %v1989 = vshrl.u32 %v1988, 7
    %v1990 = vsub.s32 0, %v1989
    %v1991 = vrot.slane %v1986, %v1990
    %v1992 = vlaneseq
    %v1993 = vshrl.u32 %v1992, 7
    %v1994 = vsub.s32 1, %v1993
    %v1995 = vrot.slane %v1986, %v1994
    %v1996 = vlaneseq
    %v1997 = vshrl.u32 %v1996, 7
    %v1998 = vsub.s32 2, %v1997
    %v1999 = vrot.slane %v1986, %v1998
    %v2000 = vlaneseq
    %v2001 = vshrl.u32 %v2000, 7
    %v2002 = vsub.s32 3, %v2001
    %v2003 = vrot.slane %v1986, %v2002
    %v2040 = vunpack.c.l.b16 %v1952
    %v2041 = vunpack.c.h.b16 %v1952
    %v2042 = vunpack.c.l.b16 %v1953
    %v2043 = vunpack.c.h.b16 %v1953
    %v2044 = vunpack.c.l.b16 %v1954
    %v2045 = vunpack.c.h.b16 %v1954
    %v2046 = vunpack.c.l.b16 %v1955
    %v2047 = vunpack.c.h.b16 %v1955
    %v2048 = vunpack.c.l.b16 %v1956
    %v2049 = vunpack.c.h.b16 %v1956
    %v2050 = vunpack.c.l.b16 %v1957
    %v2051 = vunpack.c.h.b16 %v1957
    %v2052 = vunpack.c.l.b16 %v1958
    %v2053 = vunpack.c.h.b16 %v1958
    %v2054 = vunpack.c.l.b16 %v1959
    %v2055 = vunpack.c.h.b16 %v1959
    %v2056 = vunpack.c.l.b16 %v1960
    %v2057 = vunpack.c.h.b16 %v1960
    %v2058 = vunpack.c.l.b16 %v1961
    %v2059 = vunpack.c.h.b16 %v1961
    %v2060 = vunpack.c.l.b16 %v1962
    %v2061 = vunpack.c.h.b16 %v1962
    %v2062 = vunpack.c.l.b16 %v1963
    %v2063 = vunpack.c.h.b16 %v1963
    %v2064 = vunpack.c.l.b16 %v1964
    %v2065 = vunpack.c.h.b16 %v1964
    %v2066 = vunpack.c.l.b16 %v1965
    %v2067 = vunpack.c.h.b16 %v1965
    %v2068 = vunpack.c.l.b16 %v1966
    %v2069 = vunpack.c.h.b16 %v1966
    %v2070 = vunpack.c.l.b16 %v1967
    %v2071 = vunpack.c.h.b16 %v1967
    %v2072 = vunpack.c.l.b16 %v1968
    %v2073 = vunpack.c.h.b16 %v1968
    %v2074 = vunpack.c.l.b16 %v1969
    %v2075 = vunpack.c.h.b16 %v1969
    %v2076 = vunpack.c.l.b16 %v1970
    %v2077 = vunpack.c.h.b16 %v1970
    %v2078 = vunpack.c.l.b16 %v1971
    %v2079 = vunpack.c.h.b16 %v1971
    %v2080 = vunpack.c.l.b16 %v1972
    %v2081 = vunpack.c.h.b16 %v1972
    %v2082 = vunpack.c.l.b16 %v1973
    %v2083 = vunpack.c.h.b16 %v1973
    %v2084 = vunpack.c.l.b16 %v1974
    %v2085 = vunpack.c.h.b16 %v1974
    %v2086 = vunpack.c.l.b16 %v1975
    %v2087 = vunpack.c.h.b16 %v1975
    %v2088 = vunpack.c.l.b16 %v1976
    %v2089 = vunpack.c.h.b16 %v1976
    %v2090 = vunpack.c.l.b16 %v1977
    %v2091 = vunpack.c.h.b16 %v1977
    %v2092 = vunpack.c.l.b16 %v1978
    %v2093 = vunpack.c.h.b16 %v1978
    %v2094 = vunpack.c.l.b16 %v1979
    %v2095 = vunpack.c.h.b16 %v1979
    %v2096 = vunpack.c.l.b16 %v1980
    %v2097 = vunpack.c.h.b16 %v1980
    %v2098 = vunpack.c.l.b16 %v1981
    %v2099 = vunpack.c.h.b16 %v1981
    %v2100 = vunpack.c.l.b16 %v1982
    %v2101 = vunpack.c.h.b16 %v1982
    %v2102 = vunpack.c.l.b16 %v1983
    %v2103 = vunpack.c.h.b16 %v1983
    %v2104 = vpack.c.b16 %v2044, %v2040
    %v2105 = vpack.c.b16 %v2045, %v2041
    %v2106 = vpack.c.b16 %v2046, %v2042
    %v2107 = vpack.c.b16 %v2047, %v2043
    %v2108 = vpack.c.b16 %v2052, %v2048
    %v2109 = vpack.c.b16 %v2053, %v2049
    %v2110 = vpack.c.b16 %v2054, %v2050
    %v2111 = vpack.c.b16 %v2055, %v2051
    %v2112 = vpack.c.b16 %v2060, %v2056
    %v2113 = vpack.c.b16 %v2061, %v2057
    %v2114 = vpack.c.b16 %v2062, %v2058
    %v2115 = vpack.c.b16 %v2063, %v2059
    %v2116 = vpack.c.b16 %v2068, %v2064
    %v2117 = vpack.c.b16 %v2069, %v2065
    %v2118 = vpack.c.b16 %v2070, %v2066
    %v2119 = vpack.c.b16 %v2071, %v2067
    %v2120 = vpack.c.b16 %v2076, %v2072
    %v2121 = vpack.c.b16 %v2077, %v2073
    %v2122 = vpack.c.b16 %v2078, %v2074
    %v2123 = vpack.c.b16 %v2079, %v2075
    %v2124 = vpack.c.b16 %v2084, %v2080
    %v2125 = vpack.c.b16 %v2085, %v2081
    %v2126 = vpack.c.b16 %v2086, %v2082
    %v2127 = vpack.c.b16 %v2087, %v2083
    %v2128 = vpack.c.b16 %v2092, %v2088
    %v2129 = vpack.c.b16 %v2093, %v2089
    %v2130 = vpack.c.b16 %v2094, %v2090
    %v2131 = vpack.c.b16 %v2095, %v2091
    %v2132 = vpack.c.b16 %v2100, %v2096
    %v2133 = vpack.c.b16 %v2101, %v2097
    %v2134 = vpack.c.b16 %v2102, %v2098
    %v2135 = vpack.c.b16 %v2103, %v2099
    %2168 = vmatprep.subr.bf16.mxu0 %v2105
    %2169 = vmatpush1.bf16.msra.mxu0 %v2104
    %2170 = vmatprep.subr.bf16.mxu0 %v2109
    %2171 = vmatpush1.bf16.msra.mxu0 %v2108
    %2172 = vmatprep.subr.bf16.mxu0 %v2113
    %2173 = vmatpush1.bf16.msra.mxu0 %v2112
    %2174 = vmatprep.subr.bf16.mxu0 %v2117
    %2175 = vmatpush1.bf16.msra.mxu0 %v2116
    %2176 = vmatprep.subr.bf16.mxu0 %v2121
    %2177 = vmatpush1.bf16.msra.mxu0 %v2120
    %2178 = vmatprep.subr.bf16.mxu0 %v2125
    %2179 = vmatpush1.bf16.msra.mxu0 %v2124
    %2180 = vmatprep.subr.bf16.mxu0 %v2129
    %2181 = vmatpush1.bf16.msra.mxu0 %v2128
    %2182 = vmatprep.subr.bf16.mxu0 %v2133
    %2183 = vmatpush1.bf16.msra.mxu0 %v2132
    %2184 = vmatprep.subr.bf16.mxu0 0
    %2185 = vmatpush1.bf16.msra.mxu0 0
    %2186 = vmatprep.subr.bf16.mxu0 0
    %2187 = vmatpush1.bf16.msra.mxu0 0
    %2188 = vmatprep.subr.bf16.mxu0 0
    %2189 = vmatpush1.bf16.msra.mxu0 0
    %2190 = vmatprep.subr.bf16.mxu0 0
    %2191 = vmatpush1.bf16.msra.mxu0 0
    %2192 = vmatprep.subr.bf16.mxu0 0
    %2193 = vmatpush1.bf16.msra.mxu0 0
    %2194 = vmatprep.subr.bf16.mxu0 0
    %2195 = vmatpush1.bf16.msra.mxu0 0
    %2196 = vmatprep.subr.bf16.mxu0 0
    %2197 = vmatpush1.bf16.msra.mxu0 0
    %2198 = vmatprep.subr.bf16.mxu0 0
    %2199 = vmatpush1.bf16.msra.mxu0 0
    %2200 = vmatprep.mubr.bf16.mxu0 0
    %2201 = vmatmul.mubr.bf16.gmra.mrb[0].mxu0 %v1984
    %v2202 = vpop.f32.mrb[0].mxu0
    %v2203 = vadd.f32 %v1991, %v2202
    %v2204 = vpop.f32.mrb[0].mxu0
    %v2205 = vadd.f32 %v1995, %v2204
    %v2206 = vpop.f32.mrb[0].mxu0
    %v2207 = vadd.f32 %v1991, %v2206
    %v2208 = vpop.f32.mrb[0].mxu0
    %v2209 = vadd.f32 %v1995, %v2208
    %2210 = vdwg.mxu0
    %2211 = vmatprep.subr.bf16.mxu0 %v2107
    %2212 = vmatpush1.bf16.msra.mxu0 %v2106
    %2213 = vmatprep.subr.bf16.mxu0 %v2111
    %2214 = vmatpush1.bf16.msra.mxu0 %v2110
    %2215 = vmatprep.subr.bf16.mxu0 %v2115
    %2216 = vmatpush1.bf16.msra.mxu0 %v2114
    %2217 = vmatprep.subr.bf16.mxu0 %v2119
    %2218 = vmatpush1.bf16.msra.mxu0 %v2118
    %2219 = vmatprep.subr.bf16.mxu0 %v2123
    %2220 = vmatpush1.bf16.msra.mxu0 %v2122
    %2221 = vmatprep.subr.bf16.mxu0 %v2127
    %2222 = vmatpush1.bf16.msra.mxu0 %v2126
    %2223 = vmatprep.subr.bf16.mxu0 %v2131
    %2224 = vmatpush1.bf16.msra.mxu0 %v2130
    %2225 = vmatprep.subr.bf16.mxu0 %v2135
    %2226 = vmatpush1.bf16.msra.mxu0 %v2134
    %2227 = vmatprep.subr.bf16.mxu0 0
    %2228 = vmatpush1.bf16.msra.mxu0 0
    %2229 = vmatprep.subr.bf16.mxu0 0
    %2230 = vmatpush1.bf16.msra.mxu0 0
    %2231 = vmatprep.subr.bf16.mxu0 0
    %2232 = vmatpush1.bf16.msra.mxu0 0
    %2233 = vmatprep.subr.bf16.mxu0 0
    %2234 = vmatpush1.bf16.msra.mxu0 0
    %2235 = vmatprep.subr.bf16.mxu0 0
    %2236 = vmatpush1.bf16.msra.mxu0 0
    %2237 = vmatprep.subr.bf16.mxu0 0
    %2238 = vmatpush1.bf16.msra.mxu0 0
    %2239 = vmatprep.subr.bf16.mxu0 0
    %2240 = vmatpush1.bf16.msra.mxu0 0
    %2241 = vmatprep.subr.bf16.mxu0 0
    %2242 = vmatpush1.bf16.msra.mxu0 0
    %2243 = vmatprep.mubr.bf16.mxu0 0
    %2244 = vmatmul.mubr.bf16.gmra.mrb[0].mxu0 %v1984
    %v2245 = vpop.f32.mrb[0].mxu0
    %v2246 = vadd.f32 %v1999, %v2245
    %v2247 = vpop.f32.mrb[0].mxu0
    %v2248 = vadd.f32 %v2003, %v2247
    %v2249 = vpop.f32.mrb[0].mxu0
    %v2250 = vadd.f32 %v1999, %v2249
    %v2251 = vpop.f32.mrb[0].mxu0
    %v2252 = vadd.f32 %v2003, %v2251
    %2253 = vdwg.mxu0
    %v2254 = vmax.f32 %v2203, 0.0
    %v2255 = vmax.f32 %v2205, 0.0
    %v2256 = vmax.f32 %v2246, 0.0
    %v2257 = vmax.f32 %v2248, 0.0
    %v2258 = vmax.f32 %v2207, 0.0
    %v2259 = vmax.f32 %v2209, 0.0
    %v2260 = vmax.f32 %v2250, 0.0
    %v2261 = vmax.f32 %v2252, 0.0
    %s2262 = scalar_lea.vmem [#allocation8], 256
    %v2263 = vld [vmem:[%s2262] sm:$0xf]
    %v2264 = vld [vmem:[%s2262 + $0x4] sm:$0xf]
    %v2265 = vld [vmem:[%s2262 + $0x8] sm:$0xf]
    %v2266 = vld [vmem:[%s2262 + $0xc] sm:$0xf]
    %v2267 = vld [vmem:[%s2262 + $0x10] sm:$0xf]
    %v2268 = vld [vmem:[%s2262 + $0x14] sm:$0xf]
    %v2269 = vld [vmem:[%s2262 + $0x18] sm:$0xf]
    %v2270 = vld [vmem:[%s2262 + $0x1c] sm:$0xf]
    %v2271 = vld [vmem:[%s2262 + $0x20] sm:$0xf]
    %v2272 = vld [vmem:[%s2262 + $0x24] sm:$0xf]
    %v2273 = vld [vmem:[%s2262 + $0x28] sm:$0xf]
    %v2274 = vld [vmem:[%s2262 + $0x2c] sm:$0xf]
    %v2275 = vld [vmem:[%s2262 + $0x30] sm:$0xf]
    %v2276 = vld [vmem:[%s2262 + $0x34] sm:$0xf]
    %v2277 = vld [vmem:[%s2262 + $0x38] sm:$0xf]
    %v2278 = vld [vmem:[%s2262 + $0x3c] sm:$0xf]
    %v2279 = vld [vmem:[%s2262 + $0x40] sm:$0xf]
    %v2280 = vld [vmem:[%s2262 + $0x44] sm:$0xf]
    %v2281 = vld [vmem:[%s2262 + $0x48] sm:$0xf]
    %v2282 = vld [vmem:[%s2262 + $0x4c] sm:$0xf]
    %v2283 = vld [vmem:[%s2262 + $0x50] sm:$0xf]
    %v2284 = vld [vmem:[%s2262 + $0x54] sm:$0xf]
    %v2285 = vld [vmem:[%s2262 + $0x58] sm:$0xf]
    %v2286 = vld [vmem:[%s2262 + $0x5c] sm:$0xf]
    %v2287 = vld [vmem:[%s2262 + $0x60] sm:$0xf]
    %v2288 = vld [vmem:[%s2262 + $0x64] sm:$0xf]
    %v2289 = vld [vmem:[%s2262 + $0x68] sm:$0xf]
    %v2290 = vld [vmem:[%s2262 + $0x6c] sm:$0xf]
    %v2291 = vld [vmem:[%s2262 + $0x70] sm:$0xf]
    %v2292 = vld [vmem:[%s2262 + $0x74] sm:$0xf]
    %v2293 = vld [vmem:[%s2262 + $0x78] sm:$0xf]
    %v2294 = vld [vmem:[%s2262 + $0x7c] sm:$0xf]
    %v2295 = vld [vmem:[%s2262 + $0x80] sm:$0xf]
    %v2296 = vld [vmem:[%s2262 + $0x84] sm:$0xf]
    %v2297 = vld [vmem:[%s2262 + $0x88] sm:$0xf]
    %v2298 = vld [vmem:[%s2262 + $0x8c] sm:$0xf]
    %v2299 = vld [vmem:[%s2262 + $0x90] sm:$0xf]
    %v2300 = vld [vmem:[%s2262 + $0x94] sm:$0xf]
    %v2301 = vld [vmem:[%s2262 + $0x98] sm:$0xf]
    %v2302 = vld [vmem:[%s2262 + $0x9c] sm:$0xf]
    %v2303 = vld [vmem:[%s2262 + $0xa0] sm:$0xf]
    %v2304 = vld [vmem:[%s2262 + $0xa4] sm:$0xf]
    %v2305 = vld [vmem:[%s2262 + $0xa8] sm:$0xf]
    %v2306 = vld [vmem:[%s2262 + $0xac] sm:$0xf]
    %v2307 = vld [vmem:[%s2262 + $0xb0] sm:$0xf]
    %v2308 = vld [vmem:[%s2262 + $0xb4] sm:$0xf]
    %v2309 = vld [vmem:[%s2262 + $0xb8] sm:$0xf]
    %v2310 = vld [vmem:[%s2262 + $0xbc] sm:$0xf]
    %v2311 = vld [vmem:[%s2262 + $0xc0] sm:$0xf]
    %v2312 = vld [vmem:[%s2262 + $0xc4] sm:$0xf]
    %v2313 = vld [vmem:[%s2262 + $0xc8] sm:$0xf]
    %v2314 = vld [vmem:[%s2262 + $0xcc] sm:$0xf]
    %v2315 = vld [vmem:[%s2262 + $0xd0] sm:$0xf]
    %v2316 = vld [vmem:[%s2262 + $0xd4] sm:$0xf]
    %v2317 = vld [vmem:[%s2262 + $0xd8] sm:$0xf]
    %v2318 = vld [vmem:[%s2262 + $0xdc] sm:$0xf]
    %v2319 = vld [vmem:[%s2262 + $0xe0] sm:$0xf]
    %v2320 = vld [vmem:[%s2262 + $0xe4] sm:$0xf]
    %v2321 = vld [vmem:[%s2262 + $0xe8] sm:$0xf]
    %v2322 = vld [vmem:[%s2262 + $0xec] sm:$0xf]
    %v2323 = vld [vmem:[%s2262 + $0xf0] sm:$0xf]
    %v2324 = vld [vmem:[%s2262 + $0xf4] sm:$0xf]
    %v2325 = vld [vmem:[%s2262 + $0xf8] sm:$0xf]
    %v2326 = vld [vmem:[%s2262 + $0xfc] sm:$0xf]
    %v2327 = vpack.c.bf16 %v2258, %v2254
    %v2328 = vpack.c.bf16 %v2259, %v2255
    %v2329 = vpack.c.bf16 %v2260, %v2256
    %v2330 = vpack.c.bf16 %v2261, %v2257
    %s2331 = scalar_lea.vmem %s13, 1
    %v2332 = vld [vmem:[%s2331] sm:$0x1]
    %v2334 = vlaneseq
    %v2335 = vshrl.u32 %v2334, 7
    %v2336 = vsub.s32 0, %v2335
    %v2337 = vrot.slane %v2332, %v2336
    %v2403 = vunpack.c.l.b16 %v2263
    %v2404 = vunpack.c.l.b16 %v2264
    %v2405 = vunpack.c.l.b16 %v2265
    %v2406 = vunpack.c.l.b16 %v2266
    %v2407 = vunpack.c.l.b16 %v2267
    %v2408 = vunpack.c.l.b16 %v2268
    %v2409 = vunpack.c.l.b16 %v2269
    %v2410 = vunpack.c.l.b16 %v2270
    %v2411 = vunpack.c.l.b16 %v2271
    %v2412 = vunpack.c.l.b16 %v2272
    %v2413 = vunpack.c.l.b16 %v2273
    %v2414 = vunpack.c.l.b16 %v2274
    %v2415 = vunpack.c.l.b16 %v2275
    %v2416 = vunpack.c.l.b16 %v2276
    %v2417 = vunpack.c.l.b16 %v2277
    %v2418 = vunpack.c.l.b16 %v2278
    %v2419 = vunpack.c.l.b16 %v2279
    %v2420 = vunpack.c.l.b16 %v2280
    %v2421 = vunpack.c.l.b16 %v2281
    %v2422 = vunpack.c.l.b16 %v2282
    %v2423 = vunpack.c.l.b16 %v2283
    %v2424 = vunpack.c.l.b16 %v2284
    %v2425 = vunpack.c.l.b16 %v2285
    %v2426 = vunpack.c.l.b16 %v2286
    %v2427 = vunpack.c.l.b16 %v2287
    %v2428 = vunpack.c.l.b16 %v2288
    %v2429 = vunpack.c.l.b16 %v2289
    %v2430 = vunpack.c.l.b16 %v2290
    %v2431 = vunpack.c.l.b16 %v2291
    %v2432 = vunpack.c.l.b16 %v2292
    %v2433 = vunpack.c.l.b16 %v2293
    %v2434 = vunpack.c.l.b16 %v2294
    %v2435 = vunpack.c.l.b16 %v2295
    %v2436 = vunpack.c.l.b16 %v2296
    %v2437 = vunpack.c.l.b16 %v2297
    %v2438 = vunpack.c.l.b16 %v2298
    %v2439 = vunpack.c.l.b16 %v2299
    %v2440 = vunpack.c.l.b16 %v2300
    %v2441 = vunpack.c.l.b16 %v2301
    %v2442 = vunpack.c.l.b16 %v2302
    %v2443 = vunpack.c.l.b16 %v2303
    %v2444 = vunpack.c.l.b16 %v2304
    %v2445 = vunpack.c.l.b16 %v2305
    %v2446 = vunpack.c.l.b16 %v2306
    %v2447 = vunpack.c.l.b16 %v2307
    %v2448 = vunpack.c.l.b16 %v2308
    %v2449 = vunpack.c.l.b16 %v2309
    %v2450 = vunpack.c.l.b16 %v2310
    %v2451 = vunpack.c.l.b16 %v2311
    %v2452 = vunpack.c.l.b16 %v2312
    %v2453 = vunpack.c.l.b16 %v2313
    %v2454 = vunpack.c.l.b16 %v2314
    %v2455 = vunpack.c.l.b16 %v2315
    %v2456 = vunpack.c.l.b16 %v2316
    %v2457 = vunpack.c.l.b16 %v2317
    %v2458 = vunpack.c.l.b16 %v2318
    %v2459 = vunpack.c.l.b16 %v2319
    %v2460 = vunpack.c.l.b16 %v2320
    %v2461 = vunpack.c.l.b16 %v2321
    %v2462 = vunpack.c.l.b16 %v2322
    %v2463 = vunpack.c.l.b16 %v2323
    %v2464 = vunpack.c.l.b16 %v2324
    %v2465 = vunpack.c.l.b16 %v2325
    %v2466 = vunpack.c.l.b16 %v2326
    %v2467 = vpack.c.b16 %v2404, %v2403
    %v2468 = vpack.c.b16 %v2406, %v2405
    %v2469 = vpack.c.b16 %v2408, %v2407
    %v2470 = vpack.c.b16 %v2410, %v2409
    %v2471 = vpack.c.b16 %v2412, %v2411
    %v2472 = vpack.c.b16 %v2414, %v2413
    %v2473 = vpack.c.b16 %v2416, %v2415
    %v2474 = vpack.c.b16 %v2418, %v2417
    %v2475 = vpack.c.b16 %v2420, %v2419
    %v2476 = vpack.c.b16 %v2422, %v2421
    %v2477 = vpack.c.b16 %v2424, %v2423
    %v2478 = vpack.c.b16 %v2426, %v2425
    %v2479 = vpack.c.b16 %v2428, %v2427
    %v2480 = vpack.c.b16 %v2430, %v2429
    %v2481 = vpack.c.b16 %v2432, %v2431
    %v2482 = vpack.c.b16 %v2434, %v2433
    %v2483 = vpack.c.b16 %v2436, %v2435
    %v2484 = vpack.c.b16 %v2438, %v2437
    %v2485 = vpack.c.b16 %v2440, %v2439
    %v2486 = vpack.c.b16 %v2442, %v2441
    %v2487 = vpack.c.b16 %v2444, %v2443
    %v2488 = vpack.c.b16 %v2446, %v2445
    %v2489 = vpack.c.b16 %v2448, %v2447
    %v2490 = vpack.c.b16 %v2450, %v2449
    %v2491 = vpack.c.b16 %v2452, %v2451
    %v2492 = vpack.c.b16 %v2454, %v2453
    %v2493 = vpack.c.b16 %v2456, %v2455
    %v2494 = vpack.c.b16 %v2458, %v2457
    %v2495 = vpack.c.b16 %v2460, %v2459
    %v2496 = vpack.c.b16 %v2462, %v2461
    %v2497 = vpack.c.b16 %v2464, %v2463
    %v2498 = vpack.c.b16 %v2466, %v2465
    %2531 = vmatprep.subr.bf16.mxu0 0
    %2532 = vmatpush1.bf16.msra.mxu0 %v2467
    %2533 = vmatprep.subr.bf16.mxu0 0
    %2534 = vmatpush1.bf16.msra.mxu0 %v2468
    %2535 = vmatprep.subr.bf16.mxu0 0
    %2536 = vmatpush1.bf16.msra.mxu0 %v2469
    %2537 = vmatprep.subr.bf16.mxu0 0
    %2538 = vmatpush1.bf16.msra.mxu0 %v2470
    %2539 = vmatprep.subr.bf16.mxu0 0
    %2540 = vmatpush1.bf16.msra.mxu0 %v2471
    %2541 = vmatprep.subr.bf16.mxu0 0
    %2542 = vmatpush1.bf16.msra.mxu0 %v2472
    %2543 = vmatprep.subr.bf16.mxu0 0
    %2544 = vmatpush1.bf16.msra.mxu0 %v2473
    %2545 = vmatprep.subr.bf16.mxu0 0
    %2546 = vmatpush1.bf16.msra.mxu0 %v2474
    %2547 = vmatprep.subr.bf16.mxu0 0
    %2548 = vmatpush1.bf16.msra.mxu0 %v2475
    %2549 = vmatprep.subr.bf16.mxu0 0
    %2550 = vmatpush1.bf16.msra.mxu0 %v2476
    %2551 = vmatprep.subr.bf16.mxu0 0
    %2552 = vmatpush1.bf16.msra.mxu0 %v2477
    %2553 = vmatprep.subr.bf16.mxu0 0
    %2554 = vmatpush1.bf16.msra.mxu0 %v2478
    %2555 = vmatprep.subr.bf16.mxu0 0
    %2556 = vmatpush1.bf16.msra.mxu0 %v2479
    %2557 = vmatprep.subr.bf16.mxu0 0
    %2558 = vmatpush1.bf16.msra.mxu0 %v2480
    %2559 = vmatprep.subr.bf16.mxu0 0
    %2560 = vmatpush1.bf16.msra.mxu0 %v2481
    %2561 = vmatprep.subr.bf16.mxu0 0
    %2562 = vmatpush1.bf16.msra.mxu0 %v2482
    %2563 = vmatprep.mubr.bf16.mxu0 %v2328
    %2564 = vmatmul.mubr.bf16.gmra.mrb[0].mxu0 %v2327
    %v2565 = vpop.f32.mrb[0].mxu0
    %v2566 = vadd.f32 %v2337, %v2565
    %v2567 = vpop.f32.mrb[0].mxu0
    %v2568 = vpop.f32.mrb[0].mxu0
    %v2569 = vadd.f32 %v2337, %v2568
    %v2570 = vpop.f32.mrb[0].mxu0
    %2571 = vdwg.mxu0
    %2572 = vmatprep.subr.bf16.mxu0 0
    %2573 = vmatpush1.bf16.msra.mxu0 %v2483
    %2574 = vmatprep.subr.bf16.mxu0 0
    %2575 = vmatpush1.bf16.msra.mxu0 %v2484
    %2576 = vmatprep.subr.bf16.mxu0 0
    %2577 = vmatpush1.bf16.msra.mxu0 %v2485
    %2578 = vmatprep.subr.bf16.mxu0 0
    %2579 = vmatpush1.bf16.msra.mxu0 %v2486
    %2580 = vmatprep.subr.bf16.mxu0 0
    %2581 = vmatpush1.bf16.msra.mxu0 %v2487
    %2582 = vmatprep.subr.bf16.mxu0 0
    %2583 = vmatpush1.bf16.msra.mxu0 %v2488
    %2584 = vmatprep.subr.bf16.mxu0 0
    %2585 = vmatpush1.bf16.msra.mxu0 %v2489
    %2586 = vmatprep.subr.bf16.mxu0 0
    %2587 = vmatpush1.bf16.msra.mxu0 %v2490
    %2588 = vmatprep.subr.bf16.mxu0 0
    %2589 = vmatpush1.bf16.msra.mxu0 %v2491
    %2590 = vmatprep.subr.bf16.mxu0 0
    %2591 = vmatpush1.bf16.msra.mxu0 %v2492
    %2592 = vmatprep.subr.bf16.mxu0 0
    %2593 = vmatpush1.bf16.msra.mxu0 %v2493
    %2594 = vmatprep.subr.bf16.mxu0 0
    %2595 = vmatpush1.bf16.msra.mxu0 %v2494
    %2596 = vmatprep.subr.bf16.mxu0 0
    %2597 = vmatpush1.bf16.msra.mxu0 %v2495
    %2598 = vmatprep.subr.bf16.mxu0 0
    %2599 = vmatpush1.bf16.msra.mxu0 %v2496
    %2600 = vmatprep.subr.bf16.mxu0 0
    %2601 = vmatpush1.bf16.msra.mxu0 %v2497
    %2602 = vmatprep.subr.bf16.mxu0 0
    %2603 = vmatpush1.bf16.msra.mxu0 %v2498
    %2604 = vmatprep.mubr.bf16.mxu0 %v2330
    %2605 = vmatmul.mubr.bf16.gmra.mrb[0].mxu0 %v2329
    %v2606 = vpop.f32.mrb[0].mxu0
    %v2607 = vadd.f32 %v2566, %v2606
    %v2608 = vpop.f32.mrb[0].mxu0
    %v2609 = vpop.f32.mrb[0].mxu0
    %v2610 = vadd.f32 %v2569, %v2609
    %v2611 = vpop.f32.mrb[0].mxu0
    %2612 = vdwg.mxu0
    %v2613 = vadd.f32 %v1949, %v2607
    %v2614 = vadd.f32 %v1950, %v2610
    %s2615 = scalar_lea.vmem %s14, 1
    %v2616 = vld [vmem:[%s2615] sm:$0x1]
    %s2617 = scalar_lea.vmem %s15, 1
    %v2618 = vld [vmem:[%s2617] sm:$0x1]
    %2619 = vadd.xlane.f32.xlu0 %v2613
    %v2620 = vpop.xlane.xlu0 %2619
    %2621 = vadd.xlane.f32.xlu0 %v2614
    %v2622 = vpop.xlane.xlu0 %2621
    %v2623 = vmul.f32 %v2620, %v676
    %v2624 = vmul.f32 %v2622, %v676
    %v2625 = vmul.f32 %v2613, %v2613
    %v2626 = vmul.f32 %v2614, %v2614
    %2627 = vadd.xlane.f32.xlu0 %v2625
    %v2628 = vpop.xlane.xlu0 %2627
    %2629 = vadd.xlane.f32.xlu0 %v2626
    %v2630 = vpop.xlane.xlu0 %2629
    %v2631 = vmul.f32 %v2628, %v676
    %v2632 = vmul.f32 %v2630, %v676
    %v2633 = vmul.f32 %v2623, %v2623
    %v2634 = vmul.f32 %v2624, %v2624
    %v2635 = vsub.f32 %v2631, %v2633
    %v2636 = vsub.f32 %v2632, %v2634
    %v2637 = vsub.f32 %v2613, %v2623
    %v2638 = vsub.f32 %v2614, %v2624
    %v2639 = vadd.f32 %v2635, 1e-05
    %v2640 = vadd.f32 %v2636, 1e-05
    %v2641 = vrsqrt.pop %v2639
    %v2642 = vrsqrt.pop %v2640
    %v2643 = vmul.f32 %v2637, %v2641
    %v2644 = vmul.f32 %v2638, %v2642
    %v2646 = vlaneseq
    %v2647 = vshrl.u32 %v2646, 7
    %v2648 = vsub.s32 0, %v2647
    %v2649 = vrot.slane %v2616, %v2648
    %v2651 = vmul.f32 %v2643, %v2649
    %v2652 = vmul.f32 %v2644, %v2649
    %v2654 = vlaneseq
    %v2655 = vshrl.u32 %v2654, 7
    %v2656 = vsub.s32 0, %v2655
    %v2657 = vrot.slane %v2618, %v2656
    %v2659 = vadd.f32 %v2651, %v2657
    %v2660 = vadd.f32 %v2652, %v2657
    %s2661 = scalar_lea.vmem [#allocation2], 384
    %v2662 = vld [vmem:[%s2661] sm:$0xff]
    %v2663 = vld [vmem:[%s2661 + $0x8] sm:$0xf]
    %v2664 = vld [vmem:[%s2661 + $0xc] sm:$0xff]
    %v2665 = vld [vmem:[%s2661 + $0x14] sm:$0xf]
    %v2666 = vld [vmem:[%s2661 + $0x18] sm:$0xff]
    %v2667 = vld [vmem:[%s2661 + $0x20] sm:$0xf]
    %v2668 = vld [vmem:[%s2661 + $0x24] sm:$0xff]
    %v2669 = vld [vmem:[%s2661 + $0x2c] sm:$0xf]
    %v2670 = vld [vmem:[%s2661 + $0x30] sm:$0xff]
    %v2671 = vld [vmem:[%s2661 + $0x38] sm:$0xf]
    %v2672 = vld [vmem:[%s2661 + $0x3c] sm:$0xff]
    %v2673 = vld [vmem:[%s2661 + $0x44] sm:$0xf]
    %v2674 = vld [vmem:[%s2661 + $0x48] sm:$0xff]
    %v2675 = vld [vmem:[%s2661 + $0x50] sm:$0xf]
    %v2676 = vld [vmem:[%s2661 + $0x54] sm:$0xff]
    %v2677 = vld [vmem:[%s2661 + $0x5c] sm:$0xf]
    %v2678 = vld [vmem:[%s2661 + $0x60] sm:$0xff]
    %v2679 = vld [vmem:[%s2661 + $0x68] sm:$0xf]
    %v2680 = vld [vmem:[%s2661 + $0x6c] sm:$0xff]
    %v2681 = vld [vmem:[%s2661 + $0x74] sm:$0xf]
    %v2682 = vld [vmem:[%s2661 + $0x78] sm:$0xff]
    %v2683 = vld [vmem:[%s2661 + $0x80] sm:$0xf]
    %v2684 = vld [vmem:[%s2661 + $0x84] sm:$0xff]
    %v2685 = vld [vmem:[%s2661 + $0x8c] sm:$0xf]
    %v2686 = vld [vmem:[%s2661 + $0x90] sm:$0xff]
    %v2687 = vld [vmem:[%s2661 + $0x98] sm:$0xf]
    %v2688 = vld [vmem:[%s2661 + $0x9c] sm:$0xff]
    %v2689 = vld [vmem:[%s2661 + $0xa4] sm:$0xf]
    %v2690 = vld [vmem:[%s2661 + $0xa8] sm:$0xff]
    %v2691 = vld [vmem:[%s2661 + $0xb0] sm:$0xf]
    %v2692 = vld [vmem:[%s2661 + $0xb4] sm:$0xff]
    %v2693 = vld [vmem:[%s2661 + $0xbc] sm:$0xf]
    %v2694 = vpack.c.bf16 %v2660, %v2659
    %s2695 = scalar_lea.vmem %s5, 6
    %v2696 = vld [vmem:[%s2695] sm:$0x7]
    %v2698 = vlaneseq
    %v2699 = vshrl.u32 %v2698, 7
    %v2700 = vsub.s32 0, %v2699
    %v2701 = vrot.slane %v2696, %v2700
    %v2702 = vlaneseq
    %v2703 = vshrl.u32 %v2702, 7
    %v2704 = vsub.s32 1, %v2703
    %v2705 = vrot.slane %v2696, %v2704
    %v2706 = vlaneseq
    %v2707 = vshrl.u32 %v2706, 7
    %v2708 = vsub.s32 2, %v2707
    %v2709 = vrot.slane %v2696, %v2708
    %v2745 = vunpack.c.l.b16 %v2662
    %v2746 = vunpack.c.h.b16 %v2662
    %v2747 = vunpack.c.l.b16 %v2663
    %v2748 = vunpack.c.l.b16 %v2664
    %v2749 = vunpack.c.h.b16 %v2664
    %v2750 = vunpack.c.l.b16 %v2665
    %v2751 = vunpack.c.l.b16 %v2666
    %v2752 = vunpack.c.h.b16 %v2666
    %v2753 = vunpack.c.l.b16 %v2667
    %v2754 = vunpack.c.l.b16 %v2668
    %v2755 = vunpack.c.h.b16 %v2668
    %v2756 = vunpack.c.l.b16 %v2669
    %v2757 = vunpack.c.l.b16 %v2670
    %v2758 = vunpack.c.h.b16 %v2670
    %v2759 = vunpack.c.l.b16 %v2671
    %v2760 = vunpack.c.l.b16 %v2672
    %v2761 = vunpack.c.h.b16 %v2672
    %v2762 = vunpack.c.l.b16 %v2673
    %v2763 = vunpack.c.l.b16 %v2674
    %v2764 = vunpack.c.h.b16 %v2674
    %v2765 = vunpack.c.l.b16 %v2675
    %v2766 = vunpack.c.l.b16 %v2676
    %v2767 = vunpack.c.h.b16 %v2676
    %v2768 = vunpack.c.l.b16 %v2677
    %v2769 = vunpack.c.l.b16 %v2678
    %v2770 = vunpack.c.h.b16 %v2678
    %v2771 = vunpack.c.l.b16 %v2679
    %v2772 = vunpack.c.l.b16 %v2680
    %v2773 = vunpack.c.h.b16 %v2680
    %v2774 = vunpack.c.l.b16 %v2681
    %v2775 = vunpack.c.l.b16 %v2682
    %v2776 = vunpack.c.h.b16 %v2682
    %v2777 = vunpack.c.l.b16 %v2683
    %v2778 = vunpack.c.l.b16 %v2684
    %v2779 = vunpack.c.h.b16 %v2684
    %v2780 = vunpack.c.l.b16 %v2685
    %v2781 = vunpack.c.l.b16 %v2686
    %v2782 = vunpack.c.h.b16 %v2686
    %v2783 = vunpack.c.l.b16 %v2687
    %v2784 = vunpack.c.l.b16 %v2688
    %v2785 = vunpack.c.h.b16 %v2688
    %v2786 = vunpack.c.l.b16 %v2689
    %v2787 = vunpack.c.l.b16 %v2690
    %v2788 = vunpack.c.h.b16 %v2690
    %v2789 = vunpack.c.l.b16 %v2691
    %v2790 = vunpack.c.l.b16 %v2692
    %v2791 = vunpack.c.h.b16 %v2692
    %v2792 = vunpack.c.l.b16 %v2693
    %v2793 = vpack.c.b16 %v2748, %v2745
    %v2794 = vpack.c.b16 %v2749, %v2746
    %v2795 = vpack.c.b16 %v2750, %v2747
    %v2796 = vpack.c.b16 %v2754, %v2751
    %v2797 = vpack.c.b16 %v2755, %v2752
    %v2798 = vpack.c.b16 %v2756, %v2753
    %v2799 = vpack.c.b16 %v2760, %v2757
    %v2800 = vpack.c.b16 %v2761, %v2758
    %v2801 = vpack.c.b16 %v2762, %v2759
    %v2802 = vpack.c.b16 %v2766, %v2763
    %v2803 = vpack.c.b16 %v2767, %v2764
    %v2804 = vpack.c.b16 %v2768, %v2765
    %v2805 = vpack.c.b16 %v2772, %v2769
    %v2806 = vpack.c.b16 %v2773, %v2770
    %v2807 = vpack.c.b16 %v2774, %v2771
    %v2808 = vpack.c.b16 %v2778, %v2775
    %v2809 = vpack.c.b16 %v2779, %v2776
    %v2810 = vpack.c.b16 %v2780, %v2777
    %v2811 = vpack.c.b16 %v2784, %v2781
    %v2812 = vpack.c.b16 %v2785, %v2782
    %v2813 = vpack.c.b16 %v2786, %v2783
    %v2814 = vpack.c.b16 %v2790, %v2787
    %v2815 = vpack.c.b16 %v2791, %v2788
    %v2816 = vpack.c.b16 %v2792, %v2789
    %2841 = vmatprep.subr.bf16.mxu0 %v2794
    %2842 = vmatpush1.bf16.msra.mxu0 %v2793
    %2843 = vmatprep.subr.bf16.mxu0 %v2797
    %2844 = vmatpush1.bf16.msra.mxu0 %v2796
    %2845 = vmatprep.subr.bf16.mxu0 %v2800
    %2846 = vmatpush1.bf16.msra.mxu0 %v2799
    %2847 = vmatprep.subr.bf16.mxu0 %v2803
    %2848 = vmatpush1.bf16.msra.mxu0 %v2802
    %2849 = vmatprep.subr.bf16.mxu0 %v2806
    %2850 = vmatpush1.bf16.msra.mxu0 %v2805
    %2851 = vmatprep.subr.bf16.mxu0 %v2809
    %2852 = vmatpush1.bf16.msra.mxu0 %v2808
    %2853 = vmatprep.subr.bf16.mxu0 %v2812
    %2854 = vmatpush1.bf16.msra.mxu0 %v2811
    %2855 = vmatprep.subr.bf16.mxu0 %v2815
    %2856 = vmatpush1.bf16.msra.mxu0 %v2814
    %2857 = vmatprep.subr.bf16.mxu0 0
    %2858 = vmatpush1.bf16.msra.mxu0 0
    %2859 = vmatprep.subr.bf16.mxu0 0
    %2860 = vmatpush1.bf16.msra.mxu0 0
    %2861 = vmatprep.subr.bf16.mxu0 0
    %2862 = vmatpush1.bf16.msra.mxu0 0
    %2863 = vmatprep.subr.bf16.mxu0 0
    %2864 = vmatpush1.bf16.msra.mxu0 0
    %2865 = vmatprep.subr.bf16.mxu0 0
    %2866 = vmatpush1.bf16.msra.mxu0 0
    %2867 = vmatprep.subr.bf16.mxu0 0
    %2868 = vmatpush1.bf16.msra.mxu0 0
    %2869 = vmatprep.subr.bf16.mxu0 0
    %2870 = vmatpush1.bf16.msra.mxu0 0
    %2871 = vmatprep.subr.bf16.mxu0 0
    %2872 = vmatpush1.bf16.msra.mxu0 0
    %2873 = vmatprep.mubr.bf16.mxu0 0
    %2874 = vmatmul.mubr.bf16.gmra.mrb[0].mxu0 %v2694
    %v2875 = vpop.f32.mrb[0].mxu0
    %v2876 = vadd.f32 %v2701, %v2875
    %v2877 = vpop.f32.mrb[0].mxu0
    %v2878 = vadd.f32 %v2705, %v2877
    %v2879 = vpop.f32.mrb[0].mxu0
    %v2880 = vadd.f32 %v2701, %v2879
    %v2881 = vpop.f32.mrb[0].mxu0
    %v2882 = vadd.f32 %v2705, %v2881
    %2883 = vdwg.mxu0
    %2884 = vmatprep.subr.bf16.mxu0 0
    %2885 = vmatpush1.bf16.msra.mxu0 %v2795
    %2886 = vmatprep.subr.bf16.mxu0 0
    %2887 = vmatpush1.bf16.msra.mxu0 %v2798
    %2888 = vmatprep.subr.bf16.mxu0 0
    %2889 = vmatpush1.bf16.msra.mxu0 %v2801
    %2890 = vmatprep.subr.bf16.mxu0 0
    %2891 = vmatpush1.bf16.msra.mxu0 %v2804
    %2892 = vmatprep.subr.bf16.mxu0 0
    %2893 = vmatpush1.bf16.msra.mxu0 %v2807
    %2894 = vmatprep.subr.bf16.mxu0 0
    %2895 = vmatpush1.bf16.msra.mxu0 %v2810
    %2896 = vmatprep.subr.bf16.mxu0 0
    %2897 = vmatpush1.bf16.msra.mxu0 %v2813
    %2898 = vmatprep.subr.bf16.mxu0 0
    %2899 = vmatpush1.bf16.msra.mxu0 %v2816
    %2900 = vmatprep.subr.bf16.mxu0 0
    %2901 = vmatpush1.bf16.msra.mxu0 0
    %2902 = vmatprep.subr.bf16.mxu0 0
    %2903 = vmatpush1.bf16.msra.mxu0 0
    %2904 = vmatprep.subr.bf16.mxu0 0
    %2905 = vmatpush1.bf16.msra.mxu0 0
    %2906 = vmatprep.subr.bf16.mxu0 0
    %2907 = vmatpush1.bf16.msra.mxu0 0
    %2908 = vmatprep.subr.bf16.mxu0 0
    %2909 = vmatpush1.bf16.msra.mxu0 0
    %2910 = vmatprep.subr.bf16.mxu0 0
    %2911 = vmatpush1.bf16.msra.mxu0 0
    %2912 = vmatprep.subr.bf16.mxu0 0
    %2913 = vmatpush1.bf16.msra.mxu0 0
    %2914 = vmatprep.subr.bf16.mxu0 0
    %2915 = vmatpush1.bf16.msra.mxu0 0
    %2916 = vmatprep.mubr.bf16.mxu0 0
    %2917 = vmatmul.mubr.bf16.gmra.mrb[0].mxu0 %v2694
    %v2918 = vpop.f32.mrb[0].mxu0
    %v2919 = vadd.f32 %v2709, %v2918
    %v2920 = vpop.f32.mrb[0].mxu0
    %v2921 = vpop.f32.mrb[0].mxu0
    %v2922 = vadd.f32 %v2709, %v2921
    %v2923 = vpop.f32.mrb[0].mxu0
    %2924 = vdwg.mxu0
    %v2925 = vsub.f32 %v2878, %v2882
    %v2926 = vsub.f32 %v2919, %v2922
    %v2927 = vmul.f32 %v2876, %v2925
    %v2928 = vmul.f32 %v2880, %v2925
    %v2929 = vpack.c.bf16 %v2928, %v2927
    %2930 = vmatprep.subr.bf16.mxu0 0
    %2931 = vmatpush1.bf16.msra.mxu0 %v434
    %2932 = vmatprep.subr.bf16.mxu0 0
    %2933 = vmatpush1.bf16.msra.mxu0 %v435
    %2934 = vmatprep.subr.bf16.mxu0 0
    %2935 = vmatpush1.bf16.msra.mxu0 %v436
    %2936 = vmatprep.subr.bf16.mxu0 0
    %2937 = vmatpush1.bf16.msra.mxu0 %v437
    %2938 = vmatprep.subr.bf16.mxu0 0
    %2939 = vmatpush1.bf16.msra.mxu0 %v438
    %2940 = vmatprep.subr.bf16.mxu0 0
    %2941 = vmatpush1.bf16.msra.mxu0 %v439
    %2942 = vmatprep.subr.bf16.mxu0 0
    %2943 = vmatpush1.bf16.msra.mxu0 %v440
    %2944 = vmatprep.subr.bf16.mxu0 0
    %2945 = vmatpush1.bf16.msra.mxu0 %v441
    %2946 = vmatprep.subr.bf16.mxu0 0
    %2947 = vmatpush1.bf16.msra.mxu0 0
    %2948 = vmatprep.subr.bf16.mxu0 0
    %2949 = vmatpush1.bf16.msra.mxu0 0
    %2950 = vmatprep.subr.bf16.mxu0 0
    %2951 = vmatpush1.bf16.msra.mxu0 0
    %2952 = vmatprep.subr.bf16.mxu0 0
    %2953 = vmatpush1.bf16.msra.mxu0 0
    %2954 = vmatprep.subr.bf16.mxu0 0
    %2955 = vmatpush1.bf16.msra.mxu0 0
    %2956 = vmatprep.subr.bf16.mxu0 0
    %2957 = vmatpush1.bf16.msra.mxu0 0
    %2958 = vmatprep.subr.bf16.mxu0 0
    %2959 = vmatpush1.bf16.msra.mxu0 0
    %2960 = vmatprep.subr.bf16.mxu0 0
    %2961 = vmatpush1.bf16.msra.mxu0 0
    %2962 = vmatprep.mubr.bf16.mxu0 0
    %2963 = vmatmul.mubr.bf16.gmra.mrb[0].mxu0 %v2929
    %v2964 = vpop.f32.mrb[0].mxu0
    %v2965 = vadd.f32 0.0, %v2964
    %v2966 = vpop.f32.mrb[0].mxu0
    %v2967 = vpop.f32.mrb[0].mxu0
    %v2968 = vadd.f32 0.0, %v2967
    %v2969 = vpop.f32.mrb[0].mxu0
    %2970 = vdwg.mxu0
    %v2971 = vsub.f32 0.0, %v2965
    %v2972 = vsub.f32 0.0, %v2968
    %v2973 = vmul.f32 %v2971, 1.442695
    %v2974 = vpow.pop %v2973
    %v2975 = vmul.f32 %v2972, 1.442695
    %v2976 = vpow.pop %v2975
    %v2977 = vadd.f32 %v2974, 1.0
    %v2978 = vadd.f32 %v2976, 1.0
    %v2979 = vrcp.pop %v2977
    %v2980 = vrcp.pop %v2978
    %v2981 = vpack.c.bf16 %v2980, %v2979
    %v2983 = vsel %vm502, %v2981, 0
    %2985 = vmatprep.subr.bf16.mxu0 0
    %2986 = vmatpush1.bf16.msra.mxu0 %v508
    %2987 = vmatprep.subr.bf16.mxu0 0
    %2988 = vmatpush1.bf16.msra.mxu0 0
    %2989 = vmatprep.subr.bf16.mxu0 0
    %2990 = vmatpush1.bf16.msra.mxu0 0
    %2991 = vmatprep.subr.bf16.mxu0 0
    %2992 = vmatpush1.bf16.msra.mxu0 0
    %2993 = vmatprep.subr.bf16.mxu0 0
    %2994 = vmatpush1.bf16.msra.mxu0 0
    %2995 = vmatprep.subr.bf16.mxu0 0
    %2996 = vmatpush1.bf16.msra.mxu0 0
    %2997 = vmatprep.subr.bf16.mxu0 0
    %2998 = vmatpush1.bf16.msra.mxu0 0
    %2999 = vmatprep.subr.bf16.mxu0 0
    %3000 = vmatpush1.bf16.msra.mxu0 0
    %3001 = vmatprep.subr.bf16.mxu0 0
    %3002 = vmatpush1.bf16.msra.mxu0 0
    %3003 = vmatprep.subr.bf16.mxu0 0
    %3004 = vmatpush1.bf16.msra.mxu0 0
    %3005 = vmatprep.subr.bf16.mxu0 0
    %3006 = vmatpush1.bf16.msra.mxu0 0
    %3007 = vmatprep.subr.bf16.mxu0 0
    %3008 = vmatpush1.bf16.msra.mxu0 0
    %3009 = vmatprep.subr.bf16.mxu0 0
    %3010 = vmatpush1.bf16.msra.mxu0 0
    %3011 = vmatprep.subr.bf16.mxu0 0
    %3012 = vmatpush1.bf16.msra.mxu0 0
    %3013 = vmatprep.subr.bf16.mxu0 0
    %3014 = vmatpush1.bf16.msra.mxu0 0
    %3015 = vmatprep.subr.bf16.mxu0 0
    %3016 = vmatpush1.bf16.msra.mxu0 0
    %3017 = vmatprep.mubr.bf16.mxu0 0
    %3018 = vmatmul.mubr.bf16.gmra.mrb[0].mxu0 %v2983
    %v3019 = vpop.f32.mrb[0].mxu0
    %v3020 = vadd.f32 0.0, %v3019
    %v3021 = vpop.f32.mrb[0].mxu0
    %v3022 = vpop.f32.mrb[0].mxu0
    %v3023 = vadd.f32 0.0, %v3022
    %v3024 = vpop.f32.mrb[0].mxu0
    %3025 = vdwg.mxu0
    %v3026 = vmul.f32 %v3020, %v2926
    %v3027 = vadd.f32 %v2922, %v3026
    %v3028 = vmul.f32 %v3023, %v2926
    %v3029 = vadd.f32 %v2922, %v3028
    %s3030 = scalar_lea.vmem [#allocation5], 128
    %v3031 = vld [vmem:[%s3030] sm:$0xf]
    %v3032 = vld [vmem:[%s3030 + $0x4] sm:$0xf]
    %v3033 = vld [vmem:[%s3030 + $0x8] sm:$0xf]
    %v3034 = vld [vmem:[%s3030 + $0xc] sm:$0xf]
    %v3035 = vld [vmem:[%s3030 + $0x10] sm:$0xf]
    %v3036 = vld [vmem:[%s3030 + $0x14] sm:$0xf]
    %v3037 = vld [vmem:[%s3030 + $0x18] sm:$0xf]
    %v3038 = vld [vmem:[%s3030 + $0x1c] sm:$0xf]
    %v3039 = vld [vmem:[%s3030 + $0x20] sm:$0xf]
    %v3040 = vld [vmem:[%s3030 + $0x24] sm:$0xf]
    %v3041 = vld [vmem:[%s3030 + $0x28] sm:$0xf]
    %v3042 = vld [vmem:[%s3030 + $0x2c] sm:$0xf]
    %v3043 = vld [vmem:[%s3030 + $0x30] sm:$0xf]
    %v3044 = vld [vmem:[%s3030 + $0x34] sm:$0xf]
    %v3045 = vld [vmem:[%s3030 + $0x38] sm:$0xf]
    %v3046 = vld [vmem:[%s3030 + $0x3c] sm:$0xf]
    %v3047 = vpack.c.bf16 %v3029, %v3027
    %s3048 = scalar_lea.vmem %s7, 2
    %v3049 = vld [vmem:[%s3048] sm:$0x1]
    %v3051 = vlaneseq
    %v3052 = vshrl.u32 %v3051, 7
    %v3053 = vsub.s32 0, %v3052
    %v3054 = vrot.slane %v3049, %v3053
    %v3072 = vunpack.c.l.b16 %v3031
    %v3073 = vunpack.c.l.b16 %v3032
    %v3074 = vunpack.c.l.b16 %v3033
    %v3075 = vunpack.c.l.b16 %v3034
    %v3076 = vunpack.c.l.b16 %v3035
    %v3077 = vunpack.c.l.b16 %v3036
    %v3078 = vunpack.c.l.b16 %v3037
    %v3079 = vunpack.c.l.b16 %v3038
    %v3080 = vunpack.c.l.b16 %v3039
    %v3081 = vunpack.c.l.b16 %v3040
    %v3082 = vunpack.c.l.b16 %v3041
    %v3083 = vunpack.c.l.b16 %v3042
    %v3084 = vunpack.c.l.b16 %v3043
    %v3085 = vunpack.c.l.b16 %v3044
    %v3086 = vunpack.c.l.b16 %v3045
    %v3087 = vunpack.c.l.b16 %v3046
    %v3088 = vpack.c.b16 %v3073, %v3072
    %v3089 = vpack.c.b16 %v3075, %v3074
    %v3090 = vpack.c.b16 %v3077, %v3076
    %v3091 = vpack.c.b16 %v3079, %v3078
    %v3092 = vpack.c.b16 %v3081, %v3080
    %v3093 = vpack.c.b16 %v3083, %v3082
    %v3094 = vpack.c.b16 %v3085, %v3084
    %v3095 = vpack.c.b16 %v3087, %v3086
    %3104 = vmatprep.subr.bf16.mxu0 0
    %3105 = vmatpush1.bf16.msra.mxu0 %v3088
    %3106 = vmatprep.subr.bf16.mxu0 0
    %3107 = vmatpush1.bf16.msra.mxu0 %v3089
    %3108 = vmatprep.subr.bf16.mxu0 0
    %3109 = vmatpush1.bf16.msra.mxu0 %v3090
    %3110 = vmatprep.subr.bf16.mxu0 0
    %3111 = vmatpush1.bf16.msra.mxu0 %v3091
    %3112 = vmatprep.subr.bf16.mxu0 0
    %3113 = vmatpush1.bf16.msra.mxu0 %v3092
    %3114 = vmatprep.subr.bf16.mxu0 0
    %3115 = vmatpush1.bf16.msra.mxu0 %v3093
    %3116 = vmatprep.subr.bf16.mxu0 0
    %3117 = vmatpush1.bf16.msra.mxu0 %v3094
    %3118 = vmatprep.subr.bf16.mxu0 0
    %3119 = vmatpush1.bf16.msra.mxu0 %v3095
    %3120 = vmatprep.subr.bf16.mxu0 0
    %3121 = vmatpush1.bf16.msra.mxu0 0
    %3122 = vmatprep.subr.bf16.mxu0 0
    %3123 = vmatpush1.bf16.msra.mxu0 0
    %3124 = vmatprep.subr.bf16.mxu0 0
    %3125 = vmatpush1.bf16.msra.mxu0 0
    %3126 = vmatprep.subr.bf16.mxu0 0
    %3127 = vmatpush1.bf16.msra.mxu0 0
    %3128 = vmatprep.subr.bf16.mxu0 0
    %3129 = vmatpush1.bf16.msra.mxu0 0
    %3130 = vmatprep.subr.bf16.mxu0 0
    %3131 = vmatpush1.bf16.msra.mxu0 0
    %3132 = vmatprep.subr.bf16.mxu0 0
    %3133 = vmatpush1.bf16.msra.mxu0 0
    %3134 = vmatprep.subr.bf16.mxu0 0
    %3135 = vmatpush1.bf16.msra.mxu0 0
    %3136 = vmatprep.mubr.bf16.mxu0 0
    %3137 = vmatmul.mubr.bf16.gmra.mrb[0].mxu0 %v3047
    %v3138 = vpop.f32.mrb[0].mxu0
    %v3139 = vadd.f32 %v3054, %v3138
    %v3140 = vpop.f32.mrb[0].mxu0
    %v3141 = vpop.f32.mrb[0].mxu0
    %v3142 = vadd.f32 %v3054, %v3141
    %v3143 = vpop.f32.mrb[0].mxu0
    %3144 = vdwg.mxu0
    %v3145 = vadd.f32 %v2659, %v3139
    %v3146 = vadd.f32 %v2660, %v3142
    %s3147 = scalar_lea.vmem %s8, 2
    %v3148 = vld [vmem:[%s3147] sm:$0x1]
    %s3149 = scalar_lea.vmem %s9, 2
    %v3150 = vld [vmem:[%s3149] sm:$0x1]
    %3151 = vadd.xlane.f32.xlu0 %v3145
    %v3152 = vpop.xlane.xlu0 %3151
    %3153 = vadd.xlane.f32.xlu0 %v3146
    %v3154 = vpop.xlane.xlu0 %3153
    %v3155 = vmul.f32 %v3152, %v676
    %v3156 = vmul.f32 %v3154, %v676
    %v3157 = vmul.f32 %v3145, %v3145
    %v3158 = vmul.f32 %v3146, %v3146
    %3159 = vadd.xlane.f32.xlu0 %v3157
    %v3160 = vpop.xlane.xlu0 %3159
    %3161 = vadd.xlane.f32.xlu0 %v3158
    %v3162 = vpop.xlane.xlu0 %3161
    %v3163 = vmul.f32 %v3160, %v676
    %v3164 = vmul.f32 %v3162, %v676
    %v3165 = vmul.f32 %v3155, %v3155
    %v3166 = vmul.f32 %v3156, %v3156
    %v3167 = vsub.f32 %v3163, %v3165
    %v3168 = vsub.f32 %v3164, %v3166
    %v3169 = vsub.f32 %v3145, %v3155
    %v3170 = vsub.f32 %v3146, %v3156
    %v3171 = vadd.f32 %v3167, 1e-05
    %v3172 = vadd.f32 %v3168, 1e-05
    %v3173 = vrsqrt.pop %v3171
    %v3174 = vrsqrt.pop %v3172
    %v3175 = vmul.f32 %v3169, %v3173
    %v3176 = vmul.f32 %v3170, %v3174
    %v3178 = vlaneseq
    %v3179 = vshrl.u32 %v3178, 7
    %v3180 = vsub.s32 0, %v3179
    %v3181 = vrot.slane %v3148, %v3180
    %v3183 = vmul.f32 %v3175, %v3181
    %v3184 = vmul.f32 %v3176, %v3181
    %v3186 = vlaneseq
    %v3187 = vshrl.u32 %v3186, 7
    %v3188 = vsub.s32 0, %v3187
    %v3189 = vrot.slane %v3150, %v3188
    %v3191 = vadd.f32 %v3183, %v3189
    %v3192 = vadd.f32 %v3184, %v3189
    %s3193 = scalar_lea.vmem [#allocation7], 512
    %v3194 = vld [vmem:[%s3193] sm:$0xff]
    %v3195 = vld [vmem:[%s3193 + $0x8] sm:$0xff]
    %v3196 = vld [vmem:[%s3193 + $0x10] sm:$0xff]
    %v3197 = vld [vmem:[%s3193 + $0x18] sm:$0xff]
    %v3198 = vld [vmem:[%s3193 + $0x20] sm:$0xff]
    %v3199 = vld [vmem:[%s3193 + $0x28] sm:$0xff]
    %v3200 = vld [vmem:[%s3193 + $0x30] sm:$0xff]
    %v3201 = vld [vmem:[%s3193 + $0x38] sm:$0xff]
    %v3202 = vld [vmem:[%s3193 + $0x40] sm:$0xff]
    %v3203 = vld [vmem:[%s3193 + $0x48] sm:$0xff]
    %v3204 = vld [vmem:[%s3193 + $0x50] sm:$0xff]
    %v3205 = vld [vmem:[%s3193 + $0x58] sm:$0xff]
    %v3206 = vld [vmem:[%s3193 + $0x60] sm:$0xff]
    %v3207 = vld [vmem:[%s3193 + $0x68] sm:$0xff]
    %v3208 = vld [vmem:[%s3193 + $0x70] sm:$0xff]
    %v3209 = vld [vmem:[%s3193 + $0x78] sm:$0xff]
    %v3210 = vld [vmem:[%s3193 + $0x80] sm:$0xff]
    %v3211 = vld [vmem:[%s3193 + $0x88] sm:$0xff]
    %v3212 = vld [vmem:[%s3193 + $0x90] sm:$0xff]
    %v3213 = vld [vmem:[%s3193 + $0x98] sm:$0xff]
    %v3214 = vld [vmem:[%s3193 + $0xa0] sm:$0xff]
    %v3215 = vld [vmem:[%s3193 + $0xa8] sm:$0xff]
    %v3216 = vld [vmem:[%s3193 + $0xb0] sm:$0xff]
    %v3217 = vld [vmem:[%s3193 + $0xb8] sm:$0xff]
    %v3218 = vld [vmem:[%s3193 + $0xc0] sm:$0xff]
    %v3219 = vld [vmem:[%s3193 + $0xc8] sm:$0xff]
    %v3220 = vld [vmem:[%s3193 + $0xd0] sm:$0xff]
    %v3221 = vld [vmem:[%s3193 + $0xd8] sm:$0xff]
    %v3222 = vld [vmem:[%s3193 + $0xe0] sm:$0xff]
    %v3223 = vld [vmem:[%s3193 + $0xe8] sm:$0xff]
    %v3224 = vld [vmem:[%s3193 + $0xf0] sm:$0xff]
    %v3225 = vld [vmem:[%s3193 + $0xf8] sm:$0xff]
    %v3226 = vpack.c.bf16 %v3192, %v3191
    %s3227 = scalar_lea.vmem %s11, 8
    %v3228 = vld [vmem:[%s3227] sm:$0xf]
    %v3230 = vlaneseq
    %v3231 = vshrl.u32 %v3230, 7
    %v3232 = vsub.s32 0, %v3231
    %v3233 = vrot.slane %v3228, %v3232
    %v3234 = vlaneseq
    %v3235 = vshrl.u32 %v3234, 7
    %v3236 = vsub.s32 1, %v3235
    %v3237 = vrot.slane %v3228, %v3236
    %v3238 = vlaneseq
    %v3239 = vshrl.u32 %v3238, 7
    %v3240 = vsub.s32 2, %v3239
    %v3241 = vrot.slane %v3228, %v3240
    %v3242 = vlaneseq
    %v3243 = vshrl.u32 %v3242, 7
    %v3244 = vsub.s32 3, %v3243
    %v3245 = vrot.slane %v3228, %v3244
    %v3282 = vunpack.c.l.b16 %v3194
    %v3283 = vunpack.c.h.b16 %v3194
    %v3284 = vunpack.c.l.b16 %v3195
    %v3285 = vunpack.c.h.b16 %v3195
    %v3286 = vunpack.c.l.b16 %v3196
    %v3287 = vunpack.c.h.b16 %v3196
    %v3288 = vunpack.c.l.b16 %v3197
    %v3289 = vunpack.c.h.b16 %v3197
    %v3290 = vunpack.c.l.b16 %v3198
    %v3291 = vunpack.c.h.b16 %v3198
    %v3292 = vunpack.c.l.b16 %v3199
    %v3293 = vunpack.c.h.b16 %v3199
    %v3294 = vunpack.c.l.b16 %v3200
    %v3295 = vunpack.c.h.b16 %v3200
    %v3296 = vunpack.c.l.b16 %v3201
    %v3297 = vunpack.c.h.b16 %v3201
    %v3298 = vunpack.c.l.b16 %v3202
    %v3299 = vunpack.c.h.b16 %v3202
    %v3300 = vunpack.c.l.b16 %v3203
    %v3301 = vunpack.c.h.b16 %v3203
    %v3302 = vunpack.c.l.b16 %v3204
    %v3303 = vunpack.c.h.b16 %v3204
    %v3304 = vunpack.c.l.b16 %v3205
    %v3305 = vunpack.c.h.b16 %v3205
    %v3306 = vunpack.c.l.b16 %v3206
    %v3307 = vunpack.c.h.b16 %v3206
    %v3308 = vunpack.c.l.b16 %v3207
    %v3309 = vunpack.c.h.b16 %v3207
    %v3310 = vunpack.c.l.b16 %v3208
    %v3311 = vunpack.c.h.b16 %v3208
    %v3312 = vunpack.c.l.b16 %v3209
    %v3313 = vunpack.c.h.b16 %v3209
    %v3314 = vunpack.c.l.b16 %v3210
    %v3315 = vunpack.c.h.b16 %v3210
    %v3316 = vunpack.c.l.b16 %v3211
    %v3317 = vunpack.c.h.b16 %v3211
    %v3318 = vunpack.c.l.b16 %v3212
    %v3319 = vunpack.c.h.b16 %v3212
    %v3320 = vunpack.c.l.b16 %v3213
    %v3321 = vunpack.c.h.b16 %v3213
    %v3322 = vunpack.c.l.b16 %v3214
    %v3323 = vunpack.c.h.b16 %v3214
    %v3324 = vunpack.c.l.b16 %v3215
    %v3325 = vunpack.c.h.b16 %v3215
    %v3326 = vunpack.c.l.b16 %v3216
    %v3327 = vunpack.c.h.b16 %v3216
    %v3328 = vunpack.c.l.b16 %v3217
    %v3329 = vunpack.c.h.b16 %v3217
    %v3330 = vunpack.c.l.b16 %v3218
    %v3331 = vunpack.c.h.b16 %v3218
    %v3332 = vunpack.c.l.b16 %v3219
    %v3333 = vunpack.c.h.b16 %v3219
    %v3334 = vunpack.c.l.b16 %v3220
    %v3335 = vunpack.c.h.b16 %v3220
    %v3336 = vunpack.c.l.b16 %v3221
    %v3337 = vunpack.c.h.b16 %v3221
    %v3338 = vunpack.c.l.b16 %v3222
    %v3339 = vunpack.c.h.b16 %v3222
    %v3340 = vunpack.c.l.b16 %v3223
    %v3341 = vunpack.c.h.b16 %v3223
    %v3342 = vunpack.c.l.b16 %v3224
    %v3343 = vunpack.c.h.b16 %v3224
    %v3344 = vunpack.c.l.b16 %v3225
    %v3345 = vunpack.c.h.b16 %v3225
    %v3346 = vpack.c.b16 %v3286, %v3282
    %v3347 = vpack.c.b16 %v3287, %v3283
    %v3348 = vpack.c.b16 %v3288, %v3284
    %v3349 = vpack.c.b16 %v3289, %v3285
    %v3350 = vpack.c.b16 %v3294, %v3290
    %v3351 = vpack.c.b16 %v3295, %v3291
    %v3352 = vpack.c.b16 %v3296, %v3292
    %v3353 = vpack.c.b16 %v3297, %v3293
    %v3354 = vpack.c.b16 %v3302, %v3298
    %v3355 = vpack.c.b16 %v3303, %v3299
    %v3356 = vpack.c.b16 %v3304, %v3300
    %v3357 = vpack.c.b16 %v3305, %v3301
    %v3358 = vpack.c.b16 %v3310, %v3306
    %v3359 = vpack.c.b16 %v3311, %v3307
    %v3360 = vpack.c.b16 %v3312, %v3308
    %v3361 = vpack.c.b16 %v3313, %v3309
    %v3362 = vpack.c.b16 %v3318, %v3314
    %v3363 = vpack.c.b16 %v3319, %v3315
    %v3364 = vpack.c.b16 %v3320, %v3316
    %v3365 = vpack.c.b16 %v3321, %v3317
    %v3366 = vpack.c.b16 %v3326, %v3322
    %v3367 = vpack.c.b16 %v3327, %v3323
    %v3368 = vpack.c.b16 %v3328, %v3324
    %v3369 = vpack.c.b16 %v3329, %v3325
    %v3370 = vpack.c.b16 %v3334, %v3330
    %v3371 = vpack.c.b16 %v3335, %v3331
    %v3372 = vpack.c.b16 %v3336, %v3332
    %v3373 = vpack.c.b16 %v3337, %v3333
    %v3374 = vpack.c.b16 %v3342, %v3338
    %v3375 = vpack.c.b16 %v3343, %v3339
    %v3376 = vpack.c.b16 %v3344, %v3340
    %v3377 = vpack.c.b16 %v3345, %v3341
    %3410 = vmatprep.subr.bf16.mxu0 %v3347
    %3411 = vmatpush1.bf16.msra.mxu0 %v3346
    %3412 = vmatprep.subr.bf16.mxu0 %v3351
    %3413 = vmatpush1.bf16.msra.mxu0 %v3350
    %3414 = vmatprep.subr.bf16.mxu0 %v3355
    %3415 = vmatpush1.bf16.msra.mxu0 %v3354
    %3416 = vmatprep.subr.bf16.mxu0 %v3359
    %3417 = vmatpush1.bf16.msra.mxu0 %v3358
    %3418 = vmatprep.subr.bf16.mxu0 %v3363
    %3419 = vmatpush1.bf16.msra.mxu0 %v3362
    %3420 = vmatprep.subr.bf16.mxu0 %v3367
    %3421 = vmatpush1.bf16.msra.mxu0 %v3366
    %3422 = vmatprep.subr.bf16.mxu0 %v3371
    %3423 = vmatpush1.bf16.msra.mxu0 %v3370
    %3424 = vmatprep.subr.bf16.mxu0 %v3375
    %3425 = vmatpush1.bf16.msra.mxu0 %v3374
    %3426 = vmatprep.subr.bf16.mxu0 0
    %3427 = vmatpush1.bf16.msra.mxu0 0
    %3428 = vmatprep.subr.bf16.mxu0 0
    %3429 = vmatpush1.bf16.msra.mxu0 0
    %3430 = vmatprep.subr.bf16.mxu0 0
    %3431 = vmatpush1.bf16.msra.mxu0 0
    %3432 = vmatprep.subr.bf16.mxu0 0
    %3433 = vmatpush1.bf16.msra.mxu0 0
    %3434 = vmatprep.subr.bf16.mxu0 0
    %3435 = vmatpush1.bf16.msra.mxu0 0
    %3436 = vmatprep.subr.bf16.mxu0 0
    %3437 = vmatpush1.bf16.msra.mxu0 0
    %3438 = vmatprep.subr.bf16.mxu0 0
    %3439 = vmatpush1.bf16.msra.mxu0 0
    %3440 = vmatprep.subr.bf16.mxu0 0
    %3441 = vmatpush1.bf16.msra.mxu0 0
    %3442 = vmatprep.mubr.bf16.mxu0 0
    %3443 = vmatmul.mubr.bf16.gmra.mrb[0].mxu0 %v3226
    %v3444 = vpop.f32.mrb[0].mxu0
    %v3445 = vadd.f32 %v3233, %v3444
    %v3446 = vpop.f32.mrb[0].mxu0
    %v3447 = vadd.f32 %v3237, %v3446
    %v3448 = vpop.f32.mrb[0].mxu0
    %v3449 = vadd.f32 %v3233, %v3448
    %v3450 = vpop.f32.mrb[0].mxu0
    %v3451 = vadd.f32 %v3237, %v3450
    %3452 = vdwg.mxu0
    %3453 = vmatprep.subr.bf16.mxu0 %v3349
    %3454 = vmatpush1.bf16.msra.mxu0 %v3348
    %3455 = vmatprep.subr.bf16.mxu0 %v3353
    %3456 = vmatpush1.bf16.msra.mxu0 %v3352
    %3457 = vmatprep.subr.bf16.mxu0 %v3357
    %3458 = vmatpush1.bf16.msra.mxu0 %v3356
    %3459 = vmatprep.subr.bf16.mxu0 %v3361
    %3460 = vmatpush1.bf16.msra.mxu0 %v3360
    %3461 = vmatprep.subr.bf16.mxu0 %v3365
    %3462 = vmatpush1.bf16.msra.mxu0 %v3364
    %3463 = vmatprep.subr.bf16.mxu0 %v3369
    %3464 = vmatpush1.bf16.msra.mxu0 %v3368
    %3465 = vmatprep.subr.bf16.mxu0 %v3373
    %3466 = vmatpush1.bf16.msra.mxu0 %v3372
    %3467 = vmatprep.subr.bf16.mxu0 %v3377
    %3468 = vmatpush1.bf16.msra.mxu0 %v3376
    %3469 = vmatprep.subr.bf16.mxu0 0
    %3470 = vmatpush1.bf16.msra.mxu0 0
    %3471 = vmatprep.subr.bf16.mxu0 0
    %3472 = vmatpush1.bf16.msra.mxu0 0
    %3473 = vmatprep.subr.bf16.mxu0 0
    %3474 = vmatpush1.bf16.msra.mxu0 0
    %3475 = vmatprep.subr.bf16.mxu0 0
    %3476 = vmatpush1.bf16.msra.mxu0 0
    %3477 = vmatprep.subr.bf16.mxu0 0
    %3478 = vmatpush1.bf16.msra.mxu0 0
    %3479 = vmatprep.subr.bf16.mxu0 0
    %3480 = vmatpush1.bf16.msra.mxu0 0
    %3481 = vmatprep.subr.bf16.mxu0 0
    %3482 = vmatpush1.bf16.msra.mxu0 0
    %3483 = vmatprep.subr.bf16.mxu0 0
    %3484 = vmatpush1.bf16.msra.mxu0 0
    %3485 = vmatprep.mubr.bf16.mxu0 0
    %3486 = vmatmul.mubr.bf16.gmra.mrb[0].mxu0 %v3226
    %v3487 = vpop.f32.mrb[0].mxu0
    %v3488 = vadd.f32 %v3241, %v3487
    %v3489 = vpop.f32.mrb[0].mxu0
    %v3490 = vadd.f32 %v3245, %v3489
    %v3491 = vpop.f32.mrb[0].mxu0
    %v3492 = vadd.f32 %v3241, %v3491
    %v3493 = vpop.f32.mrb[0].mxu0
    %v3494 = vadd.f32 %v3245, %v3493
    %3495 = vdwg.mxu0
    %v3496 = vmax.f32 %v3445, 0.0
    %v3497 = vmax.f32 %v3447, 0.0
    %v3498 = vmax.f32 %v3488, 0.0
    %v3499 = vmax.f32 %v3490, 0.0
    %v3500 = vmax.f32 %v3449, 0.0
    %v3501 = vmax.f32 %v3451, 0.0
    %v3502 = vmax.f32 %v3492, 0.0
    %v3503 = vmax.f32 %v3494, 0.0
    %s3504 = scalar_lea.vmem [#allocation8], 512
    %v3505 = vld [vmem:[%s3504] sm:$0xf]
    %v3506 = vld [vmem:[%s3504 + $0x4] sm:$0xf]
    %v3507 = vld [vmem:[%s3504 + $0x8] sm:$0xf]
    %v3508 = vld [vmem:[%s3504 + $0xc] sm:$0xf]
    %v3509 = vld [vmem:[%s3504 + $0x10] sm:$0xf]
    %v3510 = vld [vmem:[%s3504 + $0x14] sm:$0xf]
    %v3511 = vld [vmem:[%s3504 + $0x18] sm:$0xf]
    %v3512 = vld [vmem:[%s3504 + $0x1c] sm:$0xf]
    %v3513 = vld [vmem:[%s3504 + $0x20] sm:$0xf]
    %v3514 = vld [vmem:[%s3504 + $0x24] sm:$0xf]
    %v3515 = vld [vmem:[%s3504 + $0x28] sm:$0xf]
    %v3516 = vld [vmem:[%s3504 + $0x2c] sm:$0xf]
    %v3517 = vld [vmem:[%s3504 + $0x30] sm:$0xf]
    %v3518 = vld [vmem:[%s3504 + $0x34] sm:$0xf]
    %v3519 = vld [vmem:[%s3504 + $0x38] sm:$0xf]
    %v3520 = vld [vmem:[%s3504 + $0x3c] sm:$0xf]
    %v3521 = vld [vmem:[%s3504 + $0x40] sm:$0xf]
    %v3522 = vld [vmem:[%s3504 + $0x44] sm:$0xf]
    %v3523 = vld [vmem:[%s3504 + $0x48] sm:$0xf]
    %v3524 = vld [vmem:[%s3504 + $0x4c] sm:$0xf]
    %v3525 = vld [vmem:[%s3504 + $0x50] sm:$0xf]
    %v3526 = vld [vmem:[%s3504 + $0x54] sm:$0xf]
    %v3527 = vld [vmem:[%s3504 + $0x58] sm:$0xf]
    %v3528 = vld [vmem:[%s3504 + $0x5c] sm:$0xf]
    %v3529 = vld [vmem:[%s3504 + $0x60] sm:$0xf]
    %v3530 = vld [vmem:[%s3504 + $0x64] sm:$0xf]
    %v3531 = vld [vmem:[%s3504 + $0x68] sm:$0xf]
    %v3532 = vld [vmem:[%s3504 + $0x6c] sm:$0xf]
    %v3533 = vld [vmem:[%s3504 + $0x70] sm:$0xf]
    %v3534 = vld [vmem:[%s3504 + $0x74] sm:$0xf]
    %v3535 = vld [vmem:[%s3504 + $0x78] sm:$0xf]
    %v3536 = vld [vmem:[%s3504 + $0x7c] sm:$0xf]
    %v3537 = vld [vmem:[%s3504 + $0x80] sm:$0xf]
    %v3538 = vld [vmem:[%s3504 + $0x84] sm:$0xf]
    %v3539 = vld [vmem:[%s3504 + $0x88] sm:$0xf]
    %v3540 = vld [vmem:[%s3504 + $0x8c] sm:$0xf]
    %v3541 = vld [vmem:[%s3504 + $0x90] sm:$0xf]
    %v3542 = vld [vmem:[%s3504 + $0x94] sm:$0xf]
    %v3543 = vld [vmem:[%s3504 + $0x98] sm:$0xf]
    %v3544 = vld [vmem:[%s3504 + $0x9c] sm:$0xf]
    %v3545 = vld [vmem:[%s3504 + $0xa0] sm:$0xf]
    %v3546 = vld [vmem:[%s3504 + $0xa4] sm:$0xf]
    %v3547 = vld [vmem:[%s3504 + $0xa8] sm:$0xf]
    %v3548 = vld [vmem:[%s3504 + $0xac] sm:$0xf]
    %v3549 = vld [vmem:[%s3504 + $0xb0] sm:$0xf]
    %v3550 = vld [vmem:[%s3504 + $0xb4] sm:$0xf]
    %v3551 = vld [vmem:[%s3504 + $0xb8] sm:$0xf]
    %v3552 = vld [vmem:[%s3504 + $0xbc] sm:$0xf]
    %v3553 = vld [vmem:[%s3504 + $0xc0] sm:$0xf]
    %v3554 = vld [vmem:[%s3504 + $0xc4] sm:$0xf]
    %v3555 = vld [vmem:[%s3504 + $0xc8] sm:$0xf]
    %v3556 = vld [vmem:[%s3504 + $0xcc] sm:$0xf]
    %v3557 = vld [vmem:[%s3504 + $0xd0] sm:$0xf]
    %v3558 = vld [vmem:[%s3504 + $0xd4] sm:$0xf]
    %v3559 = vld [vmem:[%s3504 + $0xd8] sm:$0xf]
    %v3560 = vld [vmem:[%s3504 + $0xdc] sm:$0xf]
    %v3561 = vld [vmem:[%s3504 + $0xe0] sm:$0xf]
    %v3562 = vld [vmem:[%s3504 + $0xe4] sm:$0xf]
    %v3563 = vld [vmem:[%s3504 + $0xe8] sm:$0xf]
    %v3564 = vld [vmem:[%s3504 + $0xec] sm:$0xf]
    %v3565 = vld [vmem:[%s3504 + $0xf0] sm:$0xf]
    %v3566 = vld [vmem:[%s3504 + $0xf4] sm:$0xf]
    %v3567 = vld [vmem:[%s3504 + $0xf8] sm:$0xf]
    %v3568 = vld [vmem:[%s3504 + $0xfc] sm:$0xf]
    %v3569 = vpack.c.bf16 %v3500, %v3496
    %v3570 = vpack.c.bf16 %v3501, %v3497
    %v3571 = vpack.c.bf16 %v3502, %v3498
    %v3572 = vpack.c.bf16 %v3503, %v3499
    %s3573 = scalar_lea.vmem %s13, 2
    %v3574 = vld [vmem:[%s3573] sm:$0x1]
    %v3576 = vlaneseq
    %v3577 = vshrl.u32 %v3576, 7
    %v3578 = vsub.s32 0, %v3577
    %v3579 = vrot.slane %v3574, %v3578
    %v3645 = vunpack.c.l.b16 %v3505
    %v3646 = vunpack.c.l.b16 %v3506
    %v3647 = vunpack.c.l.b16 %v3507
    %v3648 = vunpack.c.l.b16 %v3508
    %v3649 = vunpack.c.l.b16 %v3509
    %v3650 = vunpack.c.l.b16 %v3510
    %v3651 = vunpack.c.l.b16 %v3511
    %v3652 = vunpack.c.l.b16 %v3512
    %v3653 = vunpack.c.l.b16 %v3513
    %v3654 = vunpack.c.l.b16 %v3514
    %v3655 = vunpack.c.l.b16 %v3515
    %v3656 = vunpack.c.l.b16 %v3516
    %v3657 = vunpack.c.l.b16 %v3517
    %v3658 = vunpack.c.l.b16 %v3518
    %v3659 = vunpack.c.l.b16 %v3519
    %v3660 = vunpack.c.l.b16 %v3520
    %v3661 = vunpack.c.l.b16 %v3521
    %v3662 = vunpack.c.l.b16 %v3522
    %v3663 = vunpack.c.l.b16 %v3523
    %v3664 = vunpack.c.l.b16 %v3524
    %v3665 = vunpack.c.l.b16 %v3525
    %v3666 = vunpack.c.l.b16 %v3526
    %v3667 = vunpack.c.l.b16 %v3527
    %v3668 = vunpack.c.l.b16 %v3528
    %v3669 = vunpack.c.l.b16 %v3529
    %v3670 = vunpack.c.l.b16 %v3530
    %v3671 = vunpack.c.l.b16 %v3531
    %v3672 = vunpack.c.l.b16 %v3532
    %v3673 = vunpack.c.l.b16 %v3533
    %v3674 = vunpack.c.l.b16 %v3534
    %v3675 = vunpack.c.l.b16 %v3535
    %v3676 = vunpack.c.l.b16 %v3536
    %v3677 = vunpack.c.l.b16 %v3537
    %v3678 = vunpack.c.l.b16 %v3538
    %v3679 = vunpack.c.l.b16 %v3539
    %v3680 = vunpack.c.l.b16 %v3540
    %v3681 = vunpack.c.l.b16 %v3541
    %v3682 = vunpack.c.l.b16 %v3542
    %v3683 = vunpack.c.l.b16 %v3543
    %v3684 = vunpack.c.l.b16 %v3544
    %v3685 = vunpack.c.l.b16 %v3545
    %v3686 = vunpack.c.l.b16 %v3546
    %v3687 = vunpack.c.l.b16 %v3547
    %v3688 = vunpack.c.l.b16 %v3548
    %v3689 = vunpack.c.l.b16 %v3549
    %v3690 = vunpack.c.l.b16 %v3550
    %v3691 = vunpack.c.l.b16 %v3551
    %v3692 = vunpack.c.l.b16 %v3552
    %v3693 = vunpack.c.l.b16 %v3553
    %v3694 = vunpack.c.l.b16 %v3554
    %v3695 = vunpack.c.l.b16 %v3555
    %v3696 = vunpack.c.l.b16 %v3556
    %v3697 = vunpack.c.l.b16 %v3557
    %v3698 = vunpack.c.l.b16 %v3558
    %v3699 = vunpack.c.l.b16 %v3559
    %v3700 = vunpack.c.l.b16 %v3560
    %v3701 = vunpack.c.l.b16 %v3561
    %v3702 = vunpack.c.l.b16 %v3562
    %v3703 = vunpack.c.l.b16 %v3563
    %v3704 = vunpack.c.l.b16 %v3564
    %v3705 = vunpack.c.l.b16 %v3565
    %v3706 = vunpack.c.l.b16 %v3566
    %v3707 = vunpack.c.l.b16 %v3567
    %v3708 = vunpack.c.l.b16 %v3568
    %v3709 = vpack.c.b16 %v3646, %v3645
    %v3710 = vpack.c.b16 %v3648, %v3647
    %v3711 = vpack.c.b16 %v3650, %v3649
    %v3712 = vpack.c.b16 %v3652, %v3651
    %v3713 = vpack.c.b16 %v3654, %v3653
    %v3714 = vpack.c.b16 %v3656, %v3655
    %v3715 = vpack.c.b16 %v3658, %v3657
    %v3716 = vpack.c.b16 %v3660, %v3659
    %v3717 = vpack.c.b16 %v3662, %v3661
    %v3718 = vpack.c.b16 %v3664, %v3663
    %v3719 = vpack.c.b16 %v3666, %v3665
    %v3720 = vpack.c.b16 %v3668, %v3667
    %v3721 = vpack.c.b16 %v3670, %v3669
    %v3722 = vpack.c.b16 %v3672, %v3671
    %v3723 = vpack.c.b16 %v3674, %v3673
    %v3724 = vpack.c.b16 %v3676, %v3675
    %v3725 = vpack.c.b16 %v3678, %v3677
    %v3726 = vpack.c.b16 %v3680, %v3679
    %v3727 = vpack.c.b16 %v3682, %v3681
    %v3728 = vpack.c.b16 %v3684, %v3683
    %v3729 = vpack.c.b16 %v3686, %v3685
    %v3730 = vpack.c.b16 %v3688, %v3687
    %v3731 = vpack.c.b16 %v3690, %v3689
    %v3732 = vpack.c.b16 %v3692, %v3691
    %v3733 = vpack.c.b16 %v3694, %v3693
    %v3734 = vpack.c.b16 %v3696, %v3695
    %v3735 = vpack.c.b16 %v3698, %v3697
    %v3736 = vpack.c.b16 %v3700, %v3699
    %v3737 = vpack.c.b16 %v3702, %v3701
    %v3738 = vpack.c.b16 %v3704, %v3703
    %v3739 = vpack.c.b16 %v3706, %v3705
    %v3740 = vpack.c.b16 %v3708, %v3707
    %3773 = vmatprep.subr.bf16.mxu0 0
    %3774 = vmatpush1.bf16.msra.mxu0 %v3709
    %3775 = vmatprep.subr.bf16.mxu0 0
    %3776 = vmatpush1.bf16.msra.mxu0 %v3710
    %3777 = vmatprep.subr.bf16.mxu0 0
    %3778 = vmatpush1.bf16.msra.mxu0 %v3711
    %3779 = vmatprep.subr.bf16.mxu0 0
    %3780 = vmatpush1.bf16.msra.mxu0 %v3712
    %3781 = vmatprep.subr.bf16.mxu0 0
    %3782 = vmatpush1.bf16.msra.mxu0 %v3713
    %3783 = vmatprep.subr.bf16.mxu0 0
    %3784 = vmatpush1.bf16.msra.mxu0 %v3714
    %3785 = vmatprep.subr.bf16.mxu0 0
    %3786 = vmatpush1.bf16.msra.mxu0 %v3715
    %3787 = vmatprep.subr.bf16.mxu0 0
    %3788 = vmatpush1.bf16.msra.mxu0 %v3716
    %3789 = vmatprep.subr.bf16.mxu0 0
    %3790 = vmatpush1.bf16.msra.mxu0 %v3717
    %3791 = vmatprep.subr.bf16.mxu0 0
    %3792 = vmatpush1.bf16.msra.mxu0 %v3718
    %3793 = vmatprep.subr.bf16.mxu0 0
    %3794 = vmatpush1.bf16.msra.mxu0 %v3719
    %3795 = vmatprep.subr.bf16.mxu0 0
    %3796 = vmatpush1.bf16.msra.mxu0 %v3720
    %3797 = vmatprep.subr.bf16.mxu0 0
    %3798 = vmatpush1.bf16.msra.mxu0 %v3721
    %3799 = vmatprep.subr.bf16.mxu0 0
    %3800 = vmatpush1.bf16.msra.mxu0 %v3722
    %3801 = vmatprep.subr.bf16.mxu0 0
    %3802 = vmatpush1.bf16.msra.mxu0 %v3723
    %3803 = vmatprep.subr.bf16.mxu0 0
    %3804 = vmatpush1.bf16.msra.mxu0 %v3724
    %3805 = vmatprep.mubr.bf16.mxu0 %v3570
    %3806 = vmatmul.mubr.bf16.gmra.mrb[0].mxu0 %v3569
    %v3807 = vpop.f32.mrb[0].mxu0
    %v3808 = vadd.f32 %v3579, %v3807
    %v3809 = vpop.f32.mrb[0].mxu0
    %v3810 = vpop.f32.mrb[0].mxu0
    %v3811 = vadd.f32 %v3579, %v3810
    %v3812 = vpop.f32.mrb[0].mxu0
    %3813 = vdwg.mxu0
    %3814 = vmatprep.subr.bf16.mxu0 0
    %3815 = vmatpush1.bf16.msra.mxu0 %v3725
    %3816 = vmatprep.subr.bf16.mxu0 0
    %3817 = vmatpush1.bf16.msra.mxu0 %v3726
    %3818 = vmatprep.subr.bf16.mxu0 0
    %3819 = vmatpush1.bf16.msra.mxu0 %v3727
    %3820 = vmatprep.subr.bf16.mxu0 0
    %3821 = vmatpush1.bf16.msra.mxu0 %v3728
    %3822 = vmatprep.subr.bf16.mxu0 0
    %3823 = vmatpush1.bf16.msra.mxu0 %v3729
    %3824 = vmatprep.subr.bf16.mxu0 0
    %3825 = vmatpush1.bf16.msra.mxu0 %v3730
    %3826 = vmatprep.subr.bf16.mxu0 0
    %3827 = vmatpush1.bf16.msra.mxu0 %v3731
    %3828 = vmatprep.subr.bf16.mxu0 0
    %3829 = vmatpush1.bf16.msra.mxu0 %v3732
    %3830 = vmatprep.subr.bf16.mxu0 0
    %3831 = vmatpush1.bf16.msra.mxu0 %v3733
    %3832 = vmatprep.subr.bf16.mxu0 0
    %3833 = vmatpush1.bf16.msra.mxu0 %v3734
    %3834 = vmatprep.subr.bf16.mxu0 0
    %3835 = vmatpush1.bf16.msra.mxu0 %v3735
    %3836 = vmatprep.subr.bf16.mxu0 0
    %3837 = vmatpush1.bf16.msra.mxu0 %v3736
    %3838 = vmatprep.subr.bf16.mxu0 0
    %3839 = vmatpush1.bf16.msra.mxu0 %v3737
    %3840 = vmatprep.subr.bf16.mxu0 0
    %3841 = vmatpush1.bf16.msra.mxu0 %v3738
    %3842 = vmatprep.subr.bf16.mxu0 0
    %3843 = vmatpush1.bf16.msra.mxu0 %v3739
    %3844 = vmatprep.subr.bf16.mxu0 0
    %3845 = vmatpush1.bf16.msra.mxu0 %v3740
    %3846 = vmatprep.mubr.bf16.mxu0 %v3572
    %3847 = vmatmul.mubr.bf16.gmra.mrb[0].mxu0 %v3571
    %v3848 = vpop.f32.mrb[0].mxu0
    %v3849 = vadd.f32 %v3808, %v3848
    %v3850 = vpop.f32.mrb[0].mxu0
    %v3851 = vpop.f32.mrb[0].mxu0
    %v3852 = vadd.f32 %v3811, %v3851
    %v3853 = vpop.f32.mrb[0].mxu0
    %3854 = vdwg.mxu0
    %v3855 = vadd.f32 %v3191, %v3849
    %v3856 = vadd.f32 %v3192, %v3852
    %s3857 = scalar_lea.vmem %s14, 2
    %v3858 = vld [vmem:[%s3857] sm:$0x1]
    %s3859 = scalar_lea.vmem %s15, 2
    %v3860 = vld [vmem:[%s3859] sm:$0x1]
    %3861 = vadd.xlane.f32.xlu0 %v3855
    %v3862 = vpop.xlane.xlu0 %3861
    %3863 = vadd.xlane.f32.xlu0 %v3856
    %v3864 = vpop.xlane.xlu0 %3863
    %v3865 = vmul.f32 %v3862, %v676
    %v3866 = vmul.f32 %v3864, %v676
    %v3867 = vmul.f32 %v3855, %v3855
    %v3868 = vmul.f32 %v3856, %v3856
    %3869 = vadd.xlane.f32.xlu0 %v3867
    %v3870 = vpop.xlane.xlu0 %3869
    %3871 = vadd.xlane.f32.xlu0 %v3868
    %v3872 = vpop.xlane.xlu0 %3871
    %v3873 = vmul.f32 %v3870, %v676
    %v3874 = vmul.f32 %v3872, %v676
    %v3875 = vmul.f32 %v3865, %v3865
    %v3876 = vmul.f32 %v3866, %v3866
    %v3877 = vsub.f32 %v3873, %v3875
    %v3878 = vsub.f32 %v3874, %v3876
    %v3879 = vsub.f32 %v3855, %v3865
    %v3880 = vsub.f32 %v3856, %v3866
    %v3881 = vadd.f32 %v3877, 1e-05
    %v3882 = vadd.f32 %v3878, 1e-05
    %v3883 = vrsqrt.pop %v3881
    %v3884 = vrsqrt.pop %v3882
    %v3885 = vmul.f32 %v3879, %v3883
    %v3886 = vmul.f32 %v3880, %v3884
    %v3888 = vlaneseq
    %v3889 = vshrl.u32 %v3888, 7
    %v3890 = vsub.s32 0, %v3889
    %v3891 = vrot.slane %v3858, %v3890
    %v3893 = vmul.f32 %v3885, %v3891
    %v3894 = vmul.f32 %v3886, %v3891
    %v3896 = vlaneseq
    %v3897 = vshrl.u32 %v3896, 7
    %v3898 = vsub.s32 0, %v3897
    %v3899 = vrot.slane %v3860, %v3898
    %v3901 = vadd.f32 %v3893, %v3899
    %v3902 = vadd.f32 %v3894, %v3899
    %s3903 = scalar_lea.vmem [#allocation2], 576
    %v3904 = vld [vmem:[%s3903] sm:$0xff]
    %v3905 = vld [vmem:[%s3903 + $0x8] sm:$0xf]
    %v3906 = vld [vmem:[%s3903 + $0xc] sm:$0xff]
    %v3907 = vld [vmem:[%s3903 + $0x14] sm:$0xf]
    %v3908 = vld [vmem:[%s3903 + $0x18] sm:$0xff]
    %v3909 = vld [vmem:[%s3903 + $0x20] sm:$0xf]
    %v3910 = vld [vmem:[%s3903 + $0x24] sm:$0xff]
    %v3911 = vld [vmem:[%s3903 + $0x2c] sm:$0xf]
    %v3912 = vld [vmem:[%s3903 + $0x30] sm:$0xff]
    %v3913 = vld [vmem:[%s3903 + $0x38] sm:$0xf]
    %v3914 = vld [vmem:[%s3903 + $0x3c] sm:$0xff]
    %v3915 = vld [vmem:[%s3903 + $0x44] sm:$0xf]
    %v3916 = vld [vmem:[%s3903 + $0x48] sm:$0xff]
    %v3917 = vld [vmem:[%s3903 + $0x50] sm:$0xf]
    %v3918 = vld [vmem:[%s3903 + $0x54] sm:$0xff]
    %v3919 = vld [vmem:[%s3903 + $0x5c] sm:$0xf]
    %v3920 = vld [vmem:[%s3903 + $0x60] sm:$0xff]
    %v3921 = vld [vmem:[%s3903 + $0x68] sm:$0xf]
    %v3922 = vld [vmem:[%s3903 + $0x6c] sm:$0xff]
    %v3923 = vld [vmem:[%s3903 + $0x74] sm:$0xf]
    %v3924 = vld [vmem:[%s3903 + $0x78] sm:$0xff]
    %v3925 = vld [vmem:[%s3903 + $0x80] sm:$0xf]
    %v3926 = vld [vmem:[%s3903 + $0x84] sm:$0xff]
    %v3927 = vld [vmem:[%s3903 + $0x8c] sm:$0xf]
    %v3928 = vld [vmem:[%s3903 + $0x90] sm:$0xff]
    %v3929 = vld [vmem:[%s3903 + $0x98] sm:$0xf]
    %v3930 = vld [vmem:[%s3903 + $0x9c] sm:$0xff]
    %v3931 = vld [vmem:[%s3903 + $0xa4] sm:$0xf]
    %v3932 = vld [vmem:[%s3903 + $0xa8] sm:$0xff]
    %v3933 = vld [vmem:[%s3903 + $0xb0] sm:$0xf]
    %v3934 = vld [vmem:[%s3903 + $0xb4] sm:$0xff]
    %v3935 = vld [vmem:[%s3903 + $0xbc] sm:$0xf]
    %v3936 = vpack.c.bf16 %v3902, %v3901
    %s3937 = scalar_lea.vmem %s5, 9
    %v3938 = vld [vmem:[%s3937] sm:$0x7]
    %v3940 = vlaneseq
    %v3941 = vshrl.u32 %v3940, 7
    %v3942 = vsub.s32 0, %v3941
    %v3943 = vrot.slane %v3938, %v3942
    %v3944 = vlaneseq
    %v3945 = vshrl.u32 %v3944, 7
    %v3946 = vsub.s32 1, %v3945
    %v3947 = vrot.slane %v3938, %v3946
    %v3948 = vlaneseq
    %v3949 = vshrl.u32 %v3948, 7
    %v3950 = vsub.s32 2, %v3949
    %v3951 = vrot.slane %v3938, %v3950
    %v3987 = vunpack.c.l.b16 %v3904
    %v3988 = vunpack.c.h.b16 %v3904
    %v3989 = vunpack.c.l.b16 %v3905
    %v3990 = vunpack.c.l.b16 %v3906
    %v3991 = vunpack.c.h.b16 %v3906
    %v3992 = vunpack.c.l.b16 %v3907
    %v3993 = vunpack.c.l.b16 %v3908
    %v3994 = vunpack.c.h.b16 %v3908
    %v3995 = vunpack.c.l.b16 %v3909
    %v3996 = vunpack.c.l.b16 %v3910
    %v3997 = vunpack.c.h.b16 %v3910
    %v3998 = vunpack.c.l.b16 %v3911
    %v3999 = vunpack.c.l.b16 %v3912
    %v4000 = vunpack.c.h.b16 %v3912
    %v4001 = vunpack.c.l.b16 %v3913
    %v4002 = vunpack.c.l.b16 %v3914
    %v4003 = vunpack.c.h.b16 %v3914
    %v4004 = vunpack.c.l.b16 %v3915
    %v4005 = vunpack.c.l.b16 %v3916
    %v4006 = vunpack.c.h.b16 %v3916
    %v4007 = vunpack.c.l.b16 %v3917
    %v4008 = vunpack.c.l.b16 %v3918
    %v4009 = vunpack.c.h.b16 %v3918
    %v4010 = vunpack.c.l.b16 %v3919
    %v4011 = vunpack.c.l.b16 %v3920
    %v4012 = vunpack.c.h.b16 %v3920
    %v4013 = vunpack.c.l.b16 %v3921
    %v4014 = vunpack.c.l.b16 %v3922
    %v4015 = vunpack.c.h.b16 %v3922
    %v4016 = vunpack.c.l.b16 %v3923
    %v4017 = vunpack.c.l.b16 %v3924
    %v4018 = vunpack.c.h.b16 %v3924
    %v4019 = vunpack.c.l.b16 %v3925
    %v4020 = vunpack.c.l.b16 %v3926
    %v4021 = vunpack.c.h.b16 %v3926
    %v4022 = vunpack.c.l.b16 %v3927
    %v4023 = vunpack.c.l.b16 %v3928
    %v4024 = vunpack.c.h.b16 %v3928
    %v4025 = vunpack.c.l.b16 %v3929
    %v4026 = vunpack.c.l.b16 %v3930
    %v4027 = vunpack.c.h.b16 %v3930
    %v4028 = vunpack.c.l.b16 %v3931
    %v4029 = vunpack.c.l.b16 %v3932
    %v4030 = vunpack.c.h.b16 %v3932
    %v4031 = vunpack.c.l.b16 %v3933
    %v4032 = vunpack.c.l.b16 %v3934
    %v4033 = vunpack.c.h.b16 %v3934
    %v4034 = vunpack.c.l.b16 %v3935
    %v4035 = vpack.c.b16 %v3990, %v3987
    %v4036 = vpack.c.b16 %v3991, %v3988
    %v4037 = vpack.c.b16 %v3992, %v3989
    %v4038 = vpack.c.b16 %v3996, %v3993
    %v4039 = vpack.c.b16 %v3997, %v3994
    %v4040 = vpack.c.b16 %v3998, %v3995
    %v4041 = vpack.c.b16 %v4002, %v3999
    %v4042 = vpack.c.b16 %v4003, %v4000
    %v4043 = vpack.c.b16 %v4004, %v4001
    %v4044 = vpack.c.b16 %v4008, %v4005
    %v4045 = vpack.c.b16 %v4009, %v4006
    %v4046 = vpack.c.b16 %v4010, %v4007
    %v4047 = vpack.c.b16 %v4014, %v4011
    %v4048 = vpack.c.b16 %v4015, %v4012
    %v4049 = vpack.c.b16 %v4016, %v4013
    %v4050 = vpack.c.b16 %v4020, %v4017
    %v4051 = vpack.c.b16 %v4021, %v4018
    %v4052 = vpack.c.b16 %v4022, %v4019
    %v4053 = vpack.c.b16 %v4026, %v4023
    %v4054 = vpack.c.b16 %v4027, %v4024
    %v4055 = vpack.c.b16 %v4028, %v4025
    %v4056 = vpack.c.b16 %v4032, %v4029
    %v4057 = vpack.c.b16 %v4033, %v4030
    %v4058 = vpack.c.b16 %v4034, %v4031
    %4083 = vmatprep.subr.bf16.mxu0 %v4036
    %4084 = vmatpush1.bf16.msra.mxu0 %v4035
    %4085 = vmatprep.subr.bf16.mxu0 %v4039
    %4086 = vmatpush1.bf16.msra.mxu0 %v4038
    %4087 = vmatprep.subr.bf16.mxu0 %v4042
    %4088 = vmatpush1.bf16.msra.mxu0 %v4041
    %4089 = vmatprep.subr.bf16.mxu0 %v4045
    %4090 = vmatpush1.bf16.msra.mxu0 %v4044
    %4091 = vmatprep.subr.bf16.mxu0 %v4048
    %4092 = vmatpush1.bf16.msra.mxu0 %v4047
    %4093 = vmatprep.subr.bf16.mxu0 %v4051
    %4094 = vmatpush1.bf16.msra.mxu0 %v4050
    %4095 = vmatprep.subr.bf16.mxu0 %v4054
    %4096 = vmatpush1.bf16.msra.mxu0 %v4053
    %4097 = vmatprep.subr.bf16.mxu0 %v4057
    %4098 = vmatpush1.bf16.msra.mxu0 %v4056
    %4099 = vmatprep.subr.bf16.mxu0 0
    %4100 = vmatpush1.bf16.msra.mxu0 0
    %4101 = vmatprep.subr.bf16.mxu0 0
    %4102 = vmatpush1.bf16.msra.mxu0 0
    %4103 = vmatprep.subr.bf16.mxu0 0
    %4104 = vmatpush1.bf16.msra.mxu0 0
    %4105 = vmatprep.subr.bf16.mxu0 0
    %4106 = vmatpush1.bf16.msra.mxu0 0
    %4107 = vmatprep.subr.bf16.mxu0 0
    %4108 = vmatpush1.bf16.msra.mxu0 0
    %4109 = vmatprep.subr.bf16.mxu0 0
    %4110 = vmatpush1.bf16.msra.mxu0 0
    %4111 = vmatprep.subr.bf16.mxu0 0
    %4112 = vmatpush1.bf16.msra.mxu0 0
    %4113 = vmatprep.subr.bf16.mxu0 0
    %4114 = vmatpush1.bf16.msra.mxu0 0
    %4115 = vmatprep.mubr.bf16.mxu0 0
    %4116 = vmatmul.mubr.bf16.gmra.mrb[0].mxu0 %v3936
    %v4117 = vpop.f32.mrb[0].mxu0
    %v4118 = vadd.f32 %v3943, %v4117
    %v4119 = vpop.f32.mrb[0].mxu0
    %v4120 = vadd.f32 %v3947, %v4119
    %v4121 = vpop.f32.mrb[0].mxu0
    %v4122 = vadd.f32 %v3943, %v4121
    %v4123 = vpop.f32.mrb[0].mxu0
    %v4124 = vadd.f32 %v3947, %v4123
    %4125 = vdwg.mxu0
    %4126 = vmatprep.subr.bf16.mxu0 0
    %4127 = vmatpush1.bf16.msra.mxu0 %v4037
    %4128 = vmatprep.subr.bf16.mxu0 0
    %4129 = vmatpush1.bf16.msra.mxu0 %v4040
    %4130 = vmatprep.subr.bf16.mxu0 0
    %4131 = vmatpush1.bf16.msra.mxu0 %v4043
    %4132 = vmatprep.subr.bf16.mxu0 0
    %4133 = vmatpush1.bf16.msra.mxu0 %v4046
    %4134 = vmatprep.subr.bf16.mxu0 0
    %4135 = vmatpush1.bf16.msra.mxu0 %v4049
    %4136 = vmatprep.subr.bf16.mxu0 0
    %4137 = vmatpush1.bf16.msra.mxu0 %v4052
    %4138 = vmatprep.subr.bf16.mxu0 0
    %4139 = vmatpush1.bf16.msra.mxu0 %v4055
    %4140 = vmatprep.subr.bf16.mxu0 0
    %4141 = vmatpush1.bf16.msra.mxu0 %v4058
    %4142 = vmatprep.subr.bf16.mxu0 0
    %4143 = vmatpush1.bf16.msra.mxu0 0
    %4144 = vmatprep.subr.bf16.mxu0 0
    %4145 = vmatpush1.bf16.msra.mxu0 0
    %4146 = vmatprep.subr.bf16.mxu0 0
    %4147 = vmatpush1.bf16.msra.mxu0 0
    %4148 = vmatprep.subr.bf16.mxu0 0
    %4149 = vmatpush1.bf16.msra.mxu0 0
    %4150 = vmatprep.subr.bf16.mxu0 0
    %4151 = vmatpush1.bf16.msra.mxu0 0
    %4152 = vmatprep.subr.bf16.mxu0 0
    %4153 = vmatpush1.bf16.msra.mxu0 0
    %4154 = vmatprep.subr.bf16.mxu0 0
    %4155 = vmatpush1.bf16.msra.mxu0 0
    %4156 = vmatprep.subr.bf16.mxu0 0
    %4157 = vmatpush1.bf16.msra.mxu0 0
    %4158 = vmatprep.mubr.bf16.mxu0 0
    %4159 = vmatmul.mubr.bf16.gmra.mrb[0].mxu0 %v3936
    %v4160 = vpop.f32.mrb[0].mxu0
    %v4161 = vadd.f32 %v3951, %v4160
    %v4162 = vpop.f32.mrb[0].mxu0
    %v4163 = vpop.f32.mrb[0].mxu0
    %v4164 = vadd.f32 %v3951, %v4163
    %v4165 = vpop.f32.mrb[0].mxu0
    %4166 = vdwg.mxu0
    %v4167 = vsub.f32 %v4120, %v4124
    %v4168 = vsub.f32 %v4161, %v4164
    %v4169 = vmul.f32 %v4118, %v4167
    %v4170 = vmul.f32 %v4122, %v4167
    %v4171 = vpack.c.bf16 %v4170, %v4169
    %4172 = vmatprep.subr.bf16.mxu0 0
    %4173 = vmatpush1.bf16.msra.mxu0 %v434
    %4174 = vmatprep.subr.bf16.mxu0 0
    %4175 = vmatpush1.bf16.msra.mxu0 %v435
    %4176 = vmatprep.subr.bf16.mxu0 0
    %4177 = vmatpush1.bf16.msra.mxu0 %v436
    %4178 = vmatprep.subr.bf16.mxu0 0
    %4179 = vmatpush1.bf16.msra.mxu0 %v437
    %4180 = vmatprep.subr.bf16.mxu0 0
    %4181 = vmatpush1.bf16.msra.mxu0 %v438
    %4182 = vmatprep.subr.bf16.mxu0 0
    %4183 = vmatpush1.bf16.msra.mxu0 %v439
    %4184 = vmatprep.subr.bf16.mxu0 0
    %4185 = vmatpush1.bf16.msra.mxu0 %v440
    %4186 = vmatprep.subr.bf16.mxu0 0
    %4187 = vmatpush1.bf16.msra.mxu0 %v441
    %4188 = vmatprep.subr.bf16.mxu0 0
    %4189 = vmatpush1.bf16.msra.mxu0 0
    %4190 = vmatprep.subr.bf16.mxu0 0
    %4191 = vmatpush1.bf16.msra.mxu0 0
    %4192 = vmatprep.subr.bf16.mxu0 0
    %4193 = vmatpush1.bf16.msra.mxu0 0
    %4194 = vmatprep.subr.bf16.mxu0 0
    %4195 = vmatpush1.bf16.msra.mxu0 0
    %4196 = vmatprep.subr.bf16.mxu0 0
    %4197 = vmatpush1.bf16.msra.mxu0 0
    %4198 = vmatprep.subr.bf16.mxu0 0
    %4199 = vmatpush1.bf16.msra.mxu0 0
    %4200 = vmatprep.subr.bf16.mxu0 0
    %4201 = vmatpush1.bf16.msra.mxu0 0
    %4202 = vmatprep.subr.bf16.mxu0 0
    %4203 = vmatpush1.bf16.msra.mxu0 0
    %4204 = vmatprep.mubr.bf16.mxu0 0
    %4205 = vmatmul.mubr.bf16.gmra.mrb[0].mxu0 %v4171
    %v4206 = vpop.f32.mrb[0].mxu0
    %v4207 = vadd.f32 0.0, %v4206
    %v4208 = vpop.f32.mrb[0].mxu0
    %v4209 = vpop.f32.mrb[0].mxu0
    %v4210 = vadd.f32 0.0, %v4209
    %v4211 = vpop.f32.mrb[0].mxu0
    %4212 = vdwg.mxu0
    %v4213 = vsub.f32 0.0, %v4207
    %v4214 = vsub.f32 0.0, %v4210
    %v4215 = vmul.f32 %v4213, 1.442695
    %v4216 = vpow.pop %v4215
    %v4217 = vmul.f32 %v4214, 1.442695
    %v4218 = vpow.pop %v4217
    %v4219 = vadd.f32 %v4216, 1.0
    %v4220 = vadd.f32 %v4218, 1.0
    %v4221 = vrcp.pop %v4219
    %v4222 = vrcp.pop %v4220
    %v4223 = vpack.c.bf16 %v4222, %v4221
    %v4225 = vsel %vm502, %v4223, 0
    %4227 = vmatprep.subr.bf16.mxu0 0
    %4228 = vmatpush1.bf16.msra.mxu0 %v508
    %4229 = vmatprep.subr.bf16.mxu0 0
    %4230 = vmatpush1.bf16.msra.mxu0 0
    %4231 = vmatprep.subr.bf16.mxu0 0
    %4232 = vmatpush1.bf16.msra.mxu0 0
    %4233 = vmatprep.subr.bf16.mxu0 0
    %4234 = vmatpush1.bf16.msra.mxu0 0
    %4235 = vmatprep.subr.bf16.mxu0 0
    %4236 = vmatpush1.bf16.msra.mxu0 0
    %4237 = vmatprep.subr.bf16.mxu0 0
    %4238 = vmatpush1.bf16.msra.mxu0 0
    %4239 = vmatprep.subr.bf16.mxu0 0
    %4240 = vmatpush1.bf16.msra.mxu0 0
    %4241 = vmatprep.subr.bf16.mxu0 0
    %4242 = vmatpush1.bf16.msra.mxu0 0
    %4243 = vmatprep.subr.bf16.mxu0 0
    %4244 = vmatpush1.bf16.msra.mxu0 0
    %4245 = vmatprep.subr.bf16.mxu0 0
    %4246 = vmatpush1.bf16.msra.mxu0 0
    %4247 = vmatprep.subr.bf16.mxu0 0
    %4248 = vmatpush1.bf16.msra.mxu0 0
    %4249 = vmatprep.subr.bf16.mxu0 0
    %4250 = vmatpush1.bf16.msra.mxu0 0
    %4251 = vmatprep.subr.bf16.mxu0 0
    %4252 = vmatpush1.bf16.msra.mxu0 0
    %4253 = vmatprep.subr.bf16.mxu0 0
    %4254 = vmatpush1.bf16.msra.mxu0 0
    %4255 = vmatprep.subr.bf16.mxu0 0
    %4256 = vmatpush1.bf16.msra.mxu0 0
    %4257 = vmatprep.subr.bf16.mxu0 0
    %4258 = vmatpush1.bf16.msra.mxu0 0
    %4259 = vmatprep.mubr.bf16.mxu0 0
    %4260 = vmatmul.mubr.bf16.gmra.mrb[0].mxu0 %v4225
    %v4261 = vpop.f32.mrb[0].mxu0
    %v4262 = vadd.f32 0.0, %v4261
    %v4263 = vpop.f32.mrb[0].mxu0
    %v4264 = vpop.f32.mrb[0].mxu0
    %v4265 = vadd.f32 0.0, %v4264
    %v4266 = vpop.f32.mrb[0].mxu0
    %4267 = vdwg.mxu0
    %v4268 = vmul.f32 %v4262, %v4168
    %v4269 = vadd.f32 %v4164, %v4268
    %v4270 = vmul.f32 %v4265, %v4168
    %v4271 = vadd.f32 %v4164, %v4270
    %s4272 = scalar_lea.vmem [#allocation5], 192
    %v4273 = vld [vmem:[%s4272] sm:$0xf]
    %v4274 = vld [vmem:[%s4272 + $0x4] sm:$0xf]
    %v4275 = vld [vmem:[%s4272 + $0x8] sm:$0xf]
    %v4276 = vld [vmem:[%s4272 + $0xc] sm:$0xf]
    %v4277 = vld [vmem:[%s4272 + $0x10] sm:$0xf]
    %v4278 = vld [vmem:[%s4272 + $0x14] sm:$0xf]
    %v4279 = vld [vmem:[%s4272 + $0x18] sm:$0xf]
    %v4280 = vld [vmem:[%s4272 + $0x1c] sm:$0xf]
    %v4281 = vld [vmem:[%s4272 + $0x20] sm:$0xf]
    %v4282 = vld [vmem:[%s4272 + $0x24] sm:$0xf]
    %v4283 = vld [vmem:[%s4272 + $0x28] sm:$0xf]
    %v4284 = vld [vmem:[%s4272 + $0x2c] sm:$0xf]
    %v4285 = vld [vmem:[%s4272 + $0x30] sm:$0xf]
    %v4286 = vld [vmem:[%s4272 + $0x34] sm:$0xf]
    %v4287 = vld [vmem:[%s4272 + $0x38] sm:$0xf]
    %v4288 = vld [vmem:[%s4272 + $0x3c] sm:$0xf]
    %v4289 = vpack.c.bf16 %v4271, %v4269
    %s4290 = scalar_lea.vmem %s7, 3
    %v4291 = vld [vmem:[%s4290] sm:$0x1]
    %v4293 = vlaneseq
    %v4294 = vshrl.u32 %v4293, 7
    %v4295 = vsub.s32 0, %v4294
    %v4296 = vrot.slane %v4291, %v4295
    %v4314 = vunpack.c.l.b16 %v4273
    %v4315 = vunpack.c.l.b16 %v4274
    %v4316 = vunpack.c.l.b16 %v4275
    %v4317 = vunpack.c.l.b16 %v4276
    %v4318 = vunpack.c.l.b16 %v4277
    %v4319 = vunpack.c.l.b16 %v4278
    %v4320 = vunpack.c.l.b16 %v4279
    %v4321 = vunpack.c.l.b16 %v4280
    %v4322 = vunpack.c.l.b16 %v4281
    %v4323 = vunpack.c.l.b16 %v4282
    %v4324 = vunpack.c.l.b16 %v4283
    %v4325 = vunpack.c.l.b16 %v4284
    %v4326 = vunpack.c.l.b16 %v4285
    %v4327 = vunpack.c.l.b16 %v4286
    %v4328 = vunpack.c.l.b16 %v4287
    %v4329 = vunpack.c.l.b16 %v4288
    %v4330 = vpack.c.b16 %v4315, %v4314
    %v4331 = vpack.c.b16 %v4317, %v4316
    %v4332 = vpack.c.b16 %v4319, %v4318
    %v4333 = vpack.c.b16 %v4321, %v4320
    %v4334 = vpack.c.b16 %v4323, %v4322
    %v4335 = vpack.c.b16 %v4325, %v4324
    %v4336 = vpack.c.b16 %v4327, %v4326
    %v4337 = vpack.c.b16 %v4329, %v4328
    %4346 = vmatprep.subr.bf16.mxu0 0
    %4347 = vmatpush1.bf16.msra.mxu0 %v4330
    %4348 = vmatprep.subr.bf16.mxu0 0
    %4349 = vmatpush1.bf16.msra.mxu0 %v4331
    %4350 = vmatprep.subr.bf16.mxu0 0
    %4351 = vmatpush1.bf16.msra.mxu0 %v4332
    %4352 = vmatprep.subr.bf16.mxu0 0
    %4353 = vmatpush1.bf16.msra.mxu0 %v4333
    %4354 = vmatprep.subr.bf16.mxu0 0
    %4355 = vmatpush1.bf16.msra.mxu0 %v4334
    %4356 = vmatprep.subr.bf16.mxu0 0
    %4357 = vmatpush1.bf16.msra.mxu0 %v4335
    %4358 = vmatprep.subr.bf16.mxu0 0
    %4359 = vmatpush1.bf16.msra.mxu0 %v4336
    %4360 = vmatprep.subr.bf16.mxu0 0
    %4361 = vmatpush1.bf16.msra.mxu0 %v4337
    %4362 = vmatprep.subr.bf16.mxu0 0
    %4363 = vmatpush1.bf16.msra.mxu0 0
    %4364 = vmatprep.subr.bf16.mxu0 0
    %4365 = vmatpush1.bf16.msra.mxu0 0
    %4366 = vmatprep.subr.bf16.mxu0 0
    %4367 = vmatpush1.bf16.msra.mxu0 0
    %4368 = vmatprep.subr.bf16.mxu0 0
    %4369 = vmatpush1.bf16.msra.mxu0 0
    %4370 = vmatprep.subr.bf16.mxu0 0
    %4371 = vmatpush1.bf16.msra.mxu0 0
    %4372 = vmatprep.subr.bf16.mxu0 0
    %4373 = vmatpush1.bf16.msra.mxu0 0
    %4374 = vmatprep.subr.bf16.mxu0 0
    %4375 = vmatpush1.bf16.msra.mxu0 0
    %4376 = vmatprep.subr.bf16.mxu0 0
    %4377 = vmatpush1.bf16.msra.mxu0 0
    %4378 = vmatprep.mubr.bf16.mxu0 0
    %4379 = vmatmul.mubr.bf16.gmra.mrb[0].mxu0 %v4289
    %v4380 = vpop.f32.mrb[0].mxu0
    %v4381 = vadd.f32 %v4296, %v4380
    %v4382 = vpop.f32.mrb[0].mxu0
    %v4383 = vpop.f32.mrb[0].mxu0
    %v4384 = vadd.f32 %v4296, %v4383
    %v4385 = vpop.f32.mrb[0].mxu0
    %4386 = vdwg.mxu0
    %v4387 = vadd.f32 %v3901, %v4381
    %v4388 = vadd.f32 %v3902, %v4384
    %s4389 = scalar_lea.vmem %s8, 3
    %v4390 = vld [vmem:[%s4389] sm:$0x1]
    %s4391 = scalar_lea.vmem %s9, 3
    %v4392 = vld [vmem:[%s4391] sm:$0x1]
    %4393 = vadd.xlane.f32.xlu0 %v4387
    %v4394 = vpop.xlane.xlu0 %4393
    %4395 = vadd.xlane.f32.xlu0 %v4388
    %v4396 = vpop.xlane.xlu0 %4395
    %v4397 = vmul.f32 %v4394, %v676
    %v4398 = vmul.f32 %v4396, %v676
    %v4399 = vmul.f32 %v4387, %v4387
    %v4400 = vmul.f32 %v4388, %v4388
    %4401 = vadd.xlane.f32.xlu0 %v4399
    %v4402 = vpop.xlane.xlu0 %4401
    %4403 = vadd.xlane.f32.xlu0 %v4400
    %v4404 = vpop.xlane.xlu0 %4403
    %v4405 = vmul.f32 %v4402, %v676
    %v4406 = vmul.f32 %v4404, %v676
    %v4407 = vmul.f32 %v4397, %v4397
    %v4408 = vmul.f32 %v4398, %v4398
    %v4409 = vsub.f32 %v4405, %v4407
    %v4410 = vsub.f32 %v4406, %v4408
    %v4411 = vsub.f32 %v4387, %v4397
    %v4412 = vsub.f32 %v4388, %v4398
    %v4413 = vadd.f32 %v4409, 1e-05
    %v4414 = vadd.f32 %v4410, 1e-05
    %v4415 = vrsqrt.pop %v4413
    %v4416 = vrsqrt.pop %v4414
    %v4417 = vmul.f32 %v4411, %v4415
    %v4418 = vmul.f32 %v4412, %v4416
    %v4420 = vlaneseq
    %v4421 = vshrl.u32 %v4420, 7
    %v4422 = vsub.s32 0, %v4421
    %v4423 = vrot.slane %v4390, %v4422
    %v4425 = vmul.f32 %v4417, %v4423
    %v4426 = vmul.f32 %v4418, %v4423
    %v4428 = vlaneseq
    %v4429 = vshrl.u32 %v4428, 7
    %v4430 = vsub.s32 0, %v4429
    %v4431 = vrot.slane %v4392, %v4430
    %v4433 = vadd.f32 %v4425, %v4431
    %v4434 = vadd.f32 %v4426, %v4431
    %s4435 = scalar_lea.vmem [#allocation7], 768
    %v4436 = vld [vmem:[%s4435] sm:$0xff]
    %v4437 = vld [vmem:[%s4435 + $0x8] sm:$0xff]
    %v4438 = vld [vmem:[%s4435 + $0x10] sm:$0xff]
    %v4439 = vld [vmem:[%s4435 + $0x18] sm:$0xff]
    %v4440 = vld [vmem:[%s4435 + $0x20] sm:$0xff]
    %v4441 = vld [vmem:[%s4435 + $0x28] sm:$0xff]
    %v4442 = vld [vmem:[%s4435 + $0x30] sm:$0xff]
    %v4443 = vld [vmem:[%s4435 + $0x38] sm:$0xff]
    %v4444 = vld [vmem:[%s4435 + $0x40] sm:$0xff]
    %v4445 = vld [vmem:[%s4435 + $0x48] sm:$0xff]
    %v4446 = vld [vmem:[%s4435 + $0x50] sm:$0xff]
    %v4447 = vld [vmem:[%s4435 + $0x58] sm:$0xff]
    %v4448 = vld [vmem:[%s4435 + $0x60] sm:$0xff]
    %v4449 = vld [vmem:[%s4435 + $0x68] sm:$0xff]
    %v4450 = vld [vmem:[%s4435 + $0x70] sm:$0xff]
    %v4451 = vld [vmem:[%s4435 + $0x78] sm:$0xff]
    %v4452 = vld [vmem:[%s4435 + $0x80] sm:$0xff]
    %v4453 = vld [vmem:[%s4435 + $0x88] sm:$0xff]
    %v4454 = vld [vmem:[%s4435 + $0x90] sm:$0xff]
    %v4455 = vld [vmem:[%s4435 + $0x98] sm:$0xff]
    %v4456 = vld [vmem:[%s4435 + $0xa0] sm:$0xff]
    %v4457 = vld [vmem:[%s4435 + $0xa8] sm:$0xff]
    %v4458 = vld [vmem:[%s4435 + $0xb0] sm:$0xff]
    %v4459 = vld [vmem:[%s4435 + $0xb8] sm:$0xff]
    %v4460 = vld [vmem:[%s4435 + $0xc0] sm:$0xff]
    %v4461 = vld [vmem:[%s4435 + $0xc8] sm:$0xff]
    %v4462 = vld [vmem:[%s4435 + $0xd0] sm:$0xff]
    %v4463 = vld [vmem:[%s4435 + $0xd8] sm:$0xff]
    %v4464 = vld [vmem:[%s4435 + $0xe0] sm:$0xff]
    %v4465 = vld [vmem:[%s4435 + $0xe8] sm:$0xff]
    %v4466 = vld [vmem:[%s4435 + $0xf0] sm:$0xff]
    %v4467 = vld [vmem:[%s4435 + $0xf8] sm:$0xff]
    %v4468 = vpack.c.bf16 %v4434, %v4433
    %s4469 = scalar_lea.vmem %s11, 12
    %v4470 = vld [vmem:[%s4469] sm:$0xf]
    %v4472 = vlaneseq
    %v4473 = vshrl.u32 %v4472, 7
    %v4474 = vsub.s32 0, %v4473
    %v4475 = vrot.slane %v4470, %v4474
    %v4476 = vlaneseq
    %v4477 = vshrl.u32 %v4476, 7
    %v4478 = vsub.s32 1, %v4477
    %v4479 = vrot.slane %v4470, %v4478
    %v4480 = vlaneseq
    %v4481 = vshrl.u32 %v4480, 7
    %v4482 = vsub.s32 2, %v4481
    %v4483 = vrot.slane %v4470, %v4482
    %v4484 = vlaneseq
    %v4485 = vshrl.u32 %v4484, 7
    %v4486 = vsub.s32 3, %v4485
    %v4487 = vrot.slane %v4470, %v4486
    %v4524 = vunpack.c.l.b16 %v4436
    %v4525 = vunpack.c.h.b16 %v4436
    %v4526 = vunpack.c.l.b16 %v4437
    %v4527 = vunpack.c.h.b16 %v4437
    %v4528 = vunpack.c.l.b16 %v4438
    %v4529 = vunpack.c.h.b16 %v4438
    %v4530 = vunpack.c.l.b16 %v4439
    %v4531 = vunpack.c.h.b16 %v4439
    %v4532 = vunpack.c.l.b16 %v4440
    %v4533 = vunpack.c.h.b16 %v4440
    %v4534 = vunpack.c.l.b16 %v4441
    %v4535 = vunpack.c.h.b16 %v4441
    %v4536 = vunpack.c.l.b16 %v4442
    %v4537 = vunpack.c.h.b16 %v4442
    %v4538 = vunpack.c.l.b16 %v4443
    %v4539 = vunpack.c.h.b16 %v4443
    %v4540 = vunpack.c.l.b16 %v4444
    %v4541 = vunpack.c.h.b16 %v4444
    %v4542 = vunpack.c.l.b16 %v4445
    %v4543 = vunpack.c.h.b16 %v4445
    %v4544 = vunpack.c.l.b16 %v4446
    %v4545 = vunpack.c.h.b16 %v4446
    %v4546 = vunpack.c.l.b16 %v4447
    %v4547 = vunpack.c.h.b16 %v4447
    %v4548 = vunpack.c.l.b16 %v4448
    %v4549 = vunpack.c.h.b16 %v4448
    %v4550 = vunpack.c.l.b16 %v4449
    %v4551 = vunpack.c.h.b16 %v4449
    %v4552 = vunpack.c.l.b16 %v4450
    %v4553 = vunpack.c.h.b16 %v4450
    %v4554 = vunpack.c.l.b16 %v4451
    %v4555 = vunpack.c.h.b16 %v4451
    %v4556 = vunpack.c.l.b16 %v4452
    %v4557 = vunpack.c.h.b16 %v4452
    %v4558 = vunpack.c.l.b16 %v4453
    %v4559 = vunpack.c.h.b16 %v4453
    %v4560 = vunpack.c.l.b16 %v4454
    %v4561 = vunpack.c.h.b16 %v4454
    %v4562 = vunpack.c.l.b16 %v4455
    %v4563 = vunpack.c.h.b16 %v4455
    %v4564 = vunpack.c.l.b16 %v4456
    %v4565 = vunpack.c.h.b16 %v4456
    %v4566 = vunpack.c.l.b16 %v4457
    %v4567 = vunpack.c.h.b16 %v4457
    %v4568 = vunpack.c.l.b16 %v4458
    %v4569 = vunpack.c.h.b16 %v4458
    %v4570 = vunpack.c.l.b16 %v4459
    %v4571 = vunpack.c.h.b16 %v4459
    %v4572 = vunpack.c.l.b16 %v4460
    %v4573 = vunpack.c.h.b16 %v4460
    %v4574 = vunpack.c.l.b16 %v4461
    %v4575 = vunpack.c.h.b16 %v4461
    %v4576 = vunpack.c.l.b16 %v4462
    %v4577 = vunpack.c.h.b16 %v4462
    %v4578 = vunpack.c.l.b16 %v4463
    %v4579 = vunpack.c.h.b16 %v4463
    %v4580 = vunpack.c.l.b16 %v4464
    %v4581 = vunpack.c.h.b16 %v4464
    %v4582 = vunpack.c.l.b16 %v4465
    %v4583 = vunpack.c.h.b16 %v4465
    %v4584 = vunpack.c.l.b16 %v4466
    %v4585 = vunpack.c.h.b16 %v4466
    %v4586 = vunpack.c.l.b16 %v4467
    %v4587 = vunpack.c.h.b16 %v4467
    %v4588 = vpack.c.b16 %v4528, %v4524
    %v4589 = vpack.c.b16 %v4529, %v4525
    %v4590 = vpack.c.b16 %v4530, %v4526
    %v4591 = vpack.c.b16 %v4531, %v4527
    %v4592 = vpack.c.b16 %v4536, %v4532
    %v4593 = vpack.c.b16 %v4537, %v4533
    %v4594 = vpack.c.b16 %v4538, %v4534
    %v4595 = vpack.c.b16 %v4539, %v4535
    %v4596 = vpack.c.b16 %v4544, %v4540
    %v4597 = vpack.c.b16 %v4545, %v4541
    %v4598 = vpack.c.b16 %v4546, %v4542
    %v4599 = vpack.c.b16 %v4547, %v4543
    %v4600 = vpack.c.b16 %v4552, %v4548
    %v4601 = vpack.c.b16 %v4553, %v4549
    %v4602 = vpack.c.b16 %v4554, %v4550
    %v4603 = vpack.c.b16 %v4555, %v4551
    %v4604 = vpack.c.b16 %v4560, %v4556
    %v4605 = vpack.c.b16 %v4561, %v4557
    %v4606 = vpack.c.b16 %v4562, %v4558
    %v4607 = vpack.c.b16 %v4563, %v4559
    %v4608 = vpack.c.b16 %v4568, %v4564
    %v4609 = vpack.c.b16 %v4569, %v4565
    %v4610 = vpack.c.b16 %v4570, %v4566
    %v4611 = vpack.c.b16 %v4571, %v4567
    %v4612 = vpack.c.b16 %v4576, %v4572
    %v4613 = vpack.c.b16 %v4577, %v4573
    %v4614 = vpack.c.b16 %v4578, %v4574
    %v4615 = vpack.c.b16 %v4579, %v4575
    %v4616 = vpack.c.b16 %v4584, %v4580
    %v4617 = vpack.c.b16 %v4585, %v4581
    %v4618 = vpack.c.b16 %v4586, %v4582
    %v4619 = vpack.c.b16 %v4587, %v4583
    %4652 = vmatprep.subr.bf16.mxu0 %v4589
    %4653 = vmatpush1.bf16.msra.mxu0 %v4588
    %4654 = vmatprep.subr.bf16.mxu0 %v4593
    %4655 = vmatpush1.bf16.msra.mxu0 %v4592
    %4656 = vmatprep.subr.bf16.mxu0 %v4597
    %4657 = vmatpush1.bf16.msra.mxu0 %v4596
    %4658 = vmatprep.subr.bf16.mxu0 %v4601
    %4659 = vmatpush1.bf16.msra.mxu0 %v4600
    %4660 = vmatprep.subr.bf16.mxu0 %v4605
    %4661 = vmatpush1.bf16.msra.mxu0 %v4604
    %4662 = vmatprep.subr.bf16.mxu0 %v4609
    %4663 = vmatpush1.bf16.msra.mxu0 %v4608
    %4664 = vmatprep.subr.bf16.mxu0 %v4613
    %4665 = vmatpush1.bf16.msra.mxu0 %v4612
    %4666 = vmatprep.subr.bf16.mxu0 %v4617
    %4667 = vmatpush1.bf16.msra.mxu0 %v4616
    %4668 = vmatprep.subr.bf16.mxu0 0
    %4669 = vmatpush1.bf16.msra.mxu0 0
    %4670 = vmatprep.subr.bf16.mxu0 0
    %4671 = vmatpush1.bf16.msra.mxu0 0
    %4672 = vmatprep.subr.bf16.mxu0 0
    %4673 = vmatpush1.bf16.msra.mxu0 0
    %4674 = vmatprep.subr.bf16.mxu0 0
    %4675 = vmatpush1.bf16.msra.mxu0 0
    %4676 = vmatprep.subr.bf16.mxu0 0
    %4677 = vmatpush1.bf16.msra.mxu0 0
    %4678 = vmatprep.subr.bf16.mxu0 0
    %4679 = vmatpush1.bf16.msra.mxu0 0
    %4680 = vmatprep.subr.bf16.mxu0 0
    %4681 = vmatpush1.bf16.msra.mxu0 0
    %4682 = vmatprep.subr.bf16.mxu0 0
    %4683 = vmatpush1.bf16.msra.mxu0 0
    %4684 = vmatprep.mubr.bf16.mxu0 0
    %4685 = vmatmul.mubr.bf16.gmra.mrb[0].mxu0 %v4468
    %v4686 = vpop.f32.mrb[0].mxu0
    %v4687 = vadd.f32 %v4475, %v4686
    %v4688 = vpop.f32.mrb[0].mxu0
    %v4689 = vadd.f32 %v4479, %v4688
    %v4690 = vpop.f32.mrb[0].mxu0
    %v4691 = vadd.f32 %v4475, %v4690
    %v4692 = vpop.f32.mrb[0].mxu0
    %v4693 = vadd.f32 %v4479, %v4692
    %4694 = vdwg.mxu0
    %4695 = vmatprep.subr.bf16.mxu0 %v4591
    %4696 = vmatpush1.bf16.msra.mxu0 %v4590
    %4697 = vmatprep.subr.bf16.mxu0 %v4595
    %4698 = vmatpush1.bf16.msra.mxu0 %v4594
    %4699 = vmatprep.subr.bf16.mxu0 %v4599
    %4700 = vmatpush1.bf16.msra.mxu0 %v4598
    %4701 = vmatprep.subr.bf16.mxu0 %v4603
    %4702 = vmatpush1.bf16.msra.mxu0 %v4602
    %4703 = vmatprep.subr.bf16.mxu0 %v4607
    %4704 = vmatpush1.bf16.msra.mxu0 %v4606
    %4705 = vmatprep.subr.bf16.mxu0 %v4611
    %4706 = vmatpush1.bf16.msra.mxu0 %v4610
    %4707 = vmatprep.subr.bf16.mxu0 %v4615
    %4708 = vmatpush1.bf16.msra.mxu0 %v4614
    %4709 = vmatprep.subr.bf16.mxu0 %v4619
    %4710 = vmatpush1.bf16.msra.mxu0 %v4618
    %4711 = vmatprep.subr.bf16.mxu0 0
    %4712 = vmatpush1.bf16.msra.mxu0 0
    %4713 = vmatprep.subr.bf16.mxu0 0
    %4714 = vmatpush1.bf16.msra.mxu0 0
    %4715 = vmatprep.subr.bf16.mxu0 0
    %4716 = vmatpush1.bf16.msra.mxu0 0
    %4717 = vmatprep.subr.bf16.mxu0 0
    %4718 = vmatpush1.bf16.msra.mxu0 0
    %4719 = vmatprep.subr.bf16.mxu0 0
    %4720 = vmatpush1.bf16.msra.mxu0 0
    %4721 = vmatprep.subr.bf16.mxu0 0
    %4722 = vmatpush1.bf16.msra.mxu0 0
    %4723 = vmatprep.subr.bf16.mxu0 0
    %4724 = vmatpush1.bf16.msra.mxu0 0
    %4725 = vmatprep.subr.bf16.mxu0 0
    %4726 = vmatpush1.bf16.msra.mxu0 0
    %4727 = vmatprep.mubr.bf16.mxu0 0
    %4728 = vmatmul.mubr.bf16.gmra.mrb[0].mxu0 %v4468
    %v4729 = vpop.f32.mrb[0].mxu0
    %v4730 = vadd.f32 %v4483, %v4729
    %v4731 = vpop.f32.mrb[0].mxu0
    %v4732 = vadd.f32 %v4487, %v4731
    %v4733 = vpop.f32.mrb[0].mxu0
    %v4734 = vadd.f32 %v4483, %v4733
    %v4735 = vpop.f32.mrb[0].mxu0
    %v4736 = vadd.f32 %v4487, %v4735
    %4737 = vdwg.mxu0
    %v4738 = vmax.f32 %v4687, 0.0
    %v4739 = vmax.f32 %v4689, 0.0
    %v4740 = vmax.f32 %v4730, 0.0
    %v4741 = vmax.f32 %v4732, 0.0
    %v4742 = vmax.f32 %v4691, 0.0
    %v4743 = vmax.f32 %v4693, 0.0
    %v4744 = vmax.f32 %v4734, 0.0
    %v4745 = vmax.f32 %v4736, 0.0
    %s4746 = scalar_lea.vmem [#allocation8], 768
    %v4747 = vld [vmem:[%s4746] sm:$0xf]
    %v4748 = vld [vmem:[%s4746 + $0x4] sm:$0xf]
    %v4749 = vld [vmem:[%s4746 + $0x8] sm:$0xf]
    %v4750 = vld [vmem:[%s4746 + $0xc] sm:$0xf]
    %v4751 = vld [vmem:[%s4746 + $0x10] sm:$0xf]
    %v4752 = vld [vmem:[%s4746 + $0x14] sm:$0xf]
    %v4753 = vld [vmem:[%s4746 + $0x18] sm:$0xf]
    %v4754 = vld [vmem:[%s4746 + $0x1c] sm:$0xf]
    %v4755 = vld [vmem:[%s4746 + $0x20] sm:$0xf]
    %v4756 = vld [vmem:[%s4746 + $0x24] sm:$0xf]
    %v4757 = vld [vmem:[%s4746 + $0x28] sm:$0xf]
    %v4758 = vld [vmem:[%s4746 + $0x2c] sm:$0xf]
    %v4759 = vld [vmem:[%s4746 + $0x30] sm:$0xf]
    %v4760 = vld [vmem:[%s4746 + $0x34] sm:$0xf]
    %v4761 = vld [vmem:[%s4746 + $0x38] sm:$0xf]
    %v4762 = vld [vmem:[%s4746 + $0x3c] sm:$0xf]
    %v4763 = vld [vmem:[%s4746 + $0x40] sm:$0xf]
    %v4764 = vld [vmem:[%s4746 + $0x44] sm:$0xf]
    %v4765 = vld [vmem:[%s4746 + $0x48] sm:$0xf]
    %v4766 = vld [vmem:[%s4746 + $0x4c] sm:$0xf]
    %v4767 = vld [vmem:[%s4746 + $0x50] sm:$0xf]
    %v4768 = vld [vmem:[%s4746 + $0x54] sm:$0xf]
    %v4769 = vld [vmem:[%s4746 + $0x58] sm:$0xf]
    %v4770 = vld [vmem:[%s4746 + $0x5c] sm:$0xf]
    %v4771 = vld [vmem:[%s4746 + $0x60] sm:$0xf]
    %v4772 = vld [vmem:[%s4746 + $0x64] sm:$0xf]
    %v4773 = vld [vmem:[%s4746 + $0x68] sm:$0xf]
    %v4774 = vld [vmem:[%s4746 + $0x6c] sm:$0xf]
    %v4775 = vld [vmem:[%s4746 + $0x70] sm:$0xf]
    %v4776 = vld [vmem:[%s4746 + $0x74] sm:$0xf]
    %v4777 = vld [vmem:[%s4746 + $0x78] sm:$0xf]
    %v4778 = vld [vmem:[%s4746 + $0x7c] sm:$0xf]
    %v4779 = vld [vmem:[%s4746 + $0x80] sm:$0xf]
    %v4780 = vld [vmem:[%s4746 + $0x84] sm:$0xf]
    %v4781 = vld [vmem:[%s4746 + $0x88] sm:$0xf]
    %v4782 = vld [vmem:[%s4746 + $0x8c] sm:$0xf]
    %v4783 = vld [vmem:[%s4746 + $0x90] sm:$0xf]
    %v4784 = vld [vmem:[%s4746 + $0x94] sm:$0xf]
    %v4785 = vld [vmem:[%s4746 + $0x98] sm:$0xf]
    %v4786 = vld [vmem:[%s4746 + $0x9c] sm:$0xf]
    %v4787 = vld [vmem:[%s4746 + $0xa0] sm:$0xf]
    %v4788 = vld [vmem:[%s4746 + $0xa4] sm:$0xf]
    %v4789 = vld [vmem:[%s4746 + $0xa8] sm:$0xf]
    %v4790 = vld [vmem:[%s4746 + $0xac] sm:$0xf]
    %v4791 = vld [vmem:[%s4746 + $0xb0] sm:$0xf]
    %v4792 = vld [vmem:[%s4746 + $0xb4] sm:$0xf]
    %v4793 = vld [vmem:[%s4746 + $0xb8] sm:$0xf]
    %v4794 = vld [vmem:[%s4746 + $0xbc] sm:$0xf]
    %v4795 = vld [vmem:[%s4746 + $0xc0] sm:$0xf]
    %v4796 = vld [vmem:[%s4746 + $0xc4] sm:$0xf]
    %v4797 = vld [vmem:[%s4746 + $0xc8] sm:$0xf]
    %v4798 = vld [vmem:[%s4746 + $0xcc] sm:$0xf]
    %v4799 = vld [vmem:[%s4746 + $0xd0] sm:$0xf]
    %v4800 = vld [vmem:[%s4746 + $0xd4] sm:$0xf]
    %v4801 = vld [vmem:[%s4746 + $0xd8] sm:$0xf]
    %v4802 = vld [vmem:[%s4746 + $0xdc] sm:$0xf]
    %v4803 = vld [vmem:[%s4746 + $0xe0] sm:$0xf]
    %v4804 = vld [vmem:[%s4746 + $0xe4] sm:$0xf]
    %v4805 = vld [vmem:[%s4746 + $0xe8] sm:$0xf]
    %v4806 = vld [vmem:[%s4746 + $0xec] sm:$0xf]
    %v4807 = vld [vmem:[%s4746 + $0xf0] sm:$0xf]
    %v4808 = vld [vmem:[%s4746 + $0xf4] sm:$0xf]
    %v4809 = vld [vmem:[%s4746 + $0xf8] sm:$0xf]
    %v4810 = vld [vmem:[%s4746 + $0xfc] sm:$0xf]
    %v4811 = vpack.c.bf16 %v4742, %v4738
    %v4812 = vpack.c.bf16 %v4743, %v4739
    %v4813 = vpack.c.bf16 %v4744, %v4740
    %v4814 = vpack.c.bf16 %v4745, %v4741
    %s4815 = scalar_lea.vmem %s13, 3
    %v4816 = vld [vmem:[%s4815] sm:$0x1]
    %v4818 = vlaneseq
    %v4819 = vshrl.u32 %v4818, 7
    %v4820 = vsub.s32 0, %v4819
    %v4821 = vrot.slane %v4816, %v4820
    %v4887 = vunpack.c.l.b16 %v4747
    %v4888 = vunpack.c.l.b16 %v4748
    %v4889 = vunpack.c.l.b16 %v4749
    %v4890 = vunpack.c.l.b16 %v4750
    %v4891 = vunpack.c.l.b16 %v4751
    %v4892 = vunpack.c.l.b16 %v4752
    %v4893 = vunpack.c.l.b16 %v4753
    %v4894 = vunpack.c.l.b16 %v4754
    %v4895 = vunpack.c.l.b16 %v4755
    %v4896 = vunpack.c.l.b16 %v4756
    %v4897 = vunpack.c.l.b16 %v4757
    %v4898 = vunpack.c.l.b16 %v4758
    %v4899 = vunpack.c.l.b16 %v4759
    %v4900 = vunpack.c.l.b16 %v4760
    %v4901 = vunpack.c.l.b16 %v4761
    %v4902 = vunpack.c.l.b16 %v4762
    %v4903 = vunpack.c.l.b16 %v4763
    %v4904 = vunpack.c.l.b16 %v4764
    %v4905 = vunpack.c.l.b16 %v4765
    %v4906 = vunpack.c.l.b16 %v4766
    %v4907 = vunpack.c.l.b16 %v4767
    %v4908 = vunpack.c.l.b16 %v4768
    %v4909 = vunpack.c.l.b16 %v4769
    %v4910 = vunpack.c.l.b16 %v4770
    %v4911 = vunpack.c.l.b16 %v4771
    %v4912 = vunpack.c.l.b16 %v4772
    %v4913 = vunpack.c.l.b16 %v4773
    %v4914 = vunpack.c.l.b16 %v4774
    %v4915 = vunpack.c.l.b16 %v4775
    %v4916 = vunpack.c.l.b16 %v4776
    %v4917 = vunpack.c.l.b16 %v4777
    %v4918 = vunpack.c.l.b16 %v4778
    %v4919 = vunpack.c.l.b16 %v4779
    %v4920 = vunpack.c.l.b16 %v4780
    %v4921 = vunpack.c.l.b16 %v4781
    %v4922 = vunpack.c.l.b16 %v4782
    %v4923 = vunpack.c.l.b16 %v4783
    %v4924 = vunpack.c.l.b16 %v4784
    %v4925 = vunpack.c.l.b16 %v4785
    %v4926 = vunpack.c.l.b16 %v4786
    %v4927 = vunpack.c.l.b16 %v4787
    %v4928 = vunpack.c.l.b16 %v4788
    %v4929 = vunpack.c.l.b16 %v4789
    %v4930 = vunpack.c.l.b16 %v4790
    %v4931 = vunpack.c.l.b16 %v4791
    %v4932 = vunpack.c.l.b16 %v4792
    %v4933 = vunpack.c.l.b16 %v4793
    %v4934 = vunpack.c.l.b16 %v4794
    %v4935 = vunpack.c.l.b16 %v4795
    %v4936 = vunpack.c.l.b16 %v4796
    %v4937 = vunpack.c.l.b16 %v4797
    %v4938 = vunpack.c.l.b16 %v4798
    %v4939 = vunpack.c.l.b16 %v4799
    %v4940 = vunpack.c.l.b16 %v4800
    %v4941 = vunpack.c.l.b16 %v4801
    %v4942 = vunpack.c.l.b16 %v4802
    %v4943 = vunpack.c.l.b16 %v4803
    %v4944 = vunpack.c.l.b16 %v4804
    %v4945 = vunpack.c.l.b16 %v4805
    %v4946 = vunpack.c.l.b16 %v4806
    %v4947 = vunpack.c.l.b16 %v4807
    %v4948 = vunpack.c.l.b16 %v4808
    %v4949 = vunpack.c.l.b16 %v4809
    %v4950 = vunpack.c.l.b16 %v4810
    %v4951 = vpack.c.b16 %v4888, %v4887
    %v4952 = vpack.c.b16 %v4890, %v4889
    %v4953 = vpack.c.b16 %v4892, %v4891
    %v4954 = vpack.c.b16 %v4894, %v4893
    %v4955 = vpack.c.b16 %v4896, %v4895
    %v4956 = vpack.c.b16 %v4898, %v4897
    %v4957 = vpack.c.b16 %v4900, %v4899
    %v4958 = vpack.c.b16 %v4902, %v4901
    %v4959 = vpack.c.b16 %v4904, %v4903
    %v4960 = vpack.c.b16 %v4906, %v4905
    %v4961 = vpack.c.b16 %v4908, %v4907
    %v4962 = vpack.c.b16 %v4910, %v4909
    %v4963 = vpack.c.b16 %v4912, %v4911
    %v4964 = vpack.c.b16 %v4914, %v4913
    %v4965 = vpack.c.b16 %v4916, %v4915
    %v4966 = vpack.c.b16 %v4918, %v4917
    %v4967 = vpack.c.b16 %v4920, %v4919
    %v4968 = vpack.c.b16 %v4922, %v4921
    %v4969 = vpack.c.b16 %v4924, %v4923
    %v4970 = vpack.c.b16 %v4926, %v4925
    %v4971 = vpack.c.b16 %v4928, %v4927
    %v4972 = vpack.c.b16 %v4930, %v4929
    %v4973 = vpack.c.b16 %v4932, %v4931
    %v4974 = vpack.c.b16 %v4934, %v4933
    %v4975 = vpack.c.b16 %v4936, %v4935
    %v4976 = vpack.c.b16 %v4938, %v4937
    %v4977 = vpack.c.b16 %v4940, %v4939
    %v4978 = vpack.c.b16 %v4942, %v4941
    %v4979 = vpack.c.b16 %v4944, %v4943
    %v4980 = vpack.c.b16 %v4946, %v4945
    %v4981 = vpack.c.b16 %v4948, %v4947
    %v4982 = vpack.c.b16 %v4950, %v4949
    %5015 = vmatprep.subr.bf16.mxu0 0
    %5016 = vmatpush1.bf16.msra.mxu0 %v4951
    %5017 = vmatprep.subr.bf16.mxu0 0
    %5018 = vmatpush1.bf16.msra.mxu0 %v4952
    %5019 = vmatprep.subr.bf16.mxu0 0
    %5020 = vmatpush1.bf16.msra.mxu0 %v4953
    %5021 = vmatprep.subr.bf16.mxu0 0
    %5022 = vmatpush1.bf16.msra.mxu0 %v4954
    %5023 = vmatprep.subr.bf16.mxu0 0
    %5024 = vmatpush1.bf16.msra.mxu0 %v4955
    %5025 = vmatprep.subr.bf16.mxu0 0
    %5026 = vmatpush1.bf16.msra.mxu0 %v4956
    %5027 = vmatprep.subr.bf16.mxu0 0
    %5028 = vmatpush1.bf16.msra.mxu0 %v4957
    %5029 = vmatprep.subr.bf16.mxu0 0
    %5030 = vmatpush1.bf16.msra.mxu0 %v4958
    %5031 = vmatprep.subr.bf16.mxu0 0
    %5032 = vmatpush1.bf16.msra.mxu0 %v4959
    %5033 = vmatprep.subr.bf16.mxu0 0
    %5034 = vmatpush1.bf16.msra.mxu0 %v4960
    %5035 = vmatprep.subr.bf16.mxu0 0
    %5036 = vmatpush1.bf16.msra.mxu0 %v4961
    %5037 = vmatprep.subr.bf16.mxu0 0
    %5038 = vmatpush1.bf16.msra.mxu0 %v4962
    %5039 = vmatprep.subr.bf16.mxu0 0
    %5040 = vmatpush1.bf16.msra.mxu0 %v4963
    %5041 = vmatprep.subr.bf16.mxu0 0
    %5042 = vmatpush1.bf16.msra.mxu0 %v4964
    %5043 = vmatprep.subr.bf16.mxu0 0
    %5044 = vmatpush1.bf16.msra.mxu0 %v4965
    %5045 = vmatprep.subr.bf16.mxu0 0
    %5046 = vmatpush1.bf16.msra.mxu0 %v4966
    %5047 = vmatprep.mubr.bf16.mxu0 %v4812
    %5048 = vmatmul.mubr.bf16.gmra.mrb[0].mxu0 %v4811
    %v5049 = vpop.f32.mrb[0].mxu0
    %v5050 = vadd.f32 %v4821, %v5049
    %v5051 = vpop.f32.mrb[0].mxu0
    %v5052 = vpop.f32.mrb[0].mxu0
    %v5053 = vadd.f32 %v4821, %v5052
    %v5054 = vpop.f32.mrb[0].mxu0
    %5055 = vdwg.mxu0
    %5056 = vmatprep.subr.bf16.mxu0 0
    %5057 = vmatpush1.bf16.msra.mxu0 %v4967
    %5058 = vmatprep.subr.bf16.mxu0 0
    %5059 = vmatpush1.bf16.msra.mxu0 %v4968
    %5060 = vmatprep.subr.bf16.mxu0 0
    %5061 = vmatpush1.bf16.msra.mxu0 %v4969
    %5062 = vmatprep.subr.bf16.mxu0 0
    %5063 = vmatpush1.bf16.msra.mxu0 %v4970
    %5064 = vmatprep.subr.bf16.mxu0 0
    %5065 = vmatpush1.bf16.msra.mxu0 %v4971
    %5066 = vmatprep.subr.bf16.mxu0 0
    %5067 = vmatpush1.bf16.msra.mxu0 %v4972
    %5068 = vmatprep.subr.bf16.mxu0 0
    %5069 = vmatpush1.bf16.msra.mxu0 %v4973
    %5070 = vmatprep.subr.bf16.mxu0 0
    %5071 = vmatpush1.bf16.msra.mxu0 %v4974
    %5072 = vmatprep.subr.bf16.mxu0 0
    %5073 = vmatpush1.bf16.msra.mxu0 %v4975
    %5074 = vmatprep.subr.bf16.mxu0 0
    %5075 = vmatpush1.bf16.msra.mxu0 %v4976
    %5076 = vmatprep.subr.bf16.mxu0 0
    %5077 = vmatpush1.bf16.msra.mxu0 %v4977
    %5078 = vmatprep.subr.bf16.mxu0 0
    %5079 = vmatpush1.bf16.msra.mxu0 %v4978
    %5080 = vmatprep.subr.bf16.mxu0 0
    %5081 = vmatpush1.bf16.msra.mxu0 %v4979
    %5082 = vmatprep.subr.bf16.mxu0 0
    %5083 = vmatpush1.bf16.msra.mxu0 %v4980
    %5084 = vmatprep.subr.bf16.mxu0 0
    %5085 = vmatpush1.bf16.msra.mxu0 %v4981
    %5086 = vmatprep.subr.bf16.mxu0 0
    %5087 = vmatpush1.bf16.msra.mxu0 %v4982
    %5088 = vmatprep.mubr.bf16.mxu0 %v4814
    %5089 = vmatmul.mubr.bf16.gmra.mrb[0].mxu0 %v4813
    %v5090 = vpop.f32.mrb[0].mxu0
    %v5091 = vadd.f32 %v5050, %v5090
    %v5092 = vpop.f32.mrb[0].mxu0
    %v5093 = vpop.f32.mrb[0].mxu0
    %v5094 = vadd.f32 %v5053, %v5093
    %v5095 = vpop.f32.mrb[0].mxu0
    %5096 = vdwg.mxu0
    %v5097 = vadd.f32 %v4433, %v5091
    %v5098 = vadd.f32 %v4434, %v5094
    %s5099 = scalar_lea.vmem %s14, 3
    %v5100 = vld [vmem:[%s5099] sm:$0x1]
    %s5101 = scalar_lea.vmem %s15, 3
    %v5102 = vld [vmem:[%s5101] sm:$0x1]
    %5103 = vadd.xlane.f32.xlu0 %v5097
    %v5104 = vpop.xlane.xlu0 %5103
    %5105 = vadd.xlane.f32.xlu0 %v5098
    %v5106 = vpop.xlane.xlu0 %5105
    %v5107 = vmul.f32 %v5104, %v676
    %v5108 = vmul.f32 %v5106, %v676
    %v5109 = vmul.f32 %v5097, %v5097
    %v5110 = vmul.f32 %v5098, %v5098
    %5111 = vadd.xlane.f32.xlu0 %v5109
    %v5112 = vpop.xlane.xlu0 %5111
    %5113 = vadd.xlane.f32.xlu0 %v5110
    %v5114 = vpop.xlane.xlu0 %5113
    %v5115 = vmul.f32 %v5112, %v676
    %v5116 = vmul.f32 %v5114, %v676
    %v5117 = vmul.f32 %v5107, %v5107
    %v5118 = vmul.f32 %v5108, %v5108
    %v5119 = vsub.f32 %v5115, %v5117
    %v5120 = vsub.f32 %v5116, %v5118
    %v5121 = vsub.f32 %v5097, %v5107
    %v5122 = vsub.f32 %v5098, %v5108
    %v5123 = vadd.f32 %v5119, 1e-05
    %v5124 = vadd.f32 %v5120, 1e-05
    %v5125 = vrsqrt.pop %v5123
    %v5126 = vrsqrt.pop %v5124
    %v5127 = vmul.f32 %v5121, %v5125
    %v5128 = vmul.f32 %v5122, %v5126
    %v5130 = vlaneseq
    %v5131 = vshrl.u32 %v5130, 7
    %v5132 = vsub.s32 0, %v5131
    %v5133 = vrot.slane %v5100, %v5132
    %v5135 = vmul.f32 %v5127, %v5133
    %v5136 = vmul.f32 %v5128, %v5133
    %v5138 = vlaneseq
    %v5139 = vshrl.u32 %v5138, 7
    %v5140 = vsub.s32 0, %v5139
    %v5141 = vrot.slane %v5102, %v5140
    %v5143 = vadd.f32 %v5135, %v5141
    %v5144 = vadd.f32 %v5136, %v5141
    %v5145 = vadd.f32 %v5143, %v5144
    %v5146 = vmul.f32 %v5145, 0.5
    %v5147 = vld [vmem:[%s16] sm:$0x1]
    %v5148 = vld [vmem:[%s17] sm:$0x1]
    %5149 = vadd.xlane.f32.xlu0 %v5146
    %v5150 = vpop.xlane.xlu0 %5149
    %v5151 = vmul.f32 %v5150, %v676
    %v5152 = vmul.f32 %v5146, %v5146
    %5153 = vadd.xlane.f32.xlu0 %v5152
    %v5154 = vpop.xlane.xlu0 %5153
    %v5155 = vmul.f32 %v5154, %v676
    %v5156 = vmul.f32 %v5151, %v5151
    %v5157 = vsub.f32 %v5155, %v5156
    %v5158 = vsub.f32 %v5146, %v5151
    %v5159 = vadd.f32 %v5157, 1e-05
    %v5160 = vrsqrt.pop %v5159
    %v5161 = vmul.f32 %v5158, %v5160
    %v5163 = vlaneseq
    %v5164 = vshrl.u32 %v5163, 7
    %v5165 = vsub.s32 0, %v5164
    %v5166 = vrot.slane %v5147, %v5165
    %v5168 = vmul.f32 %v5161, %v5166
    %v5170 = vlaneseq
    %v5171 = vshrl.u32 %v5170, 7
    %v5172 = vsub.s32 0, %v5171
    %v5173 = vrot.slane %v5148, %v5172
    %v5175 = vadd.f32 %v5168, %v5173
    %5176 = vst [vmem:[#allocation10] sm:$0xff] %v5175
    // Predicated region
    $region90: #{tpu_custom_call.1} parent=1 // pred_check
      _
    $region91: #{tpu_custom_call.1} parent=1 // pred_check_branch
      %5178 = sbr.rel (0) target = $region93
    $region92: #{tpu_custom_call.1} parent=1 // pred_region
      %s5180 = ssub.s32 128, 128
      %5181 = vsyncadd [#allocation4], %s5180
      %s5183 = sshll.u32 [#allocation10], 4
      %s5184 = int_to_ptr.vmem [resolvable:$true] %s5183
      %5186 = dma.vmem_to_hbm [thread:$0]  %s5184, 128, %s18, [#allocation4]
    $region93: #{tpu_custom_call.1} parent=1 // pred_fallthru
      _
    // Predicated region
    $region94: #{tpu_custom_call.1} parent=1 // pred_check
      _
    $region95: #{tpu_custom_call.1} parent=1 // pred_check_branch
      %5188 = sbr.rel (0) target = $region97
    $region96: #{tpu_custom_call.1} parent=1 // pred_region
      %5189 = dma.done [#allocation4], 128
    $region97: #{tpu_custom_call.1} parent=1 // pred_fallthru
      _
    %5190 = vsyncpa [#allocation3], 1
    %5191 = vsyncpa [#allocation6], 1
    %5192 = vsyncpa [#allocation9], 1
    %5193 = vsyncpa [#allocation4], 1

</llo_original>
